<compile_context>
chip_gen: v6e
topology: v6e:2x2x1
jax: 0.10.0
libtpu: 0.0.40
codegen_flags: <defaults>
</compile_context>

<pallas_src>
import math
import functools

import jax
import jax.numpy as jnp
import numpy as np
from jax.experimental import pallas as pl
from jax.experimental.pallas import tpu as pltpu


def _layernorm(v, eps=1e-6):
    mu = jnp.mean(v, axis=-1, keepdims=True)
    var = jnp.mean((v - mu) ** 2, axis=-1, keepdims=True)
    return (v - mu) * jax.lax.rsqrt(var + eps)


def _dit_block_kernel(x_ref, c_ref, attn_bias_ref,
                      w_ada_ref, b_ada_ref,
                      w_qkv_ref, b_qkv_ref,
                      w_proj_ref, b_proj_ref,
                      w_fc1_ref, b_fc1_ref,
                      w_fc2_ref, b_fc2_ref,
                      out_ref, *, num_heads, head_dim):
    B, N, C = x_ref.shape
    BN = B * N
    x = x_ref[...]                                    # (B, N, C)
    cb = c_ref[...]                                   # (B, C)

    # ---- adaLN modulation for the whole batch in one matmul: Linear(SiLU(c)) -> 6 chunks ----
    c_silu = cb * jax.nn.sigmoid(cb)
    ada = jnp.dot(c_silu, w_ada_ref[...],
                  preferred_element_type=jnp.float32) + b_ada_ref[...]   # (B, 6C)
    shift_msa = ada[:, 0 * C:1 * C][:, None, :]
    scale_msa = ada[:, 1 * C:2 * C][:, None, :]
    gate_msa  = ada[:, 2 * C:3 * C][:, None, :]
    shift_mlp = ada[:, 3 * C:4 * C][:, None, :]
    scale_mlp = ada[:, 4 * C:5 * C][:, None, :]
    gate_mlp  = ada[:, 5 * C:6 * C][:, None, :]

    # ---- attention branch ----
    xm = _layernorm(x) * (1.0 + scale_msa) + shift_msa            # (B, N, C)
    xm_flat = xm.reshape(BN, C)                                   # fold batch into MXU rows
    qkv = jnp.dot(xm_flat, w_qkv_ref[...],
                  preferred_element_type=jnp.float32) + b_qkv_ref[...]   # (BN, 3C)

    bias = attn_bias_ref[...]                                     # (BN, BN) block-diag batch mask
    w_proj_t = w_proj_ref[...]                                    # (C, C) = W_proj.T
    inv_sqrt_d = 1.0 / math.sqrt(head_dim)
    dn_qkt = (((1,), (1,)), ((), ()))                             # q @ k^T without materializing k.T

    attn_acc = jnp.zeros((BN, C), jnp.float32)
    for h in range(num_heads):                                    # static loop over heads
        q = qkv[:, h * head_dim:(h + 1) * head_dim]               # (BN, hd)
        k = qkv[:, C + h * head_dim:C + (h + 1) * head_dim]
        v = qkv[:, 2 * C + h * head_dim:2 * C + (h + 1) * head_dim]
        s = jax.lax.dot_general(q, k, dn_qkt,
                                preferred_element_type=jnp.float32) * inv_sqrt_d + bias
        s = s - jnp.max(s, axis=-1, keepdims=True)
        p = jnp.exp(s)
        p = p * pl.reciprocal(jnp.sum(p, axis=-1, keepdims=True), approx=True)
        o = jnp.dot(p, v, preferred_element_type=jnp.float32)     # (BN, hd)
        # fused output projection: proj(concat_h o_h) == sum_h o_h @ W_proj.T[h*hd:(h+1)*hd, :]
        attn_acc = attn_acc + jnp.dot(o, w_proj_t[h * head_dim:(h + 1) * head_dim, :],
                                      preferred_element_type=jnp.float32)
    attn = attn_acc + b_proj_ref[...]                             # (BN, C)
    x1 = x + gate_msa * attn.reshape(B, N, C)

    # ---- MLP branch ----
    xm2 = _layernorm(x1) * (1.0 + scale_mlp) + shift_mlp
    h1 = jnp.dot(xm2.reshape(BN, C), w_fc1_ref[...],
                 preferred_element_type=jnp.float32) + b_fc1_ref[...]    # (BN, Hm)
    # exact (erf-based) GELU to match torch.nn.GELU()
    h1 = 0.5 * h1 * (1.0 + jax.lax.erf(h1 * (1.0 / math.sqrt(2.0))))
    h2 = jnp.dot(h1, w_fc2_ref[...],
                 preferred_element_type=jnp.float32) + b_fc2_ref[...]    # (BN, C)
    out_ref[...] = x1 + gate_mlp * h2.reshape(B, N, C)


def dit_block_forward(x, c, params, num_heads):
    B, N, C = x.shape
    head_dim = C // num_heads
    BN = B * N

    # Host-side (free) weight pre-transposition: Linear(v) = v @ W.T + b  ->  v @ Wt + b.
    w_ada_t = params["w_ada"].T      # (C, 6C)
    w_qkv_t = params["w_qkv"].T      # (C, 3C)
    w_proj_t = params["w_proj"].T    # (C, C)
    w_fc1_t = params["w_fc1"].T      # (C, Hm)
    w_fc2_t = params["w_fc2"].T      # (Hm, C)

    # Block-diagonal additive bias so attention over the flattened (B*N) axis never mixes
    # batch elements (0 within a batch element, -1e30 across).
    batch_id = jnp.arange(BN, dtype=jnp.int32) // N
    attn_bias = jnp.where(batch_id[:, None] == batch_id[None, :], 0.0, -1e30).astype(jnp.float32)

    kernel = functools.partial(_dit_block_kernel,
                               num_heads=num_heads, head_dim=head_dim)
    # Single invocation (no grid): the whole problem fits comfortably in VMEM, so there is no
    # per-step pipeline overhead and every projection matmul sees the full B*N row block.
    return pl.pallas_call(
        kernel,
        out_shape=jax.ShapeDtypeStruct((B, N, C), x.dtype),
    )(x, c, attn_bias,
      w_ada_t, params["b_ada"],
      w_qkv_t, params["b_qkv"],
      w_proj_t, params["b_proj"],
      w_fc1_t, params["b_fc1"],
      w_fc2_t, params["b_fc2"])


def dit_block_ref(x, c, params, num_heads):
    """Pure-JAX reference matching the PyTorch forward (window_size=0)."""
    B, N, C = x.shape
    hd = C // num_heads

    def ln(v):
        mu = v.mean(-1, keepdims=True)
        var = ((v - mu) ** 2).mean(-1, keepdims=True)
        return (v - mu) * jax.lax.rsqrt(var + 1e-6)

    ada = jax.nn.silu(c) @ params["w_ada"].T + params["b_ada"]
    shift_msa, scale_msa, gate_msa, shift_mlp, scale_mlp, gate_mlp = jnp.split(ada, 6, axis=1)

    xm = ln(x) * (1 + scale_msa[:, None, :]) + shift_msa[:, None, :]
    qkv = xm @ params["w_qkv"].T + params["b_qkv"]
    qkv = qkv.reshape(B, N, 3, num_heads, hd).transpose(2, 0, 3, 1, 4)
    q, k, v = qkv[0], qkv[1], qkv[2]
    s = jnp.einsum("bhqd,bhkd->bhqk", q, k) / math.sqrt(hd)
    p = jax.nn.softmax(s, axis=-1)
    o = jnp.einsum("bhqk,bhkd->bhqd", p, v)
    o = o.transpose(0, 2, 1, 3).reshape(B, N, C)
    o = o @ params["w_proj"].T + params["b_proj"]
    x1 = x + gate_msa[:, None, :] * o

    xm2 = ln(x1) * (1 + scale_mlp[:, None, :]) + shift_mlp[:, None, :]
    h1 = xm2 @ params["w_fc1"].T + params["b_fc1"]
    h1 = 0.5 * h1 * (1.0 + jax.lax.erf(h1 / math.sqrt(2.0)))
    h2 = h1 @ params["w_fc2"].T + params["b_fc2"]
    return x1 + gate_mlp[:, None, :] * h2


if __name__ == "__main__":
    key = jax.random.PRNGKey(0)
    B, num_heads, hidden = 2, 4, 32
    input_size = (4, 4, 4)                       # X, Y, Z -> N = 64 tokens
    N = input_size[0] * input_size[1] * input_size[2]
    mlp_hidden = int(hidden * 4.0)

    keys = jax.random.split(key, 12)

    def w(k, shape, scale=0.1):
        return (scale * jax.random.normal(k, shape)).astype(jnp.float32)

    params = dict(
        w_ada=w(keys[0], (6 * hidden, hidden)),
        b_ada=w(keys[1], (1, 6 * hidden)),
        w_qkv=w(keys[2], (3 * hidden, hidden)),
        b_qkv=w(keys[3], (1, 3 * hidden)),
        w_proj=w(keys[4], (hidden, hidden)),
        b_proj=w(keys[5], (1, hidden)),
        w_fc1=w(keys[6], (mlp_hidden, hidden)),
        b_fc1=w(keys[7], (1, mlp_hidden)),
        w_fc2=w(keys[8], (hidden, mlp_hidden)),
        b_fc2=w(keys[9], (1, hidden)),
    )
    x = jax.random.normal(keys[10], (B, N, hidden), dtype=jnp.float32)
    c = jax.random.normal(keys[11], (B, hidden), dtype=jnp.float32)

    out = dit_block_forward(x, c, params, num_heads)
    out = jax.block_until_ready(out)

    ref = dit_block_ref(x, c, params, num_heads)
    np.testing.assert_allclose(np.asarray(out), np.asarray(ref), rtol=2e-2, atol=2e-2)

    print("KERNEL_OK")
</pallas_src>

<mosaic_0001>
module attributes {stable_mosaic.version = 11 : i64} {
  func.func @_dit_block_kernel(%arg0: memref<2x64x32xf32, #tpu.memory_space<vmem>>, %arg1: memref<2x32xf32, #tpu.memory_space<vmem>>, %arg2: memref<128x128xf32, #tpu.memory_space<vmem>>, %arg3: memref<32x192xf32, #tpu.memory_space<vmem>>, %arg4: memref<1x192xf32, #tpu.memory_space<vmem>>, %arg5: memref<32x96xf32, #tpu.memory_space<vmem>>, %arg6: memref<1x96xf32, #tpu.memory_space<vmem>>, %arg7: memref<32x32xf32, #tpu.memory_space<vmem>>, %arg8: memref<1x32xf32, #tpu.memory_space<vmem>>, %arg9: memref<32x128xf32, #tpu.memory_space<vmem>>, %arg10: memref<1x128xf32, #tpu.memory_space<vmem>>, %arg11: memref<128x32xf32, #tpu.memory_space<vmem>>, %arg12: memref<1x32xf32, #tpu.memory_space<vmem>>, %arg13: memref<2x64x32xf32, #tpu.memory_space<vmem>>) attributes {dimension_semantics = [], scalar_prefetch = 0 : i64, scratch_operands = 0 : i64, tpu.core_type = #tpu.core_type<tc>} {
    %c0 = arith.constant 0 : index
    %c0_0 = arith.constant 0 : index
    %c0_1 = arith.constant 0 : index
    %0 = vector.load %arg0[%c0, %c0_0, %c0_1] : memref<2x64x32xf32, #tpu.memory_space<vmem>>, vector<2x64x32xf32>
    %c0_2 = arith.constant 0 : index
    %c0_3 = arith.constant 0 : index
    %1 = vector.load %arg1[%c0_2, %c0_3] : memref<2x32xf32, #tpu.memory_space<vmem>>, vector<2x32xf32>
    %2 = arith.negf %1 : vector<2x32xf32>
    %3 = math.exp %2 : vector<2x32xf32>
    %cst = arith.constant 1.000000e+00 : f32
    %4 = vector.broadcast %cst : f32 to vector<2x32xf32>
    %5 = arith.addf %4, %3 : vector<2x32xf32>
    %6 = arith.divf %4, %5 : vector<2x32xf32>
    %7 = arith.mulf %1, %6 : vector<2x32xf32>
    %c0_4 = arith.constant 0 : index
    %c0_5 = arith.constant 0 : index
    %8 = vector.load %arg3[%c0_4, %c0_5] : memref<32x192xf32, #tpu.memory_space<vmem>>, vector<32x192xf32>
    %cst_6 = arith.constant dense<0.000000e+00> : vector<2x192xf32>
    %9 = tpu.matmul %7, %8, %cst_6 {dimension_numbers = #tpu.dot_dimension_numbers<[1], [0], [0], [1], [0, 0, 1, 1], [], []>} : vector<2x32xf32>, vector<32x192xf32>, vector<2x192xf32> -> vector<2x192xf32>
    %c0_7 = arith.constant 0 : index
    %c0_8 = arith.constant 0 : index
    %10 = vector.load %arg4[%c0_7, %c0_8] : memref<1x192xf32, #tpu.memory_space<vmem>>, vector<1x192xf32>
    %11 = vector.broadcast %10 : vector<1x192xf32> to vector<2x192xf32>
    %12 = arith.addf %9, %11 : vector<2x192xf32>
    %13 = vector.extract_strided_slice %12 {offsets = [0, 0], sizes = [2, 32], strides = [1, 1]} : vector<2x192xf32> to vector<2x32xf32>
    %14 = vector.shape_cast %13 : vector<2x32xf32> to vector<2x1x32xf32>
    %15 = vector.extract_strided_slice %12 {offsets = [0, 32], sizes = [2, 32], strides = [1, 1]} : vector<2x192xf32> to vector<2x32xf32>
    %16 = vector.shape_cast %15 : vector<2x32xf32> to vector<2x1x32xf32>
    %17 = vector.extract_strided_slice %12 {offsets = [0, 64], sizes = [2, 32], strides = [1, 1]} : vector<2x192xf32> to vector<2x32xf32>
    %18 = vector.shape_cast %17 : vector<2x32xf32> to vector<2x1x32xf32>
    %19 = vector.extract_strided_slice %12 {offsets = [0, 96], sizes = [2, 32], strides = [1, 1]} : vector<2x192xf32> to vector<2x32xf32>
    %20 = vector.shape_cast %19 : vector<2x32xf32> to vector<2x1x32xf32>
    %21 = vector.extract_strided_slice %12 {offsets = [0, 128], sizes = [2, 32], strides = [1, 1]} : vector<2x192xf32> to vector<2x32xf32>
    %22 = vector.shape_cast %21 : vector<2x32xf32> to vector<2x1x32xf32>
    %23 = vector.extract_strided_slice %12 {offsets = [0, 160], sizes = [2, 32], strides = [1, 1]} : vector<2x192xf32> to vector<2x32xf32>
    %24 = vector.shape_cast %23 : vector<2x32xf32> to vector<2x1x32xf32>
    %cst_9 = arith.constant dense<0.000000e+00> : vector<2x64xf32>
    %25 = vector.multi_reduction <add>, %0, %cst_9 [2] : vector<2x64x32xf32> to vector<2x64xf32>
    %26 = vector.shape_cast %25 : vector<2x64xf32> to vector<2x64x1xf32>
    %cst_10 = arith.constant 3.200000e+01 : f32
    %27 = vector.broadcast %cst_10 : f32 to vector<2x64x1xf32>
    %28 = arith.divf %26, %27 : vector<2x64x1xf32>
    %29 = vector.broadcast %28 : vector<2x64x1xf32> to vector<2x64x32xf32>
    %30 = arith.subf %0, %29 : vector<2x64x32xf32>
    %31 = arith.mulf %30, %30 : vector<2x64x32xf32>
    %cst_11 = arith.constant dense<0.000000e+00> : vector<2x64xf32>
    %32 = vector.multi_reduction <add>, %31, %cst_11 [2] : vector<2x64x32xf32> to vector<2x64xf32>
    %33 = vector.shape_cast %32 : vector<2x64xf32> to vector<2x64x1xf32>
    %cst_12 = arith.constant 3.200000e+01 : f32
    %34 = vector.broadcast %cst_12 : f32 to vector<2x64x1xf32>
    %35 = arith.divf %33, %34 : vector<2x64x1xf32>
    %36 = vector.broadcast %28 : vector<2x64x1xf32> to vector<2x64x32xf32>
    %37 = arith.subf %0, %36 : vector<2x64x32xf32>
    %cst_13 = arith.constant 9.99999997E-7 : f32
    %38 = vector.broadcast %cst_13 : f32 to vector<2x64x1xf32>
    %39 = arith.addf %35, %38 : vector<2x64x1xf32>
    %40 = math.rsqrt %39 : vector<2x64x1xf32>
    %41 = vector.broadcast %40 : vector<2x64x1xf32> to vector<2x64x32xf32>
    %42 = arith.mulf %37, %41 : vector<2x64x32xf32>
    %cst_14 = arith.constant 1.000000e+00 : f32
    %43 = vector.broadcast %cst_14 : f32 to vector<2x1x32xf32>
    %44 = arith.addf %43, %16 : vector<2x1x32xf32>
    %45 = vector.broadcast %44 : vector<2x1x32xf32> to vector<2x64x32xf32>
    %46 = arith.mulf %42, %45 : vector<2x64x32xf32>
    %47 = vector.broadcast %14 : vector<2x1x32xf32> to vector<2x64x32xf32>
    %48 = arith.addf %46, %47 : vector<2x64x32xf32>
    %49 = vector.shape_cast %48 : vector<2x64x32xf32> to vector<128x32xf32>
    %c0_15 = arith.constant 0 : index
    %c0_16 = arith.constant 0 : index
    %50 = vector.load %arg5[%c0_15, %c0_16] : memref<32x96xf32, #tpu.memory_space<vmem>>, vector<32x96xf32>
    %cst_17 = arith.constant dense<0.000000e+00> : vector<128x96xf32>
    %51 = tpu.matmul %49, %50, %cst_17 {dimension_numbers = #tpu.dot_dimension_numbers<[1], [0], [0], [1], [0, 0, 1, 1], [], []>} : vector<128x32xf32>, vector<32x96xf32>, vector<128x96xf32> -> vector<128x96xf32>
    %c0_18 = arith.constant 0 : index
    %c0_19 = arith.constant 0 : index
    %52 = vector.load %arg6[%c0_18, %c0_19] : memref<1x96xf32, #tpu.memory_space<vmem>>, vector<1x96xf32>
    %53 = vector.broadcast %52 : vector<1x96xf32> to vector<128x96xf32>
    %54 = arith.addf %51, %53 : vector<128x96xf32>
    %c0_20 = arith.constant 0 : index
    %c0_21 = arith.constant 0 : index
    %55 = vector.load %arg2[%c0_20, %c0_21] : memref<128x128xf32, #tpu.memory_space<vmem>>, vector<128x128xf32>
    %c0_22 = arith.constant 0 : index
    %c0_23 = arith.constant 0 : index
    %56 = vector.load %arg7[%c0_22, %c0_23] : memref<32x32xf32, #tpu.memory_space<vmem>>, vector<32x32xf32>
    %cst_24 = arith.constant 0.000000e+00 : f32
    %57 = vector.broadcast %cst_24 : f32 to vector<128x32xf32>
    %58 = vector.extract_strided_slice %54 {offsets = [0, 0], sizes = [128, 8], strides = [1, 1]} : vector<128x96xf32> to vector<128x8xf32>
    %59 = vector.extract_strided_slice %54 {offsets = [0, 32], sizes = [128, 8], strides = [1, 1]} : vector<128x96xf32> to vector<128x8xf32>
    %60 = vector.extract_strided_slice %54 {offsets = [0, 64], sizes = [128, 8], strides = [1, 1]} : vector<128x96xf32> to vector<128x8xf32>
    %cst_25 = arith.constant dense<0.000000e+00> : vector<128x128xf32>
    %61 = tpu.matmul %58, %59, %cst_25 {dimension_numbers = #tpu.dot_dimension_numbers<[1], [1], [0], [0], [0, 0, 1, 0], [], []>} : vector<128x8xf32>, vector<128x8xf32>, vector<128x128xf32> -> vector<128x128xf32>
    %cst_26 = arith.constant 0.353553385 : f32
    %62 = vector.broadcast %cst_26 : f32 to vector<128x128xf32>
    %63 = arith.mulf %61, %62 : vector<128x128xf32>
    %64 = arith.addf %63, %55 : vector<128x128xf32>
    %cst_27 = arith.constant dense<0xFF800000> : vector<128xf32>
    %65 = vector.multi_reduction <maximumf>, %64, %cst_27 [1] : vector<128x128xf32> to vector<128xf32>
    %66 = vector.shape_cast %65 : vector<128xf32> to vector<128x1xf32>
    %67 = vector.broadcast %66 : vector<128x1xf32> to vector<128x128xf32>
    %68 = arith.subf %64, %67 : vector<128x128xf32>
    %69 = math.exp %68 : vector<128x128xf32>
    %cst_28 = arith.constant dense<0.000000e+00> : vector<128xf32>
    %70 = vector.multi_reduction <add>, %69, %cst_28 [1] : vector<128x128xf32> to vector<128xf32>
    %71 = vector.shape_cast %70 : vector<128xf32> to vector<128x1xf32>
    %72 = tpu.reciprocal %71 {approx = true} : vector<128x1xf32> -> vector<128x1xf32>
    %73 = vector.broadcast %72 : vector<128x1xf32> to vector<128x128xf32>
    %74 = arith.mulf %69, %73 : vector<128x128xf32>
    %cst_29 = arith.constant dense<0.000000e+00> : vector<128x8xf32>
    %75 = tpu.matmul %74, %60, %cst_29 {dimension_numbers = #tpu.dot_dimension_numbers<[1], [0], [0], [1], [0, 0, 1, 1], [], []>} : vector<128x128xf32>, vector<128x8xf32>, vector<128x8xf32> -> vector<128x8xf32>
    %76 = vector.extract_strided_slice %56 {offsets = [0, 0], sizes = [8, 32], strides = [1, 1]} : vector<32x32xf32> to vector<8x32xf32>
    %cst_30 = arith.constant dense<0.000000e+00> : vector<128x32xf32>
    %77 = tpu.matmul %75, %76, %cst_30 {dimension_numbers = #tpu.dot_dimension_numbers<[1], [0], [0], [1], [0, 0, 1, 1], [], []>} : vector<128x8xf32>, vector<8x32xf32>, vector<128x32xf32> -> vector<128x32xf32>
    %78 = arith.addf %57, %77 : vector<128x32xf32>
    %79 = vector.extract_strided_slice %54 {offsets = [0, 8], sizes = [128, 8], strides = [1, 1]} : vector<128x96xf32> to vector<128x8xf32>
    %80 = vector.extract_strided_slice %54 {offsets = [0, 40], sizes = [128, 8], strides = [1, 1]} : vector<128x96xf32> to vector<128x8xf32>
    %81 = vector.extract_strided_slice %54 {offsets = [0, 72], sizes = [128, 8], strides = [1, 1]} : vector<128x96xf32> to vector<128x8xf32>
    %cst_31 = arith.constant dense<0.000000e+00> : vector<128x128xf32>
    %82 = tpu.matmul %79, %80, %cst_31 {dimension_numbers = #tpu.dot_dimension_numbers<[1], [1], [0], [0], [0, 0, 1, 0], [], []>} : vector<128x8xf32>, vector<128x8xf32>, vector<128x128xf32> -> vector<128x128xf32>
    %cst_32 = arith.constant 0.353553385 : f32
    %83 = vector.broadcast %cst_32 : f32 to vector<128x128xf32>
    %84 = arith.mulf %82, %83 : vector<128x128xf32>
    %85 = arith.addf %84, %55 : vector<128x128xf32>
    %cst_33 = arith.constant dense<0xFF800000> : vector<128xf32>
    %86 = vector.multi_reduction <maximumf>, %85, %cst_33 [1] : vector<128x128xf32> to vector<128xf32>
    %87 = vector.shape_cast %86 : vector<128xf32> to vector<128x1xf32>
    %88 = vector.broadcast %87 : vector<128x1xf32> to vector<128x128xf32>
    %89 = arith.subf %85, %88 : vector<128x128xf32>
    %90 = math.exp %89 : vector<128x128xf32>
    %cst_34 = arith.constant dense<0.000000e+00> : vector<128xf32>
    %91 = vector.multi_reduction <add>, %90, %cst_34 [1] : vector<128x128xf32> to vector<128xf32>
    %92 = vector.shape_cast %91 : vector<128xf32> to vector<128x1xf32>
    %93 = tpu.reciprocal %92 {approx = true} : vector<128x1xf32> -> vector<128x1xf32>
    %94 = vector.broadcast %93 : vector<128x1xf32> to vector<128x128xf32>
    %95 = arith.mulf %90, %94 : vector<128x128xf32>
    %cst_35 = arith.constant dense<0.000000e+00> : vector<128x8xf32>
    %96 = tpu.matmul %95, %81, %cst_35 {dimension_numbers = #tpu.dot_dimension_numbers<[1], [0], [0], [1], [0, 0, 1, 1], [], []>} : vector<128x128xf32>, vector<128x8xf32>, vector<128x8xf32> -> vector<128x8xf32>
    %97 = vector.extract_strided_slice %56 {offsets = [8, 0], sizes = [8, 32], strides = [1, 1]} : vector<32x32xf32> to vector<8x32xf32>
    %cst_36 = arith.constant dense<0.000000e+00> : vector<128x32xf32>
    %98 = tpu.matmul %96, %97, %cst_36 {dimension_numbers = #tpu.dot_dimension_numbers<[1], [0], [0], [1], [0, 0, 1, 1], [], []>} : vector<128x8xf32>, vector<8x32xf32>, vector<128x32xf32> -> vector<128x32xf32>
    %99 = arith.addf %78, %98 : vector<128x32xf32>
    %100 = vector.extract_strided_slice %54 {offsets = [0, 16], sizes = [128, 8], strides = [1, 1]} : vector<128x96xf32> to vector<128x8xf32>
    %101 = vector.extract_strided_slice %54 {offsets = [0, 48], sizes = [128, 8], strides = [1, 1]} : vector<128x96xf32> to vector<128x8xf32>
    %102 = vector.extract_strided_slice %54 {offsets = [0, 80], sizes = [128, 8], strides = [1, 1]} : vector<128x96xf32> to vector<128x8xf32>
    %cst_37 = arith.constant dense<0.000000e+00> : vector<128x128xf32>
    %103 = tpu.matmul %100, %101, %cst_37 {dimension_numbers = #tpu.dot_dimension_numbers<[1], [1], [0], [0], [0, 0, 1, 0], [], []>} : vector<128x8xf32>, vector<128x8xf32>, vector<128x128xf32> -> vector<128x128xf32>
    %cst_38 = arith.constant 0.353553385 : f32
    %104 = vector.broadcast %cst_38 : f32 to vector<128x128xf32>
    %105 = arith.mulf %103, %104 : vector<128x128xf32>
    %106 = arith.addf %105, %55 : vector<128x128xf32>
    %cst_39 = arith.constant dense<0xFF800000> : vector<128xf32>
    %107 = vector.multi_reduction <maximumf>, %106, %cst_39 [1] : vector<128x128xf32> to vector<128xf32>
    %108 = vector.shape_cast %107 : vector<128xf32> to vector<128x1xf32>
    %109 = vector.broadcast %108 : vector<128x1xf32> to vector<128x128xf32>
    %110 = arith.subf %106, %109 : vector<128x128xf32>
    %111 = math.exp %110 : vector<128x128xf32>
    %cst_40 = arith.constant dense<0.000000e+00> : vector<128xf32>
    %112 = vector.multi_reduction <add>, %111, %cst_40 [1] : vector<128x128xf32> to vector<128xf32>
    %113 = vector.shape_cast %112 : vector<128xf32> to vector<128x1xf32>
    %114 = tpu.reciprocal %113 {approx = true} : vector<128x1xf32> -> vector<128x1xf32>
    %115 = vector.broadcast %114 : vector<128x1xf32> to vector<128x128xf32>
    %116 = arith.mulf %111, %115 : vector<128x128xf32>
    %cst_41 = arith.constant dense<0.000000e+00> : vector<128x8xf32>
    %117 = tpu.matmul %116, %102, %cst_41 {dimension_numbers = #tpu.dot_dimension_numbers<[1], [0], [0], [1], [0, 0, 1, 1], [], []>} : vector<128x128xf32>, vector<128x8xf32>, vector<128x8xf32> -> vector<128x8xf32>
    %118 = vector.extract_strided_slice %56 {offsets = [16, 0], sizes = [8, 32], strides = [1, 1]} : vector<32x32xf32> to vector<8x32xf32>
    %cst_42 = arith.constant dense<0.000000e+00> : vector<128x32xf32>
    %119 = tpu.matmul %117, %118, %cst_42 {dimension_numbers = #tpu.dot_dimension_numbers<[1], [0], [0], [1], [0, 0, 1, 1], [], []>} : vector<128x8xf32>, vector<8x32xf32>, vector<128x32xf32> -> vector<128x32xf32>
    %120 = arith.addf %99, %119 : vector<128x32xf32>
    %121 = vector.extract_strided_slice %54 {offsets = [0, 24], sizes = [128, 8], strides = [1, 1]} : vector<128x96xf32> to vector<128x8xf32>
    %122 = vector.extract_strided_slice %54 {offsets = [0, 56], sizes = [128, 8], strides = [1, 1]} : vector<128x96xf32> to vector<128x8xf32>
    %123 = vector.extract_strided_slice %54 {offsets = [0, 88], sizes = [128, 8], strides = [1, 1]} : vector<128x96xf32> to vector<128x8xf32>
    %cst_43 = arith.constant dense<0.000000e+00> : vector<128x128xf32>
    %124 = tpu.matmul %121, %122, %cst_43 {dimension_numbers = #tpu.dot_dimension_numbers<[1], [1], [0], [0], [0, 0, 1, 0], [], []>} : vector<128x8xf32>, vector<128x8xf32>, vector<128x128xf32> -> vector<128x128xf32>
    %cst_44 = arith.constant 0.353553385 : f32
    %125 = vector.broadcast %cst_44 : f32 to vector<128x128xf32>
    %126 = arith.mulf %124, %125 : vector<128x128xf32>
    %127 = arith.addf %126, %55 : vector<128x128xf32>
    %cst_45 = arith.constant dense<0xFF800000> : vector<128xf32>
    %128 = vector.multi_reduction <maximumf>, %127, %cst_45 [1] : vector<128x128xf32> to vector<128xf32>
    %129 = vector.shape_cast %128 : vector<128xf32> to vector<128x1xf32>
    %130 = vector.broadcast %129 : vector<128x1xf32> to vector<128x128xf32>
    %131 = arith.subf %127, %130 : vector<128x128xf32>
    %132 = math.exp %131 : vector<128x128xf32>
    %cst_46 = arith.constant dense<0.000000e+00> : vector<128xf32>
    %133 = vector.multi_reduction <add>, %132, %cst_46 [1] : vector<128x128xf32> to vector<128xf32>
    %134 = vector.shape_cast %133 : vector<128xf32> to vector<128x1xf32>
    %135 = tpu.reciprocal %134 {approx = true} : vector<128x1xf32> -> vector<128x1xf32>
    %136 = vector.broadcast %135 : vector<128x1xf32> to vector<128x128xf32>
    %137 = arith.mulf %132, %136 : vector<128x128xf32>
    %cst_47 = arith.constant dense<0.000000e+00> : vector<128x8xf32>
    %138 = tpu.matmul %137, %123, %cst_47 {dimension_numbers = #tpu.dot_dimension_numbers<[1], [0], [0], [1], [0, 0, 1, 1], [], []>} : vector<128x128xf32>, vector<128x8xf32>, vector<128x8xf32> -> vector<128x8xf32>
    %139 = vector.extract_strided_slice %56 {offsets = [24, 0], sizes = [8, 32], strides = [1, 1]} : vector<32x32xf32> to vector<8x32xf32>
    %cst_48 = arith.constant dense<0.000000e+00> : vector<128x32xf32>
    %140 = tpu.matmul %138, %139, %cst_48 {dimension_numbers = #tpu.dot_dimension_numbers<[1], [0], [0], [1], [0, 0, 1, 1], [], []>} : vector<128x8xf32>, vector<8x32xf32>, vector<128x32xf32> -> vector<128x32xf32>
    %141 = arith.addf %120, %140 : vector<128x32xf32>
    %c0_49 = arith.constant 0 : index
    %c0_50 = arith.constant 0 : index
    %142 = vector.load %arg8[%c0_49, %c0_50] : memref<1x32xf32, #tpu.memory_space<vmem>>, vector<1x32xf32>
    %143 = vector.broadcast %142 : vector<1x32xf32> to vector<128x32xf32>
    %144 = arith.addf %141, %143 : vector<128x32xf32>
    %145 = vector.shape_cast %144 : vector<128x32xf32> to vector<2x64x32xf32>
    %146 = vector.broadcast %18 : vector<2x1x32xf32> to vector<2x64x32xf32>
    %147 = arith.mulf %146, %145 : vector<2x64x32xf32>
    %148 = arith.addf %0, %147 : vector<2x64x32xf32>
    %cst_51 = arith.constant dense<0.000000e+00> : vector<2x64xf32>
    %149 = vector.multi_reduction <add>, %148, %cst_51 [2] : vector<2x64x32xf32> to vector<2x64xf32>
    %150 = vector.shape_cast %149 : vector<2x64xf32> to vector<2x64x1xf32>
    %cst_52 = arith.constant 3.200000e+01 : f32
    %151 = vector.broadcast %cst_52 : f32 to vector<2x64x1xf32>
    %152 = arith.divf %150, %151 : vector<2x64x1xf32>
    %153 = vector.broadcast %152 : vector<2x64x1xf32> to vector<2x64x32xf32>
    %154 = arith.subf %148, %153 : vector<2x64x32xf32>
    %155 = arith.mulf %154, %154 : vector<2x64x32xf32>
    %cst_53 = arith.constant dense<0.000000e+00> : vector<2x64xf32>
    %156 = vector.multi_reduction <add>, %155, %cst_53 [2] : vector<2x64x32xf32> to vector<2x64xf32>
    %157 = vector.shape_cast %156 : vector<2x64xf32> to vector<2x64x1xf32>
    %cst_54 = arith.constant 3.200000e+01 : f32
    %158 = vector.broadcast %cst_54 : f32 to vector<2x64x1xf32>
    %159 = arith.divf %157, %158 : vector<2x64x1xf32>
    %160 = vector.broadcast %152 : vector<2x64x1xf32> to vector<2x64x32xf32>
    %161 = arith.subf %148, %160 : vector<2x64x32xf32>
    %cst_55 = arith.constant 9.99999997E-7 : f32
    %162 = vector.broadcast %cst_55 : f32 to vector<2x64x1xf32>
    %163 = arith.addf %159, %162 : vector<2x64x1xf32>
    %164 = math.rsqrt %163 : vector<2x64x1xf32>
    %165 = vector.broadcast %164 : vector<2x64x1xf32> to vector<2x64x32xf32>
    %166 = arith.mulf %161, %165 : vector<2x64x32xf32>
    %cst_56 = arith.constant 1.000000e+00 : f32
    %167 = vector.broadcast %cst_56 : f32 to vector<2x1x32xf32>
    %168 = arith.addf %167, %22 : vector<2x1x32xf32>
    %169 = vector.broadcast %168 : vector<2x1x32xf32> to vector<2x64x32xf32>
    %170 = arith.mulf %166, %169 : vector<2x64x32xf32>
    %171 = vector.broadcast %20 : vector<2x1x32xf32> to vector<2x64x32xf32>
    %172 = arith.addf %170, %171 : vector<2x64x32xf32>
    %173 = vector.shape_cast %172 : vector<2x64x32xf32> to vector<128x32xf32>
    %c0_57 = arith.constant 0 : index
    %c0_58 = arith.constant 0 : index
    %174 = vector.load %arg9[%c0_57, %c0_58] : memref<32x128xf32, #tpu.memory_space<vmem>>, vector<32x128xf32>
    %cst_59 = arith.constant dense<0.000000e+00> : vector<128x128xf32>
    %175 = tpu.matmul %173, %174, %cst_59 {dimension_numbers = #tpu.dot_dimension_numbers<[1], [0], [0], [1], [0, 0, 1, 1], [], []>} : vector<128x32xf32>, vector<32x128xf32>, vector<128x128xf32> -> vector<128x128xf32>
    %c0_60 = arith.constant 0 : index
    %c0_61 = arith.constant 0 : index
    %176 = vector.load %arg10[%c0_60, %c0_61] : memref<1x128xf32, #tpu.memory_space<vmem>>, vector<1x128xf32>
    %177 = vector.broadcast %176 : vector<1x128xf32> to vector<128x128xf32>
    %178 = arith.addf %175, %177 : vector<128x128xf32>
    %cst_62 = arith.constant 5.000000e-01 : f32
    %179 = vector.broadcast %cst_62 : f32 to vector<128x128xf32>
    %180 = arith.mulf %179, %178 : vector<128x128xf32>
    %cst_63 = arith.constant 0.707106769 : f32
    %181 = vector.broadcast %cst_63 : f32 to vector<128x128xf32>
    %182 = arith.mulf %178, %181 : vector<128x128xf32>
    %183 = math.erf %182 : vector<128x128xf32>
    %cst_64 = arith.constant 1.000000e+00 : f32
    %184 = vector.broadcast %cst_64 : f32 to vector<128x128xf32>
    %185 = arith.addf %184, %183 : vector<128x128xf32>
    %186 = arith.mulf %180, %185 : vector<128x128xf32>
    %c0_65 = arith.constant 0 : index
    %c0_66 = arith.constant 0 : index
    %187 = vector.load %arg11[%c0_65, %c0_66] : memref<128x32xf32, #tpu.memory_space<vmem>>, vector<128x32xf32>
    %cst_67 = arith.constant dense<0.000000e+00> : vector<128x32xf32>
    %188 = tpu.matmul %186, %187, %cst_67 {dimension_numbers = #tpu.dot_dimension_numbers<[1], [0], [0], [1], [0, 0, 1, 1], [], []>} : vector<128x128xf32>, vector<128x32xf32>, vector<128x32xf32> -> vector<128x32xf32>
    %c0_68 = arith.constant 0 : index
    %c0_69 = arith.constant 0 : index
    %189 = vector.load %arg12[%c0_68, %c0_69] : memref<1x32xf32, #tpu.memory_space<vmem>>, vector<1x32xf32>
    %190 = vector.broadcast %189 : vector<1x32xf32> to vector<128x32xf32>
    %191 = arith.addf %188, %190 : vector<128x32xf32>
    %192 = vector.shape_cast %191 : vector<128x32xf32> to vector<2x64x32xf32>
    %193 = vector.broadcast %24 : vector<2x1x32xf32> to vector<2x64x32xf32>
    %194 = arith.mulf %193, %192 : vector<2x64x32xf32>
    %195 = arith.addf %148, %194 : vector<2x64x32xf32>
    %c0_70 = arith.constant 0 : index
    %c0_71 = arith.constant 0 : index
    %c0_72 = arith.constant 0 : index
    %196 = vector.load %arg13[%c0_70, %c0_71, %c0_72] : memref<2x64x32xf32, #tpu.memory_space<vmem>>, vector<2x64x32xf32>
    tpu.vector_store %arg13[%c0_70, %c0_71, %c0_72], %195 {strides = array<i32>} : memref<2x64x32xf32, #tpu.memory_space<vmem>>, vector<2x64x32xf32>,
    return
  }
}

</mosaic_0001>

<llo_original>
// kernel: tpu_custom_call.1
$region0: #{tpu_custom_call.1}
  #allocation0 [shape = 'u32[]', space=smem, size = 0x4, offset = 0x4, fixed_abs, tag = 'smem constant byte address 0x4 - core index']
  #allocation1 [shape = 'u32[144,128]{1,0:T(1,128)}', space=vmem, size = 0x12000, scoped, tag = 'internal scratch']
  %s0 = inlined_call_operand.vmem [shape: f32[2,64,32], index: 0, kind: input, shape index: {}]
  %s1 = inlined_call_operand.vmem [shape: f32[2,32], index: 1, kind: input, shape index: {}]
  %s2 = inlined_call_operand.vmem [shape: f32[128,128], index: 2, kind: input, shape index: {}]
  %s3 = inlined_call_operand.vmem [shape: f32[32,192], index: 3, kind: input, shape index: {}]
  %s4 = inlined_call_operand.vmem [shape: f32[1,192], index: 4, kind: input, shape index: {}]
  %s5 = inlined_call_operand.vmem [shape: f32[32,96], index: 5, kind: input, shape index: {}]
  %s6 = inlined_call_operand.vmem [shape: f32[1,96], index: 6, kind: input, shape index: {}]
  %s7 = inlined_call_operand.vmem [shape: f32[32,32], index: 7, kind: input, shape index: {}]
  %s8 = inlined_call_operand.vmem [shape: f32[1,32], index: 8, kind: input, shape index: {}]
  %s9 = inlined_call_operand.vmem [shape: f32[32,128], index: 9, kind: input, shape index: {}]
  %s10 = inlined_call_operand.vmem [shape: f32[1,128], index: 10, kind: input, shape index: {}]
  %s11 = inlined_call_operand.vmem [shape: f32[128,32], index: 11, kind: input, shape index: {}]
  %s12 = inlined_call_operand.vmem [shape: f32[1,32], index: 12, kind: input, shape index: {}]
  %s13 = inlined_call_operand.vmem [shape: f32[2,64,32], index: 13, kind: output, shape index: {}]
  %s14 = sld [smem:[#allocation0]]
  $region62: #{tpu_custom_call.1} parent=0
    _
  %s16 = ssub.s32 1, %s14
  %s17 = scalar_select 0, %s16, %s14
  // Predicated region
  $region2: #{tpu_custom_call.1} parent=0 // pred_check
    _
  $region3: #{tpu_custom_call.1} parent=0 // pred_check_branch
    %19 = sbr.rel (0) target = $region5
  $region4: #{tpu_custom_call.1} parent=0 // pred_region
    _
  $region5: #{tpu_custom_call.1} parent=0 // pred_fallthru
    _
  // Predicated region
  $region6: #{tpu_custom_call.1} parent=0 // pred_check
    _
  $region7: #{tpu_custom_call.1} parent=0 // pred_check_branch
    %21 = sbr.rel (0) target = $region9
  $region8: #{tpu_custom_call.1} parent=0 // pred_region
    _
  $region9: #{tpu_custom_call.1} parent=0 // pred_fallthru
    _
  // Predicated region
  $region10: #{tpu_custom_call.1} parent=0 // pred_check
    _
  $region11: #{tpu_custom_call.1} parent=0 // pred_check_branch
    %23 = sbr.rel (0) target = $region13
  $region12: #{tpu_custom_call.1} parent=0 // pred_region
    _
  $region13: #{tpu_custom_call.1} parent=0 // pred_fallthru
    _
  // Predicated region
  $region14: #{tpu_custom_call.1} parent=0 // pred_check
    _
  $region15: #{tpu_custom_call.1} parent=0 // pred_check_branch
    %25 = sbr.rel (0) target = $region17
  $region16: #{tpu_custom_call.1} parent=0 // pred_region
    _
  $region17: #{tpu_custom_call.1} parent=0 // pred_fallthru
    _
  // Predicated region
  $region18: #{tpu_custom_call.1} parent=0 // pred_check
    _
  $region19: #{tpu_custom_call.1} parent=0 // pred_check_branch
    %27 = sbr.rel (0) target = $region21
  $region20: #{tpu_custom_call.1} parent=0 // pred_region
    _
  $region21: #{tpu_custom_call.1} parent=0 // pred_fallthru
    _
  // Predicated region
  $region22: #{tpu_custom_call.1} parent=0 // pred_check
    _
  $region23: #{tpu_custom_call.1} parent=0 // pred_check_branch
    %29 = sbr.rel (0) target = $region25
  $region24: #{tpu_custom_call.1} parent=0 // pred_region
    _
  $region25: #{tpu_custom_call.1} parent=0 // pred_fallthru
    _
  // Predicated region
  $region26: #{tpu_custom_call.1} parent=0 // pred_check
    _
  $region27: #{tpu_custom_call.1} parent=0 // pred_check_branch
    %31 = sbr.rel (0) target = $region29
  $region28: #{tpu_custom_call.1} parent=0 // pred_region
    _
  $region29: #{tpu_custom_call.1} parent=0 // pred_fallthru
    _
  // Predicated region
  $region30: #{tpu_custom_call.1} parent=0 // pred_check
    _
  $region31: #{tpu_custom_call.1} parent=0 // pred_check_branch
    %33 = sbr.rel (0) target = $region33
  $region32: #{tpu_custom_call.1} parent=0 // pred_region
    _
  $region33: #{tpu_custom_call.1} parent=0 // pred_fallthru
    _
  // Predicated region
  $region34: #{tpu_custom_call.1} parent=0 // pred_check
    _
  $region35: #{tpu_custom_call.1} parent=0 // pred_check_branch
    %35 = sbr.rel (0) target = $region37
  $region36: #{tpu_custom_call.1} parent=0 // pred_region
    _
  $region37: #{tpu_custom_call.1} parent=0 // pred_fallthru
    _
  // Predicated region
  $region38: #{tpu_custom_call.1} parent=0 // pred_check
    _
  $region39: #{tpu_custom_call.1} parent=0 // pred_check_branch
    %37 = sbr.rel (0) target = $region41
  $region40: #{tpu_custom_call.1} parent=0 // pred_region
    _
  $region41: #{tpu_custom_call.1} parent=0 // pred_fallthru
    _
  // Predicated region
  $region42: #{tpu_custom_call.1} parent=0 // pred_check
    _
  $region43: #{tpu_custom_call.1} parent=0 // pred_check_branch
    %39 = sbr.rel (0) target = $region45
  $region44: #{tpu_custom_call.1} parent=0 // pred_region
    _
  $region45: #{tpu_custom_call.1} parent=0 // pred_fallthru
    _
  // Predicated region
  $region46: #{tpu_custom_call.1} parent=0 // pred_check
    _
  $region47: #{tpu_custom_call.1} parent=0 // pred_check_branch
    %41 = sbr.rel (0) target = $region49
  $region48: #{tpu_custom_call.1} parent=0 // pred_region
    _
  $region49: #{tpu_custom_call.1} parent=0 // pred_fallthru
    _
  // Predicated region
  $region50: #{tpu_custom_call.1} parent=0 // pred_check
    _
  $region51: #{tpu_custom_call.1} parent=0 // pred_check_branch
    %43 = sbr.rel (0) target = $region53
  $region52: #{tpu_custom_call.1} parent=0 // pred_region
    _
  $region53: #{tpu_custom_call.1} parent=0 // pred_fallthru
    _
  %v44 = vld [vmem:[%s0] sm:$0xff]
  %v45 = vld [vmem:[%s0 + $0x8] sm:$0xff]
  %v46 = vld [vmem:[%s0 + $0x10] sm:$0xff]
  %v47 = vld [vmem:[%s0 + $0x18] sm:$0xff]
  %v48 = vld [vmem:[%s0 + $0x20] sm:$0xff]
  %v49 = vld [vmem:[%s0 + $0x28] sm:$0xff]
  %v50 = vld [vmem:[%s0 + $0x30] sm:$0xff]
  %v51 = vld [vmem:[%s0 + $0x38] sm:$0xff]
  %v52 = vld [vmem:[%s0 + $0x40] sm:$0xff]
  %v53 = vld [vmem:[%s0 + $0x48] sm:$0xff]
  %v54 = vld [vmem:[%s0 + $0x50] sm:$0xff]
  %v55 = vld [vmem:[%s0 + $0x58] sm:$0xff]
  %v56 = vld [vmem:[%s0 + $0x60] sm:$0xff]
  %v57 = vld [vmem:[%s0 + $0x68] sm:$0xff]
  %v58 = vld [vmem:[%s0 + $0x70] sm:$0xff]
  %v59 = vld [vmem:[%s0 + $0x78] sm:$0xff]
  %v60 = vld [vmem:[%s1] sm:$0x3]
  %v61 = vxor.u32 %v60, 2147483648
  %v62 = vmul.f32 %v61, 1.442695
  %v63 = vpow.pop %v62
  %v64 = vadd.f32 %v63, 1.0
  %v65 = vrcp.pop %v64
  %v66 = vmul.f32 1.0, %v65
  %v67 = vmul.f32 %v60, %v66
  %v68 = vld [vmem:[%s3] sm:$0xff]
  %v69 = vld [vmem:[%s3 + $0x8] sm:$0xff]
  %v70 = vld [vmem:[%s3 + $0x10] sm:$0xff]
  %v71 = vld [vmem:[%s3 + $0x18] sm:$0xff]
  %v72 = vld [vmem:[%s3 + $0x20] sm:$0xff]
  %v73 = vld [vmem:[%s3 + $0x28] sm:$0xff]
  %v74 = vld [vmem:[%s3 + $0x30] sm:$0xff]
  %v75 = vld [vmem:[%s3 + $0x38] sm:$0xff]
  %v76 = vld [vmem:[%s4] sm:$0x3]
  %v78 = vlaneseq
  %v79 = vshrl.u32 %v78, 7
  %v80 = vsub.s32 0, %v79
  %v81 = vrot.slane %v76, %v80
  %v82 = vlaneseq
  %v83 = vshrl.u32 %v82, 7
  %v84 = vsub.s32 1, %v83
  %v85 = vrot.slane %v76, %v84
  %vm88 = vcmask 261120
  %v90 = vsel %vm88, %v67, 0
  %92 = vmatprep.subr.mxu0 0.0
  %93 = vmatpush1.msra.mxu0 0.0
  %94 = vmatprep.subr.mxu0 0.0
  %95 = vmatpush1.msra.mxu0 0.0
  %96 = vmatprep.subr.mxu0 0.0
  %97 = vmatpush1.msra.mxu0 0.0
  %98 = vmatprep.subr.mxu0 0.0
  %99 = vmatpush1.msra.mxu0 0.0
  %100 = vmatprep.subr.mxu0 0.0
  %101 = vmatpush1.msra.mxu0 0.0
  %102 = vmatprep.subr.mxu0 0.0
  %103 = vmatpush1.msra.mxu0 0.0
  %104 = vmatprep.subr.mxu0 0.0
  %105 = vmatpush1.msra.mxu0 0.0
  %106 = vmatprep.subr.mxu0 0.0
  %107 = vmatpush1.msra.mxu0 0.0
  %108 = vmatprep.subr.mxu0 0.0
  %109 = vmatpush1.msra.mxu0 0.0
  %110 = vmatprep.subr.mxu0 0.0
  %111 = vmatpush1.msra.mxu0 0.0
  %112 = vmatprep.subr.mxu0 0.0
  %113 = vmatpush1.msra.mxu0 0.0
  %114 = vmatprep.subr.mxu0 0.0
  %115 = vmatpush1.msra.mxu0 0.0
  %116 = vmatprep.subr.mxu0 %v75
  %117 = vmatpush1.msra.mxu0 %v74
  %118 = vmatprep.subr.mxu0 %v73
  %119 = vmatpush1.msra.mxu0 %v72
  %120 = vmatprep.subr.mxu0 %v71
  %121 = vmatpush1.msra.mxu0 %v70
  %122 = vmatprep.subr.mxu0 %v69
  %123 = vmatpush1.msra.mxu0 %v68
  %124 = vmatprep.subr.mxu0 0.0
  %125 = vmatpush2.msra.mxu0 0.0
  %126 = vmatprep.subr.mxu0 0.0
  %127 = vmatpush2.msra.mxu0 0.0
  %128 = vmatprep.subr.mxu0 0.0
  %129 = vmatpush2.msra.mxu0 0.0
  %130 = vmatprep.subr.mxu0 0.0
  %131 = vmatpush2.msra.mxu0 0.0
  %132 = vmatprep.subr.mxu0 0.0
  %133 = vmatpush2.msra.mxu0 0.0
  %134 = vmatprep.subr.mxu0 0.0
  %135 = vmatpush2.msra.mxu0 0.0
  %136 = vmatprep.subr.mxu0 0.0
  %137 = vmatpush2.msra.mxu0 0.0
  %138 = vmatprep.subr.mxu0 0.0
  %139 = vmatpush2.msra.mxu0 0.0
  %140 = vmatprep.subr.mxu0 0.0
  %141 = vmatpush2.msra.mxu0 0.0
  %142 = vmatprep.subr.mxu0 0.0
  %143 = vmatpush2.msra.mxu0 0.0
  %144 = vmatprep.subr.mxu0 0.0
  %145 = vmatpush2.msra.mxu0 0.0
  %146 = vmatprep.subr.mxu0 0.0
  %147 = vmatpush2.msra.mxu0 0.0
  %148 = vmatprep.subr.mxu0 0.0
  %149 = vmatpush2.msra.mxu0 0.0
  %150 = vmatprep.subr.mxu0 0.0
  %151 = vmatpush2.msra.mxu0 0.0
  %152 = vmatprep.subr.mxu0 0.0
  %153 = vmatpush2.msra.mxu0 0.0
  %154 = vmatprep.subr.mxu0 0.0
  %155 = vmatpush2.msra.mxu0 0.0
  %156 = vmatprep.mubr.f32.mxu0 0.0
  %157 = vmatmul.mubr.f32.gmra.mxu0 %v90
  %v158 = vpop.f32.mrf.mxu0
  %v159 = vadd.f32 %v81, %v158
  %v160 = vpop.f32.mrf.mxu0
  %v161 = vadd.f32 %v85, %v160
  %162 = vdwg.mxu0
  %v165 = vunpack.c.l.s4 1966171168
  %v166 = vunpack.c.0.s8 %v165
  %v167 = vlaneseq
  %v168 = vshrl.u32 %v167, 7
  %v169 = vsub.s32 %v166, %v168
  %v170 = vrot.slane %v159, %v169
  %v171 = vcombine.high %v170, %v170
  %v173 = vunpack.c.l.s4 1966171168
  %v174 = vunpack.c.0.s8 %v173
  %v175 = vlaneseq
  %v176 = vshrl.u32 %v175, 7
  %v177 = vsub.s32 %v174, %v176
  %v178 = vrot.slane %v170, %v177
  %v180 = vunpack.c.l.s4 1966171168
  %v181 = vunpack.c.0.s8 %v180
  %v182 = vlaneseq
  %v183 = vshrl.u32 %v182, 7
  %v184 = vsub.s32 %v181, %v183
  %v185 = vrot.slane %v171, %v184
  %v190 = vunpack.c.l.s4 1966171168
  %v191 = vunpack.c.0.s8 %v190
  %v192 = vlaneseq
  %v193 = vshrl.u32 %v192, 7
  %v194 = vsub.s32 %v191, %v193
  %v195 = vrot.slane %v161, %v194
  %v196 = vcombine.high %v195, %v195
  %v198 = vunpack.c.l.s4 1966171168
  %v199 = vunpack.c.0.s8 %v198
  %v200 = vlaneseq
  %v201 = vshrl.u32 %v200, 7
  %v202 = vsub.s32 %v199, %v201
  %v203 = vrot.slane %v195, %v202
  %v205 = vunpack.c.l.s4 1966171168
  %v206 = vunpack.c.0.s8 %v205
  %v207 = vlaneseq
  %v208 = vshrl.u32 %v207, 7
  %v209 = vsub.s32 %v206, %v208
  %v210 = vrot.slane %v196, %v209
  %v213 = vsel %vm88, %v44, 0.0
  %214 = vadd.xlane.f32.xlu0 %v213
  %v215 = vpop.xlane.xlu0 %214
  %v216 = vsel %vm88, %v45, 0.0
  %217 = vadd.xlane.f32.xlu0 %v216
  %v218 = vpop.xlane.xlu0 %217
  %v219 = vsel %vm88, %v46, 0.0
  %220 = vadd.xlane.f32.xlu0 %v219
  %v221 = vpop.xlane.xlu0 %220
  %v222 = vsel %vm88, %v47, 0.0
  %223 = vadd.xlane.f32.xlu0 %v222
  %v224 = vpop.xlane.xlu0 %223
  %v225 = vsel %vm88, %v48, 0.0
  %226 = vadd.xlane.f32.xlu0 %v225
  %v227 = vpop.xlane.xlu0 %226
  %v228 = vsel %vm88, %v49, 0.0
  %229 = vadd.xlane.f32.xlu0 %v228
  %v230 = vpop.xlane.xlu0 %229
  %v231 = vsel %vm88, %v50, 0.0
  %232 = vadd.xlane.f32.xlu0 %v231
  %v233 = vpop.xlane.xlu0 %232
  %v234 = vsel %vm88, %v51, 0.0
  %235 = vadd.xlane.f32.xlu0 %v234
  %v236 = vpop.xlane.xlu0 %235
  %v237 = vsel %vm88, %v52, 0.0
  %238 = vadd.xlane.f32.xlu0 %v237
  %v239 = vpop.xlane.xlu0 %238
  %v240 = vsel %vm88, %v53, 0.0
  %241 = vadd.xlane.f32.xlu0 %v240
  %v242 = vpop.xlane.xlu0 %241
  %v243 = vsel %vm88, %v54, 0.0
  %244 = vadd.xlane.f32.xlu0 %v243
  %v245 = vpop.xlane.xlu0 %244
  %v246 = vsel %vm88, %v55, 0.0
  %247 = vadd.xlane.f32.xlu0 %v246
  %v248 = vpop.xlane.xlu0 %247
  %v249 = vsel %vm88, %v56, 0.0
  %250 = vadd.xlane.f32.xlu0 %v249
  %v251 = vpop.xlane.xlu0 %250
  %v252 = vsel %vm88, %v57, 0.0
  %253 = vadd.xlane.f32.xlu0 %v252
  %v254 = vpop.xlane.xlu0 %253
  %v255 = vsel %vm88, %v58, 0.0
  %256 = vadd.xlane.f32.xlu0 %v255
  %v257 = vpop.xlane.xlu0 %256
  %v258 = vsel %vm88, %v59, 0.0
  %259 = vadd.xlane.f32.xlu0 %v258
  %v260 = vpop.xlane.xlu0 %259
  %v261 = vrcp.pop 32.0
  %v262 = vmul.f32 %v215, %v261
  %v263 = vmul.f32 %v218, %v261
  %v264 = vmul.f32 %v221, %v261
  %v265 = vmul.f32 %v224, %v261
  %v266 = vmul.f32 %v227, %v261
  %v267 = vmul.f32 %v230, %v261
  %v268 = vmul.f32 %v233, %v261
  %v269 = vmul.f32 %v236, %v261
  %v270 = vmul.f32 %v239, %v261
  %v271 = vmul.f32 %v242, %v261
  %v272 = vmul.f32 %v245, %v261
  %v273 = vmul.f32 %v248, %v261
  %v274 = vmul.f32 %v251, %v261
  %v275 = vmul.f32 %v254, %v261
  %v276 = vmul.f32 %v257, %v261
  %v277 = vmul.f32 %v260, %v261
  %v278 = vsub.f32 %v44, %v262
  %v279 = vsub.f32 %v45, %v263
  %v280 = vsub.f32 %v46, %v264
  %v281 = vsub.f32 %v47, %v265
  %v282 = vsub.f32 %v48, %v266
  %v283 = vsub.f32 %v49, %v267
  %v284 = vsub.f32 %v50, %v268
  %v285 = vsub.f32 %v51, %v269
  %v286 = vsub.f32 %v52, %v270
  %v287 = vsub.f32 %v53, %v271
  %v288 = vsub.f32 %v54, %v272
  %v289 = vsub.f32 %v55, %v273
  %v290 = vsub.f32 %v56, %v274
  %v291 = vsub.f32 %v57, %v275
  %v292 = vsub.f32 %v58, %v276
  %v293 = vsub.f32 %v59, %v277
  %v294 = vmul.f32 %v278, %v278
  %v295 = vmul.f32 %v279, %v279
  %v296 = vmul.f32 %v280, %v280
  %v297 = vmul.f32 %v281, %v281
  %v298 = vmul.f32 %v282, %v282
  %v299 = vmul.f32 %v283, %v283
  %v300 = vmul.f32 %v284, %v284
  %v301 = vmul.f32 %v285, %v285
  %v302 = vmul.f32 %v286, %v286
  %v303 = vmul.f32 %v287, %v287
  %v304 = vmul.f32 %v288, %v288
  %v305 = vmul.f32 %v289, %v289
  %v306 = vmul.f32 %v290, %v290
  %v307 = vmul.f32 %v291, %v291
  %v308 = vmul.f32 %v292, %v292
  %v309 = vmul.f32 %v293, %v293
  %v310 = vsel %vm88, %v294, 0.0
  %311 = vadd.xlane.f32.xlu0 %v310
  %v312 = vpop.xlane.xlu0 %311
  %v313 = vsel %vm88, %v295, 0.0
  %314 = vadd.xlane.f32.xlu0 %v313
  %v315 = vpop.xlane.xlu0 %314
  %v316 = vsel %vm88, %v296, 0.0
  %317 = vadd.xlane.f32.xlu0 %v316
  %v318 = vpop.xlane.xlu0 %317
  %v319 = vsel %vm88, %v297, 0.0
  %320 = vadd.xlane.f32.xlu0 %v319
  %v321 = vpop.xlane.xlu0 %320
  %v322 = vsel %vm88, %v298, 0.0
  %323 = vadd.xlane.f32.xlu0 %v322
  %v324 = vpop.xlane.xlu0 %323
  %v325 = vsel %vm88, %v299, 0.0
  %326 = vadd.xlane.f32.xlu0 %v325
  %v327 = vpop.xlane.xlu0 %326
  %v328 = vsel %vm88, %v300, 0.0
  %329 = vadd.xlane.f32.xlu0 %v328
  %v330 = vpop.xlane.xlu0 %329
  %v331 = vsel %vm88, %v301, 0.0
  %332 = vadd.xlane.f32.xlu0 %v331
  %v333 = vpop.xlane.xlu0 %332
  %v334 = vsel %vm88, %v302, 0.0
  %335 = vadd.xlane.f32.xlu0 %v334
  %v336 = vpop.xlane.xlu0 %335
  %v337 = vsel %vm88, %v303, 0.0
  %338 = vadd.xlane.f32.xlu0 %v337
  %v339 = vpop.xlane.xlu0 %338
  %v340 = vsel %vm88, %v304, 0.0
  %341 = vadd.xlane.f32.xlu0 %v340
  %v342 = vpop.xlane.xlu0 %341
  %v343 = vsel %vm88, %v305, 0.0
  %344 = vadd.xlane.f32.xlu0 %v343
  %v345 = vpop.xlane.xlu0 %344
  %v346 = vsel %vm88, %v306, 0.0
  %347 = vadd.xlane.f32.xlu0 %v346
  %v348 = vpop.xlane.xlu0 %347
  %v349 = vsel %vm88, %v307, 0.0
  %350 = vadd.xlane.f32.xlu0 %v349
  %v351 = vpop.xlane.xlu0 %350
  %v352 = vsel %vm88, %v308, 0.0
  %353 = vadd.xlane.f32.xlu0 %v352
  %v354 = vpop.xlane.xlu0 %353
  %v355 = vsel %vm88, %v309, 0.0
  %356 = vadd.xlane.f32.xlu0 %v355
  %v357 = vpop.xlane.xlu0 %356
  %v358 = vmul.f32 %v312, %v261
  %v359 = vmul.f32 %v315, %v261
  %v360 = vmul.f32 %v318, %v261
  %v361 = vmul.f32 %v321, %v261
  %v362 = vmul.f32 %v324, %v261
  %v363 = vmul.f32 %v327, %v261
  %v364 = vmul.f32 %v330, %v261
  %v365 = vmul.f32 %v333, %v261
  %v366 = vmul.f32 %v336, %v261
  %v367 = vmul.f32 %v339, %v261
  %v368 = vmul.f32 %v342, %v261
  %v369 = vmul.f32 %v345, %v261
  %v370 = vmul.f32 %v348, %v261
  %v371 = vmul.f32 %v351, %v261
  %v372 = vmul.f32 %v354, %v261
  %v373 = vmul.f32 %v357, %v261
  %v374 = vadd.f32 %v358, 1e-06
  %v375 = vadd.f32 %v359, 1e-06
  %v376 = vadd.f32 %v360, 1e-06
  %v377 = vadd.f32 %v361, 1e-06
  %v378 = vadd.f32 %v362, 1e-06
  %v379 = vadd.f32 %v363, 1e-06
  %v380 = vadd.f32 %v364, 1e-06
  %v381 = vadd.f32 %v365, 1e-06
  %v382 = vadd.f32 %v366, 1e-06
  %v383 = vadd.f32 %v367, 1e-06
  %v384 = vadd.f32 %v368, 1e-06
  %v385 = vadd.f32 %v369, 1e-06
  %v386 = vadd.f32 %v370, 1e-06
  %v387 = vadd.f32 %v371, 1e-06
  %v388 = vadd.f32 %v372, 1e-06
  %v389 = vadd.f32 %v373, 1e-06
  %v390 = vrsqrt.pop %v374
  %v391 = vrsqrt.pop %v375
  %v392 = vrsqrt.pop %v376
  %v393 = vrsqrt.pop %v377
  %v394 = vrsqrt.pop %v378
  %v395 = vrsqrt.pop %v379
  %v396 = vrsqrt.pop %v380
  %v397 = vrsqrt.pop %v381
  %v398 = vrsqrt.pop %v382
  %v399 = vrsqrt.pop %v383
  %v400 = vrsqrt.pop %v384
  %v401 = vrsqrt.pop %v385
  %v402 = vrsqrt.pop %v386
  %v403 = vrsqrt.pop %v387
  %v404 = vrsqrt.pop %v388
  %v405 = vrsqrt.pop %v389
  %v406 = vmul.f32 %v278, %v390
  %v407 = vmul.f32 %v279, %v391
  %v408 = vmul.f32 %v280, %v392
  %v409 = vmul.f32 %v281, %v393
  %v410 = vmul.f32 %v282, %v394
  %v411 = vmul.f32 %v283, %v395
  %v412 = vmul.f32 %v284, %v396
  %v413 = vmul.f32 %v285, %v397
  %v414 = vmul.f32 %v286, %v398
  %v415 = vmul.f32 %v287, %v399
  %v416 = vmul.f32 %v288, %v400
  %v417 = vmul.f32 %v289, %v401
  %v418 = vmul.f32 %v290, %v402
  %v419 = vmul.f32 %v291, %v403
  %v420 = vmul.f32 %v292, %v404
  %v421 = vmul.f32 %v293, %v405
  %v422 = vadd.f32 %v178, 1.0
  %v423 = vadd.f32 %v185, 1.0
  %v426 = vlaneseq
  %v427 = vshrl.u32 %v426, 7
  %v428 = vsub.s32 0, %v427
  %v429 = vrot.slane %v422, %v428
  %v430 = vlaneseq
  %v431 = vshrl.u32 %v430, 7
  %v432 = vsub.s32 0, %v431
  %v433 = vrot.slane %v423, %v432
  %434 = vrot.lane.b32.xlu0 %v429, 96
  %v435 = vpop.permute.xlu0 %434
  %436 = vrot.lane.b32.xlu0 %v433, 96
  %v437 = vpop.permute.xlu0 %436
  %v440 = vmul.f32 %v406, %v435
  %v441 = vmul.f32 %v407, %v435
  %v442 = vmul.f32 %v408, %v435
  %v443 = vmul.f32 %v409, %v435
  %v444 = vmul.f32 %v410, %v435
  %v445 = vmul.f32 %v411, %v435
  %v446 = vmul.f32 %v412, %v435
  %v447 = vmul.f32 %v413, %v435
  %v448 = vmul.f32 %v414, %v437
  %v449 = vmul.f32 %v415, %v437
  %v450 = vmul.f32 %v416, %v437
  %v451 = vmul.f32 %v417, %v437
  %v452 = vmul.f32 %v418, %v437
  %v453 = vmul.f32 %v419, %v437
  %v454 = vmul.f32 %v420, %v437
  %v455 = vmul.f32 %v421, %v437
  %v456 = vlaneseq
  %v457 = vshrl.u32 %v456, 7
  %v458 = vsub.s32 0, %v457
  %v459 = vrot.slane %v178, %v458
  %v460 = vlaneseq
  %v461 = vshrl.u32 %v460, 7
  %v462 = vsub.s32 0, %v461
  %v463 = vrot.slane %v185, %v462
  %v466 = vadd.f32 %v440, %v459
  %v467 = vadd.f32 %v441, %v459
  %v468 = vadd.f32 %v442, %v459
  %v469 = vadd.f32 %v443, %v459
  %v470 = vadd.f32 %v444, %v459
  %v471 = vadd.f32 %v445, %v459
  %v472 = vadd.f32 %v446, %v459
  %v473 = vadd.f32 %v447, %v459
  %v474 = vadd.f32 %v448, %v463
  %v475 = vadd.f32 %v449, %v463
  %v476 = vadd.f32 %v450, %v463
  %v477 = vadd.f32 %v451, %v463
  %v478 = vadd.f32 %v452, %v463
  %v479 = vadd.f32 %v453, %v463
  %v480 = vadd.f32 %v454, %v463
  %v481 = vadd.f32 %v455, %v463
  %v482 = vld [vmem:[%s5] sm:$0xff]
  %v483 = vld [vmem:[%s5 + $0x8] sm:$0xff]
  %v484 = vld [vmem:[%s5 + $0x10] sm:$0xff]
  %v485 = vld [vmem:[%s5 + $0x18] sm:$0xff]
  %v486 = vld [vmem:[%s6] sm:$0x1]
  %v488 = vlaneseq
  %v489 = vshrl.u32 %v488, 7
  %v490 = vsub.s32 0, %v489
  %v491 = vrot.slane %v486, %v490
  %v494 = vsel %vm88, %v466, 0
  %v497 = vsel %vm88, %v467, 0
  %v500 = vsel %vm88, %v468, 0
  %v503 = vsel %vm88, %v469, 0
  %v506 = vsel %vm88, %v470, 0
  %v509 = vsel %vm88, %v471, 0
  %v512 = vsel %vm88, %v472, 0
  %v515 = vsel %vm88, %v473, 0
  %v518 = vsel %vm88, %v474, 0
  %v521 = vsel %vm88, %v475, 0
  %v524 = vsel %vm88, %v476, 0
  %v527 = vsel %vm88, %v477, 0
  %v530 = vsel %vm88, %v478, 0
  %v533 = vsel %vm88, %v479, 0
  %v536 = vsel %vm88, %v480, 0
  %v539 = vsel %vm88, %v481, 0
  %541 = vmatprep.subr.mxu0 0.0
  %542 = vmatpush1.msra.mxu0 0.0
  %543 = vmatprep.subr.mxu0 0.0
  %544 = vmatpush1.msra.mxu0 0.0
  %545 = vmatprep.subr.mxu0 0.0
  %546 = vmatpush1.msra.mxu0 0.0
  %547 = vmatprep.subr.mxu0 0.0
  %548 = vmatpush1.msra.mxu0 0.0
  %549 = vmatprep.subr.mxu0 0.0
  %550 = vmatpush1.msra.mxu0 0.0
  %551 = vmatprep.subr.mxu0 0.0
  %552 = vmatpush1.msra.mxu0 0.0
  %553 = vmatprep.subr.mxu0 0.0
  %554 = vmatpush1.msra.mxu0 0.0
  %555 = vmatprep.subr.mxu0 0.0
  %556 = vmatpush1.msra.mxu0 0.0
  %557 = vmatprep.subr.mxu0 0.0
  %558 = vmatpush1.msra.mxu0 0.0
  %559 = vmatprep.subr.mxu0 0.0
  %560 = vmatpush1.msra.mxu0 0.0
  %561 = vmatprep.subr.mxu0 0.0
  %562 = vmatpush1.msra.mxu0 0.0
  %563 = vmatprep.subr.mxu0 0.0
  %564 = vmatpush1.msra.mxu0 0.0
  %565 = vmatprep.subr.mxu0 0.0
  %566 = vmatpush1.msra.mxu0 %v485
  %567 = vmatprep.subr.mxu0 0.0
  %568 = vmatpush1.msra.mxu0 %v484
  %569 = vmatprep.subr.mxu0 0.0
  %570 = vmatpush1.msra.mxu0 %v483
  %571 = vmatprep.subr.mxu0 0.0
  %572 = vmatpush1.msra.mxu0 %v482
  %573 = vmatprep.subr.mxu0 0.0
  %574 = vmatpush2.msra.mxu0 0.0
  %575 = vmatprep.subr.mxu0 0.0
  %576 = vmatpush2.msra.mxu0 0.0
  %577 = vmatprep.subr.mxu0 0.0
  %578 = vmatpush2.msra.mxu0 0.0
  %579 = vmatprep.subr.mxu0 0.0
  %580 = vmatpush2.msra.mxu0 0.0
  %581 = vmatprep.subr.mxu0 0.0
  %582 = vmatpush2.msra.mxu0 0.0
  %583 = vmatprep.subr.mxu0 0.0
  %584 = vmatpush2.msra.mxu0 0.0
  %585 = vmatprep.subr.mxu0 0.0
  %586 = vmatpush2.msra.mxu0 0.0
  %587 = vmatprep.subr.mxu0 0.0
  %588 = vmatpush2.msra.mxu0 0.0
  %589 = vmatprep.subr.mxu0 0.0
  %590 = vmatpush2.msra.mxu0 0.0
  %591 = vmatprep.subr.mxu0 0.0
  %592 = vmatpush2.msra.mxu0 0.0
  %593 = vmatprep.subr.mxu0 0.0
  %594 = vmatpush2.msra.mxu0 0.0
  %595 = vmatprep.subr.mxu0 0.0
  %596 = vmatpush2.msra.mxu0 0.0
  %597 = vmatprep.subr.mxu0 0.0
  %598 = vmatpush2.msra.mxu0 0.0
  %599 = vmatprep.subr.mxu0 0.0
  %600 = vmatpush2.msra.mxu0 0.0
  %601 = vmatprep.subr.mxu0 0.0
  %602 = vmatpush2.msra.mxu0 0.0
  %603 = vmatprep.subr.mxu0 0.0
  %604 = vmatpush2.msra.mxu0 0.0
  %605 = vmatprep.mubr.f32.mxu0 0.0
  %606 = vmatmul.mubr.f32.gmra.mxu0 %v494
  %v607 = vpop.f32.mrf.mxu0
  %v608 = vadd.f32 %v491, %v607
  %v609 = vpop.f32.mrf.mxu0
  %610 = vmatprep.mubr.f32.mxu0 0.0
  %611 = vmatmul.mubr.f32.gmra.mxu0 %v497
  %v612 = vpop.f32.mrf.mxu0
  %v613 = vadd.f32 %v491, %v612
  %v614 = vpop.f32.mrf.mxu0
  %615 = vmatprep.mubr.f32.mxu0 0.0
  %616 = vmatmul.mubr.f32.gmra.mxu0 %v500
  %v617 = vpop.f32.mrf.mxu0
  %v618 = vadd.f32 %v491, %v617
  %v619 = vpop.f32.mrf.mxu0
  %620 = vmatprep.mubr.f32.mxu0 0.0
  %621 = vmatmul.mubr.f32.gmra.mxu0 %v503
  %v622 = vpop.f32.mrf.mxu0
  %v623 = vadd.f32 %v491, %v622
  %v624 = vpop.f32.mrf.mxu0
  %625 = vmatprep.mubr.f32.mxu0 0.0
  %626 = vmatmul.mubr.f32.gmra.mxu0 %v506
  %v627 = vpop.f32.mrf.mxu0
  %v628 = vadd.f32 %v491, %v627
  %v629 = vpop.f32.mrf.mxu0
  %630 = vmatprep.mubr.f32.mxu0 0.0
  %631 = vmatmul.mubr.f32.gmra.mxu0 %v509
  %v632 = vpop.f32.mrf.mxu0
  %v633 = vadd.f32 %v491, %v632
  %v634 = vpop.f32.mrf.mxu0
  %635 = vmatprep.mubr.f32.mxu0 0.0
  %636 = vmatmul.mubr.f32.gmra.mxu0 %v512
  %v637 = vpop.f32.mrf.mxu0
  %v638 = vadd.f32 %v491, %v637
  %v639 = vpop.f32.mrf.mxu0
  %640 = vmatprep.mubr.f32.mxu0 0.0
  %641 = vmatmul.mubr.f32.gmra.mxu0 %v515
  %v642 = vpop.f32.mrf.mxu0
  %v643 = vadd.f32 %v491, %v642
  %v644 = vpop.f32.mrf.mxu0
  %645 = vmatprep.mubr.f32.mxu0 0.0
  %646 = vmatmul.mubr.f32.gmra.mxu0 %v518
  %v647 = vpop.f32.mrf.mxu0
  %v648 = vadd.f32 %v491, %v647
  %v649 = vpop.f32.mrf.mxu0
  %650 = vmatprep.mubr.f32.mxu0 0.0
  %651 = vmatmul.mubr.f32.gmra.mxu0 %v521
  %v652 = vpop.f32.mrf.mxu0
  %v653 = vadd.f32 %v491, %v652
  %v654 = vpop.f32.mrf.mxu0
  %655 = vmatprep.mubr.f32.mxu0 0.0
  %656 = vmatmul.mubr.f32.gmra.mxu0 %v524
  %v657 = vpop.f32.mrf.mxu0
  %v658 = vadd.f32 %v491, %v657
  %v659 = vpop.f32.mrf.mxu0
  %660 = vmatprep.mubr.f32.mxu0 0.0
  %661 = vmatmul.mubr.f32.gmra.mxu0 %v527
  %v662 = vpop.f32.mrf.mxu0
  %v663 = vadd.f32 %v491, %v662
  %v664 = vpop.f32.mrf.mxu0
  %665 = vmatprep.mubr.f32.mxu0 0.0
  %666 = vmatmul.mubr.f32.gmra.mxu0 %v530
  %v667 = vpop.f32.mrf.mxu0
  %v668 = vadd.f32 %v491, %v667
  %v669 = vpop.f32.mrf.mxu0
  %670 = vmatprep.mubr.f32.mxu0 0.0
  %671 = vmatmul.mubr.f32.gmra.mxu0 %v533
  %v672 = vpop.f32.mrf.mxu0
  %v673 = vadd.f32 %v491, %v672
  %v674 = vpop.f32.mrf.mxu0
  %675 = vmatprep.mubr.f32.mxu0 0.0
  %676 = vmatmul.mubr.f32.gmra.mxu0 %v536
  %v677 = vpop.f32.mrf.mxu0
  %v678 = vadd.f32 %v491, %v677
  %v679 = vpop.f32.mrf.mxu0
  %680 = vmatprep.mubr.f32.mxu0 0.0
  %681 = vmatmul.mubr.f32.gmra.mxu0 %v539
  %v682 = vpop.f32.mrf.mxu0
  %v683 = vadd.f32 %v491, %v682
  %v684 = vpop.f32.mrf.mxu0
  %685 = vdwg.mxu0
  %v686 = vld [vmem:[%s2] sm:$0xff]
  %v687 = vld [vmem:[%s2 + $0x8] sm:$0xff]
  %v688 = vld [vmem:[%s2 + $0x10] sm:$0xff]
  %v689 = vld [vmem:[%s2 + $0x18] sm:$0xff]
  %v690 = vld [vmem:[%s2 + $0x20] sm:$0xff]
  %v691 = vld [vmem:[%s2 + $0x28] sm:$0xff]
  %v692 = vld [vmem:[%s2 + $0x30] sm:$0xff]
  %v693 = vld [vmem:[%s2 + $0x38] sm:$0xff]
  %v694 = vld [vmem:[%s2 + $0x40] sm:$0xff]
  %v695 = vld [vmem:[%s2 + $0x48] sm:$0xff]
  %v696 = vld [vmem:[%s2 + $0x50] sm:$0xff]
  %v697 = vld [vmem:[%s2 + $0x58] sm:$0xff]
  %v698 = vld [vmem:[%s2 + $0x60] sm:$0xff]
  %v699 = vld [vmem:[%s2 + $0x68] sm:$0xff]
  %v700 = vld [vmem:[%s2 + $0x70] sm:$0xff]
  %v701 = vld [vmem:[%s2 + $0x78] sm:$0xff]
  %v702 = vld [vmem:[%s7] sm:$0xff]
  %v703 = vld [vmem:[%s7 + $0x8] sm:$0xff]
  %v704 = vld [vmem:[%s7 + $0x10] sm:$0xff]
  %v705 = vld [vmem:[%s7 + $0x18] sm:$0xff]
  %722 = vrot.lane.b32.xlu0 %v608, 96
  %v723 = vpop.permute.xlu0 %722
  %724 = vrot.lane.b32.xlu0 %v613, 96
  %v725 = vpop.permute.xlu0 %724
  %726 = vrot.lane.b32.xlu0 %v618, 96
  %v727 = vpop.permute.xlu0 %726
  %728 = vrot.lane.b32.xlu0 %v623, 96
  %v729 = vpop.permute.xlu0 %728
  %730 = vrot.lane.b32.xlu0 %v628, 96
  %v731 = vpop.permute.xlu0 %730
  %732 = vrot.lane.b32.xlu0 %v633, 96
  %v733 = vpop.permute.xlu0 %732
  %734 = vrot.lane.b32.xlu0 %v638, 96
  %v735 = vpop.permute.xlu0 %734
  %736 = vrot.lane.b32.xlu0 %v643, 96
  %v737 = vpop.permute.xlu0 %736
  %738 = vrot.lane.b32.xlu0 %v648, 96
  %v739 = vpop.permute.xlu0 %738
  %740 = vrot.lane.b32.xlu0 %v653, 96
  %v741 = vpop.permute.xlu0 %740
  %742 = vrot.lane.b32.xlu0 %v658, 96
  %v743 = vpop.permute.xlu0 %742
  %744 = vrot.lane.b32.xlu0 %v663, 96
  %v745 = vpop.permute.xlu0 %744
  %746 = vrot.lane.b32.xlu0 %v668, 96
  %v747 = vpop.permute.xlu0 %746
  %748 = vrot.lane.b32.xlu0 %v673, 96
  %v749 = vpop.permute.xlu0 %748
  %750 = vrot.lane.b32.xlu0 %v678, 96
  %v751 = vpop.permute.xlu0 %750
  %752 = vrot.lane.b32.xlu0 %v683, 96
  %v753 = vpop.permute.xlu0 %752
  %vm754 = vcmask 64512
  %v755 = vsel %vm754, %v608, 0
  %v757 = vsel %vm754, %v613, 0
  %v759 = vsel %vm754, %v618, 0
  %v761 = vsel %vm754, %v623, 0
  %v763 = vsel %vm754, %v628, 0
  %v765 = vsel %vm754, %v633, 0
  %v767 = vsel %vm754, %v638, 0
  %v769 = vsel %vm754, %v643, 0
  %v771 = vsel %vm754, %v648, 0
  %v773 = vsel %vm754, %v653, 0
  %v775 = vsel %vm754, %v658, 0
  %v777 = vsel %vm754, %v663, 0
  %v779 = vsel %vm754, %v668, 0
  %v781 = vsel %vm754, %v673, 0
  %v783 = vsel %vm754, %v678, 0
  %v785 = vsel %vm754, %v683, 0
  %v787 = vsel %vm754, %v723, 0
  %v789 = vsel %vm754, %v725, 0
  %v791 = vsel %vm754, %v727, 0
  %v793 = vsel %vm754, %v729, 0
  %v795 = vsel %vm754, %v731, 0
  %v797 = vsel %vm754, %v733, 0
  %v799 = vsel %vm754, %v735, 0
  %v801 = vsel %vm754, %v737, 0
  %v803 = vsel %vm754, %v739, 0
  %v805 = vsel %vm754, %v741, 0
  %v807 = vsel %vm754, %v743, 0
  %v809 = vsel %vm754, %v745, 0
  %v811 = vsel %vm754, %v747, 0
  %v813 = vsel %vm754, %v749, 0
  %v815 = vsel %vm754, %v751, 0
  %v817 = vsel %vm754, %v753, 0
  %819 = vmatprep.subr.mxu0 0.0
  %820 = vmatpush1.xpose.msra.mxu0 %v817
  %821 = vmatprep.subr.mxu0 0.0
  %822 = vmatpush1.xpose.msra.mxu0 %v815
  %823 = vmatprep.subr.mxu0 0.0
  %824 = vmatpush1.xpose.msra.mxu0 %v813
  %825 = vmatprep.subr.mxu0 0.0
  %826 = vmatpush1.xpose.msra.mxu0 %v811
  %827 = vmatprep.subr.mxu0 0.0
  %828 = vmatpush1.xpose.msra.mxu0 %v809
  %829 = vmatprep.subr.mxu0 0.0
  %830 = vmatpush1.xpose.msra.mxu0 %v807
  %831 = vmatprep.subr.mxu0 0.0
  %832 = vmatpush1.xpose.msra.mxu0 %v805
  %833 = vmatprep.subr.mxu0 0.0
  %834 = vmatpush1.xpose.msra.mxu0 %v803
  %835 = vmatprep.subr.mxu0 0.0
  %836 = vmatpush1.xpose.msra.mxu0 %v801
  %837 = vmatprep.subr.mxu0 0.0
  %838 = vmatpush1.xpose.msra.mxu0 %v799
  %839 = vmatprep.subr.mxu0 0.0
  %840 = vmatpush1.xpose.msra.mxu0 %v797
  %841 = vmatprep.subr.mxu0 0.0
  %842 = vmatpush1.xpose.msra.mxu0 %v795
  %843 = vmatprep.subr.mxu0 0.0
  %844 = vmatpush1.xpose.msra.mxu0 %v793
  %845 = vmatprep.subr.mxu0 0.0
  %846 = vmatpush1.xpose.msra.mxu0 %v791
  %847 = vmatprep.subr.mxu0 0.0
  %848 = vmatpush1.xpose.msra.mxu0 %v789
  %849 = vmatprep.subr.mxu0 0.0
  %850 = vmatpush1.xpose.msra.mxu0 %v787
  %851 = vmatprep.subr.mxu0 0.0
  %852 = vmatpush2.xpose.msra.mxu0 0.0
  %853 = vmatprep.subr.mxu0 0.0
  %854 = vmatpush2.xpose.msra.mxu0 0.0
  %855 = vmatprep.subr.mxu0 0.0
  %856 = vmatpush2.xpose.msra.mxu0 0.0
  %857 = vmatprep.subr.mxu0 0.0
  %858 = vmatpush2.xpose.msra.mxu0 0.0
  %859 = vmatprep.subr.mxu0 0.0
  %860 = vmatpush2.xpose.msra.mxu0 0.0
  %861 = vmatprep.subr.mxu0 0.0
  %862 = vmatpush2.xpose.msra.mxu0 0.0
  %863 = vmatprep.subr.mxu0 0.0
  %864 = vmatpush2.xpose.msra.mxu0 0.0
  %865 = vmatprep.subr.mxu0 0.0
  %866 = vmatpush2.xpose.msra.mxu0 0.0
  %867 = vmatprep.subr.mxu0 0.0
  %868 = vmatpush2.xpose.msra.mxu0 0.0
  %869 = vmatprep.subr.mxu0 0.0
  %870 = vmatpush2.xpose.msra.mxu0 0.0
  %871 = vmatprep.subr.mxu0 0.0
  %872 = vmatpush2.xpose.msra.mxu0 0.0
  %873 = vmatprep.subr.mxu0 0.0
  %874 = vmatpush2.xpose.msra.mxu0 0.0
  %875 = vmatprep.subr.mxu0 0.0
  %876 = vmatpush2.xpose.msra.mxu0 0.0
  %877 = vmatprep.subr.mxu0 0.0
  %878 = vmatpush2.xpose.msra.mxu0 0.0
  %879 = vmatprep.subr.mxu0 0.0
  %880 = vmatpush2.xpose.msra.mxu0 0.0
  %881 = vmatprep.subr.mxu0 0.0
  %882 = vmatpush2.xpose.msra.mxu0 0.0
  %883 = vmatprep.mubr.f32.mxu0 0.0
  %884 = vmatmul.mubr.f32.gmra.mxu0 %v755
  %v885 = vpop.f32.mrf.mxu0
  %v886 = vadd.f32 0.0, %v885
  %v887 = vpop.f32.mrf.mxu0
  %888 = vmatprep.mubr.f32.mxu0 0.0
  %889 = vmatmul.mubr.f32.gmra.mxu0 %v757
  %v890 = vpop.f32.mrf.mxu0
  %v891 = vadd.f32 0.0, %v890
  %v892 = vpop.f32.mrf.mxu0
  %893 = vmatprep.mubr.f32.mxu0 0.0
  %894 = vmatmul.mubr.f32.gmra.mxu0 %v759
  %v895 = vpop.f32.mrf.mxu0
  %v896 = vadd.f32 0.0, %v895
  %v897 = vpop.f32.mrf.mxu0
  %898 = vmatprep.mubr.f32.mxu0 0.0
  %899 = vmatmul.mubr.f32.gmra.mxu0 %v761
  %v900 = vpop.f32.mrf.mxu0
  %v901 = vadd.f32 0.0, %v900
  %v902 = vpop.f32.mrf.mxu0
  %903 = vmatprep.mubr.f32.mxu0 0.0
  %904 = vmatmul.mubr.f32.gmra.mxu0 %v763
  %v905 = vpop.f32.mrf.mxu0
  %v906 = vadd.f32 0.0, %v905
  %v907 = vpop.f32.mrf.mxu0
  %908 = vmatprep.mubr.f32.mxu0 0.0
  %909 = vmatmul.mubr.f32.gmra.mxu0 %v765
  %v910 = vpop.f32.mrf.mxu0
  %v911 = vadd.f32 0.0, %v910
  %v912 = vpop.f32.mrf.mxu0
  %913 = vmatprep.mubr.f32.mxu0 0.0
  %914 = vmatmul.mubr.f32.gmra.mxu0 %v767
  %v915 = vpop.f32.mrf.mxu0
  %v916 = vadd.f32 0.0, %v915
  %v917 = vpop.f32.mrf.mxu0
  %918 = vmatprep.mubr.f32.mxu0 0.0
  %919 = vmatmul.mubr.f32.gmra.mxu0 %v769
  %v920 = vpop.f32.mrf.mxu0
  %v921 = vadd.f32 0.0, %v920
  %v922 = vpop.f32.mrf.mxu0
  %923 = vmatprep.mubr.f32.mxu0 0.0
  %924 = vmatmul.mubr.f32.gmra.mxu0 %v771
  %v925 = vpop.f32.mrf.mxu0
  %v926 = vadd.f32 0.0, %v925
  %v927 = vpop.f32.mrf.mxu0
  %928 = vmatprep.mubr.f32.mxu0 0.0
  %929 = vmatmul.mubr.f32.gmra.mxu0 %v773
  %v930 = vpop.f32.mrf.mxu0
  %v931 = vadd.f32 0.0, %v930
  %v932 = vpop.f32.mrf.mxu0
  %933 = vmatprep.mubr.f32.mxu0 0.0
  %934 = vmatmul.mubr.f32.gmra.mxu0 %v775
  %v935 = vpop.f32.mrf.mxu0
  %v936 = vadd.f32 0.0, %v935
  %v937 = vpop.f32.mrf.mxu0
  %938 = vmatprep.mubr.f32.mxu0 0.0
  %939 = vmatmul.mubr.f32.gmra.mxu0 %v777
  %v940 = vpop.f32.mrf.mxu0
  %v941 = vadd.f32 0.0, %v940
  %v942 = vpop.f32.mrf.mxu0
  %943 = vmatprep.mubr.f32.mxu0 0.0
  %944 = vmatmul.mubr.f32.gmra.mxu0 %v779
  %v945 = vpop.f32.mrf.mxu0
  %v946 = vadd.f32 0.0, %v945
  %v947 = vpop.f32.mrf.mxu0
  %948 = vmatprep.mubr.f32.mxu0 0.0
  %949 = vmatmul.mubr.f32.gmra.mxu0 %v781
  %v950 = vpop.f32.mrf.mxu0
  %v951 = vadd.f32 0.0, %v950
  %v952 = vpop.f32.mrf.mxu0
  %953 = vmatprep.mubr.f32.mxu0 0.0
  %954 = vmatmul.mubr.f32.gmra.mxu0 %v783
  %v955 = vpop.f32.mrf.mxu0
  %v956 = vadd.f32 0.0, %v955
  %v957 = vpop.f32.mrf.mxu0
  %958 = vmatprep.mubr.f32.mxu0 0.0
  %959 = vmatmul.mubr.f32.gmra.mxu0 %v785
  %v960 = vpop.f32.mrf.mxu0
  %v961 = vadd.f32 0.0, %v960
  %v962 = vpop.f32.mrf.mxu0
  %963 = vdwg.mxu0
  %v964 = vmul.f32 %v886, 0.35355338
  %v965 = vmul.f32 %v891, 0.35355338
  %v966 = vmul.f32 %v896, 0.35355338
  %v967 = vmul.f32 %v901, 0.35355338
  %v968 = vmul.f32 %v906, 0.35355338
  %v969 = vmul.f32 %v911, 0.35355338
  %v970 = vmul.f32 %v916, 0.35355338
  %v971 = vmul.f32 %v921, 0.35355338
  %v972 = vmul.f32 %v926, 0.35355338
  %v973 = vmul.f32 %v931, 0.35355338
  %v974 = vmul.f32 %v936, 0.35355338
  %v975 = vmul.f32 %v941, 0.35355338
  %v976 = vmul.f32 %v946, 0.35355338
  %v977 = vmul.f32 %v951, 0.35355338
  %v978 = vmul.f32 %v956, 0.35355338
  %v979 = vmul.f32 %v961, 0.35355338
  %v980 = vadd.f32 %v964, %v686
  %v981 = vadd.f32 %v965, %v687
  %v982 = vadd.f32 %v966, %v688
  %v983 = vadd.f32 %v967, %v689
  %v984 = vadd.f32 %v968, %v690
  %v985 = vadd.f32 %v969, %v691
  %v986 = vadd.f32 %v970, %v692
  %v987 = vadd.f32 %v971, %v693
  %v988 = vadd.f32 %v972, %v694
  %v989 = vadd.f32 %v973, %v695
  %v990 = vadd.f32 %v974, %v696
  %v991 = vadd.f32 %v975, %v697
  %v992 = vadd.f32 %v976, %v698
  %v993 = vadd.f32 %v977, %v699
  %v994 = vadd.f32 %v978, %v700
  %v995 = vadd.f32 %v979, %v701
  %996 = vmax.xlane.f32.xlu0 %v980
  %v997 = vpop.xlane.xlu0 %996
  %998 = vmax.xlane.f32.xlu0 %v981
  %v999 = vpop.xlane.xlu0 %998
  %1000 = vmax.xlane.f32.xlu0 %v982
  %v1001 = vpop.xlane.xlu0 %1000
  %1002 = vmax.xlane.f32.xlu0 %v983
  %v1003 = vpop.xlane.xlu0 %1002
  %1004 = vmax.xlane.f32.xlu0 %v984
  %v1005 = vpop.xlane.xlu0 %1004
  %1006 = vmax.xlane.f32.xlu0 %v985
  %v1007 = vpop.xlane.xlu0 %1006
  %1008 = vmax.xlane.f32.xlu0 %v986
  %v1009 = vpop.xlane.xlu0 %1008
  %1010 = vmax.xlane.f32.xlu0 %v987
  %v1011 = vpop.xlane.xlu0 %1010
  %1012 = vmax.xlane.f32.xlu0 %v988
  %v1013 = vpop.xlane.xlu0 %1012
  %1014 = vmax.xlane.f32.xlu0 %v989
  %v1015 = vpop.xlane.xlu0 %1014
  %1016 = vmax.xlane.f32.xlu0 %v990
  %v1017 = vpop.xlane.xlu0 %1016
  %1018 = vmax.xlane.f32.xlu0 %v991
  %v1019 = vpop.xlane.xlu0 %1018
  %1020 = vmax.xlane.f32.xlu0 %v992
  %v1021 = vpop.xlane.xlu0 %1020
  %1022 = vmax.xlane.f32.xlu0 %v993
  %v1023 = vpop.xlane.xlu0 %1022
  %1024 = vmax.xlane.f32.xlu0 %v994
  %v1025 = vpop.xlane.xlu0 %1024
  %1026 = vmax.xlane.f32.xlu0 %v995
  %v1027 = vpop.xlane.xlu0 %1026
  %v1028 = vsub.f32 %v980, %v997
  %v1029 = vsub.f32 %v981, %v999
  %v1030 = vsub.f32 %v982, %v1001
  %v1031 = vsub.f32 %v983, %v1003
  %v1032 = vsub.f32 %v984, %v1005
  %v1033 = vsub.f32 %v985, %v1007
  %v1034 = vsub.f32 %v986, %v1009
  %v1035 = vsub.f32 %v987, %v1011
  %v1036 = vsub.f32 %v988, %v1013
  %v1037 = vsub.f32 %v989, %v1015
  %v1038 = vsub.f32 %v990, %v1017
  %v1039 = vsub.f32 %v991, %v1019
  %v1040 = vsub.f32 %v992, %v1021
  %v1041 = vsub.f32 %v993, %v1023
  %v1042 = vsub.f32 %v994, %v1025
  %v1043 = vsub.f32 %v995, %v1027
  %v1044 = vmul.f32 %v1028, 1.442695
  %v1045 = vpow.pop %v1044
  %v1046 = vmul.f32 %v1029, 1.442695
  %v1047 = vpow.pop %v1046
  %v1048 = vmul.f32 %v1030, 1.442695
  %v1049 = vpow.pop %v1048
  %v1050 = vmul.f32 %v1031, 1.442695
  %v1051 = vpow.pop %v1050
  %v1052 = vmul.f32 %v1032, 1.442695
  %v1053 = vpow.pop %v1052
  %v1054 = vmul.f32 %v1033, 1.442695
  %v1055 = vpow.pop %v1054
  %v1056 = vmul.f32 %v1034, 1.442695
  %v1057 = vpow.pop %v1056
  %v1058 = vmul.f32 %v1035, 1.442695
  %v1059 = vpow.pop %v1058
  %v1060 = vmul.f32 %v1036, 1.442695
  %v1061 = vpow.pop %v1060
  %v1062 = vmul.f32 %v1037, 1.442695
  %v1063 = vpow.pop %v1062
  %v1064 = vmul.f32 %v1038, 1.442695
  %v1065 = vpow.pop %v1064
  %v1066 = vmul.f32 %v1039, 1.442695
  %v1067 = vpow.pop %v1066
  %v1068 = vmul.f32 %v1040, 1.442695
  %v1069 = vpow.pop %v1068
  %v1070 = vmul.f32 %v1041, 1.442695
  %v1071 = vpow.pop %v1070
  %v1072 = vmul.f32 %v1042, 1.442695
  %v1073 = vpow.pop %v1072
  %v1074 = vmul.f32 %v1043, 1.442695
  %v1075 = vpow.pop %v1074
  %1076 = vadd.xlane.f32.xlu0 %v1045
  %v1077 = vpop.xlane.xlu0 %1076
  %1078 = vadd.xlane.f32.xlu0 %v1047
  %v1079 = vpop.xlane.xlu0 %1078
  %1080 = vadd.xlane.f32.xlu0 %v1049
  %v1081 = vpop.xlane.xlu0 %1080
  %1082 = vadd.xlane.f32.xlu0 %v1051
  %v1083 = vpop.xlane.xlu0 %1082
  %1084 = vadd.xlane.f32.xlu0 %v1053
  %v1085 = vpop.xlane.xlu0 %1084
  %1086 = vadd.xlane.f32.xlu0 %v1055
  %v1087 = vpop.xlane.xlu0 %1086
  %1088 = vadd.xlane.f32.xlu0 %v1057
  %v1089 = vpop.xlane.xlu0 %1088
  %1090 = vadd.xlane.f32.xlu0 %v1059
  %v1091 = vpop.xlane.xlu0 %1090
  %1092 = vadd.xlane.f32.xlu0 %v1061
  %v1093 = vpop.xlane.xlu0 %1092
  %1094 = vadd.xlane.f32.xlu0 %v1063
  %v1095 = vpop.xlane.xlu0 %1094
  %1096 = vadd.xlane.f32.xlu0 %v1065
  %v1097 = vpop.xlane.xlu0 %1096
  %1098 = vadd.xlane.f32.xlu0 %v1067
  %v1099 = vpop.xlane.xlu0 %1098
  %1100 = vadd.xlane.f32.xlu0 %v1069
  %v1101 = vpop.xlane.xlu0 %1100
  %1102 = vadd.xlane.f32.xlu0 %v1071
  %v1103 = vpop.xlane.xlu0 %1102
  %1104 = vadd.xlane.f32.xlu0 %v1073
  %v1105 = vpop.xlane.xlu0 %1104
  %1106 = vadd.xlane.f32.xlu0 %v1075
  %v1107 = vpop.xlane.xlu0 %1106
  %v1108 = vrcp.pop %v1077
  %v1109 = vrcp.pop %v1079
  %v1110 = vrcp.pop %v1081
  %v1111 = vrcp.pop %v1083
  %v1112 = vrcp.pop %v1085
  %v1113 = vrcp.pop %v1087
  %v1114 = vrcp.pop %v1089
  %v1115 = vrcp.pop %v1091
  %v1116 = vrcp.pop %v1093
  %v1117 = vrcp.pop %v1095
  %v1118 = vrcp.pop %v1097
  %v1119 = vrcp.pop %v1099
  %v1120 = vrcp.pop %v1101
  %v1121 = vrcp.pop %v1103
  %v1122 = vrcp.pop %v1105
  %v1123 = vrcp.pop %v1107
  %v1124 = vmul.f32 %v1045, %v1108
  %v1125 = vmul.f32 %v1047, %v1109
  %v1126 = vmul.f32 %v1049, %v1110
  %v1127 = vmul.f32 %v1051, %v1111
  %v1128 = vmul.f32 %v1053, %v1112
  %v1129 = vmul.f32 %v1055, %v1113
  %v1130 = vmul.f32 %v1057, %v1114
  %v1131 = vmul.f32 %v1059, %v1115
  %v1132 = vmul.f32 %v1061, %v1116
  %v1133 = vmul.f32 %v1063, %v1117
  %v1134 = vmul.f32 %v1065, %v1118
  %v1135 = vmul.f32 %v1067, %v1119
  %v1136 = vmul.f32 %v1069, %v1120
  %v1137 = vmul.f32 %v1071, %v1121
  %v1138 = vmul.f32 %v1073, %v1122
  %v1139 = vmul.f32 %v1075, %v1123
  %1140 = vrot.lane.b32.xlu0 %v608, 64
  %v1141 = vpop.permute.xlu0 %1140
  %1142 = vrot.lane.b32.xlu0 %v613, 64
  %v1143 = vpop.permute.xlu0 %1142
  %1144 = vrot.lane.b32.xlu0 %v618, 64
  %v1145 = vpop.permute.xlu0 %1144
  %1146 = vrot.lane.b32.xlu0 %v623, 64
  %v1147 = vpop.permute.xlu0 %1146
  %1148 = vrot.lane.b32.xlu0 %v628, 64
  %v1149 = vpop.permute.xlu0 %1148
  %1150 = vrot.lane.b32.xlu0 %v633, 64
  %v1151 = vpop.permute.xlu0 %1150
  %1152 = vrot.lane.b32.xlu0 %v638, 64
  %v1153 = vpop.permute.xlu0 %1152
  %1154 = vrot.lane.b32.xlu0 %v643, 64
  %v1155 = vpop.permute.xlu0 %1154
  %1156 = vrot.lane.b32.xlu0 %v648, 64
  %v1157 = vpop.permute.xlu0 %1156
  %1158 = vrot.lane.b32.xlu0 %v653, 64
  %v1159 = vpop.permute.xlu0 %1158
  %1160 = vrot.lane.b32.xlu0 %v658, 64
  %v1161 = vpop.permute.xlu0 %1160
  %1162 = vrot.lane.b32.xlu0 %v663, 64
  %v1163 = vpop.permute.xlu0 %1162
  %1164 = vrot.lane.b32.xlu0 %v668, 64
  %v1165 = vpop.permute.xlu0 %1164
  %1166 = vrot.lane.b32.xlu0 %v673, 64
  %v1167 = vpop.permute.xlu0 %1166
  %1168 = vrot.lane.b32.xlu0 %v678, 64
  %v1169 = vpop.permute.xlu0 %1168
  %1170 = vrot.lane.b32.xlu0 %v683, 64
  %v1171 = vpop.permute.xlu0 %1170
  %1188 = vmatprep.subr.mxu0 0.0
  %1189 = vmatpush1.msra.mxu0 %v1171
  %1190 = vmatprep.subr.mxu0 0.0
  %1191 = vmatpush1.msra.mxu0 %v1169
  %1192 = vmatprep.subr.mxu0 0.0
  %1193 = vmatpush1.msra.mxu0 %v1167
  %1194 = vmatprep.subr.mxu0 0.0
  %1195 = vmatpush1.msra.mxu0 %v1165
  %1196 = vmatprep.subr.mxu0 0.0
  %1197 = vmatpush1.msra.mxu0 %v1163
  %1198 = vmatprep.subr.mxu0 0.0
  %1199 = vmatpush1.msra.mxu0 %v1161
  %1200 = vmatprep.subr.mxu0 0.0
  %1201 = vmatpush1.msra.mxu0 %v1159
  %1202 = vmatprep.subr.mxu0 0.0
  %1203 = vmatpush1.msra.mxu0 %v1157
  %1204 = vmatprep.subr.mxu0 0.0
  %1205 = vmatpush1.msra.mxu0 %v1155
  %1206 = vmatprep.subr.mxu0 0.0
  %1207 = vmatpush1.msra.mxu0 %v1153
  %1208 = vmatprep.subr.mxu0 0.0
  %1209 = vmatpush1.msra.mxu0 %v1151
  %1210 = vmatprep.subr.mxu0 0.0
  %1211 = vmatpush1.msra.mxu0 %v1149
  %1212 = vmatprep.subr.mxu0 0.0
  %1213 = vmatpush1.msra.mxu0 %v1147
  %1214 = vmatprep.subr.mxu0 0.0
  %1215 = vmatpush1.msra.mxu0 %v1145
  %1216 = vmatprep.subr.mxu0 0.0
  %1217 = vmatpush1.msra.mxu0 %v1143
  %1218 = vmatprep.subr.mxu0 0.0
  %1219 = vmatpush1.msra.mxu0 %v1141
  %1220 = vmatprep.subr.mxu0 0.0
  %1221 = vmatpush2.msra.mxu0 0.0
  %1222 = vmatprep.subr.mxu0 0.0
  %1223 = vmatpush2.msra.mxu0 0.0
  %1224 = vmatprep.subr.mxu0 0.0
  %1225 = vmatpush2.msra.mxu0 0.0
  %1226 = vmatprep.subr.mxu0 0.0
  %1227 = vmatpush2.msra.mxu0 0.0
  %1228 = vmatprep.subr.mxu0 0.0
  %1229 = vmatpush2.msra.mxu0 0.0
  %1230 = vmatprep.subr.mxu0 0.0
  %1231 = vmatpush2.msra.mxu0 0.0
  %1232 = vmatprep.subr.mxu0 0.0
  %1233 = vmatpush2.msra.mxu0 0.0
  %1234 = vmatprep.subr.mxu0 0.0
  %1235 = vmatpush2.msra.mxu0 0.0
  %1236 = vmatprep.subr.mxu0 0.0
  %1237 = vmatpush2.msra.mxu0 0.0
  %1238 = vmatprep.subr.mxu0 0.0
  %1239 = vmatpush2.msra.mxu0 0.0
  %1240 = vmatprep.subr.mxu0 0.0
  %1241 = vmatpush2.msra.mxu0 0.0
  %1242 = vmatprep.subr.mxu0 0.0
  %1243 = vmatpush2.msra.mxu0 0.0
  %1244 = vmatprep.subr.mxu0 0.0
  %1245 = vmatpush2.msra.mxu0 0.0
  %1246 = vmatprep.subr.mxu0 0.0
  %1247 = vmatpush2.msra.mxu0 0.0
  %1248 = vmatprep.subr.mxu0 0.0
  %1249 = vmatpush2.msra.mxu0 0.0
  %1250 = vmatprep.subr.mxu0 0.0
  %1251 = vmatpush2.msra.mxu0 0.0
  %1252 = vmatprep.mubr.f32.mxu0 0.0
  %1253 = vmatmul.mubr.f32.gmra.mxu0 %v1124
  %v1254 = vpop.f32.mrf.mxu0
  %v1255 = vadd.f32 0.0, %v1254
  %v1256 = vpop.f32.mrf.mxu0
  %1257 = vmatprep.mubr.f32.mxu0 0.0
  %1258 = vmatmul.mubr.f32.gmra.mxu0 %v1125
  %v1259 = vpop.f32.mrf.mxu0
  %v1260 = vadd.f32 0.0, %v1259
  %v1261 = vpop.f32.mrf.mxu0
  %1262 = vmatprep.mubr.f32.mxu0 0.0
  %1263 = vmatmul.mubr.f32.gmra.mxu0 %v1126
  %v1264 = vpop.f32.mrf.mxu0
  %v1265 = vadd.f32 0.0, %v1264
  %v1266 = vpop.f32.mrf.mxu0
  %1267 = vmatprep.mubr.f32.mxu0 0.0
  %1268 = vmatmul.mubr.f32.gmra.mxu0 %v1127
  %v1269 = vpop.f32.mrf.mxu0
  %v1270 = vadd.f32 0.0, %v1269
  %v1271 = vpop.f32.mrf.mxu0
  %1272 = vmatprep.mubr.f32.mxu0 0.0
  %1273 = vmatmul.mubr.f32.gmra.mxu0 %v1128
  %v1274 = vpop.f32.mrf.mxu0
  %v1275 = vadd.f32 0.0, %v1274
  %v1276 = vpop.f32.mrf.mxu0
  %1277 = vmatprep.mubr.f32.mxu0 0.0
  %1278 = vmatmul.mubr.f32.gmra.mxu0 %v1129
  %v1279 = vpop.f32.mrf.mxu0
  %v1280 = vadd.f32 0.0, %v1279
  %v1281 = vpop.f32.mrf.mxu0
  %1282 = vmatprep.mubr.f32.mxu0 0.0
  %1283 = vmatmul.mubr.f32.gmra.mxu0 %v1130
  %v1284 = vpop.f32.mrf.mxu0
  %v1285 = vadd.f32 0.0, %v1284
  %v1286 = vpop.f32.mrf.mxu0
  %1287 = vmatprep.mubr.f32.mxu0 0.0
  %1288 = vmatmul.mubr.f32.gmra.mxu0 %v1131
  %v1289 = vpop.f32.mrf.mxu0
  %v1290 = vadd.f32 0.0, %v1289
  %v1291 = vpop.f32.mrf.mxu0
  %1292 = vmatprep.mubr.f32.mxu0 0.0
  %1293 = vmatmul.mubr.f32.gmra.mxu0 %v1132
  %v1294 = vpop.f32.mrf.mxu0
  %v1295 = vadd.f32 0.0, %v1294
  %v1296 = vpop.f32.mrf.mxu0
  %1297 = vmatprep.mubr.f32.mxu0 0.0
  %1298 = vmatmul.mubr.f32.gmra.mxu0 %v1133
  %v1299 = vpop.f32.mrf.mxu0
  %v1300 = vadd.f32 0.0, %v1299
  %v1301 = vpop.f32.mrf.mxu0
  %1302 = vmatprep.mubr.f32.mxu0 0.0
  %1303 = vmatmul.mubr.f32.gmra.mxu0 %v1134
  %v1304 = vpop.f32.mrf.mxu0
  %v1305 = vadd.f32 0.0, %v1304
  %v1306 = vpop.f32.mrf.mxu0
  %1307 = vmatprep.mubr.f32.mxu0 0.0
  %1308 = vmatmul.mubr.f32.gmra.mxu0 %v1135
  %v1309 = vpop.f32.mrf.mxu0
  %v1310 = vadd.f32 0.0, %v1309
  %v1311 = vpop.f32.mrf.mxu0
  %1312 = vmatprep.mubr.f32.mxu0 0.0
  %1313 = vmatmul.mubr.f32.gmra.mxu0 %v1136
  %v1314 = vpop.f32.mrf.mxu0
  %v1315 = vadd.f32 0.0, %v1314
  %v1316 = vpop.f32.mrf.mxu0
  %1317 = vmatprep.mubr.f32.mxu0 0.0
  %1318 = vmatmul.mubr.f32.gmra.mxu0 %v1137
  %v1319 = vpop.f32.mrf.mxu0
  %v1320 = vadd.f32 0.0, %v1319
  %v1321 = vpop.f32.mrf.mxu0
  %1322 = vmatprep.mubr.f32.mxu0 0.0
  %1323 = vmatmul.mubr.f32.gmra.mxu0 %v1138
  %v1324 = vpop.f32.mrf.mxu0
  %v1325 = vadd.f32 0.0, %v1324
  %v1326 = vpop.f32.mrf.mxu0
  %1327 = vmatprep.mubr.f32.mxu0 0.0
  %1328 = vmatmul.mubr.f32.gmra.mxu0 %v1139
  %v1329 = vpop.f32.mrf.mxu0
  %v1330 = vadd.f32 0.0, %v1329
  %v1331 = vpop.f32.mrf.mxu0
  %1332 = vdwg.mxu0
  %1333 = vrot.lane.b32.xlu0 %v608, 120
  %v1334 = vpop.permute.xlu0 %1333
  %1335 = vrot.lane.b32.xlu0 %v613, 120
  %v1336 = vpop.permute.xlu0 %1335
  %1337 = vrot.lane.b32.xlu0 %v618, 120
  %v1338 = vpop.permute.xlu0 %1337
  %1339 = vrot.lane.b32.xlu0 %v623, 120
  %v1340 = vpop.permute.xlu0 %1339
  %1341 = vrot.lane.b32.xlu0 %v628, 120
  %v1342 = vpop.permute.xlu0 %1341
  %1343 = vrot.lane.b32.xlu0 %v633, 120
  %v1344 = vpop.permute.xlu0 %1343
  %1345 = vrot.lane.b32.xlu0 %v638, 120
  %v1346 = vpop.permute.xlu0 %1345
  %1347 = vrot.lane.b32.xlu0 %v643, 120
  %v1348 = vpop.permute.xlu0 %1347
  %1349 = vrot.lane.b32.xlu0 %v648, 120
  %v1350 = vpop.permute.xlu0 %1349
  %1351 = vrot.lane.b32.xlu0 %v653, 120
  %v1352 = vpop.permute.xlu0 %1351
  %1353 = vrot.lane.b32.xlu0 %v658, 120
  %v1354 = vpop.permute.xlu0 %1353
  %1355 = vrot.lane.b32.xlu0 %v663, 120
  %v1356 = vpop.permute.xlu0 %1355
  %1357 = vrot.lane.b32.xlu0 %v668, 120
  %v1358 = vpop.permute.xlu0 %1357
  %1359 = vrot.lane.b32.xlu0 %v673, 120
  %v1360 = vpop.permute.xlu0 %1359
  %1361 = vrot.lane.b32.xlu0 %v678, 120
  %v1362 = vpop.permute.xlu0 %1361
  %1363 = vrot.lane.b32.xlu0 %v683, 120
  %v1364 = vpop.permute.xlu0 %1363
  %1365 = vrot.lane.b32.xlu0 %v608, 88
  %v1366 = vpop.permute.xlu0 %1365
  %1367 = vrot.lane.b32.xlu0 %v613, 88
  %v1368 = vpop.permute.xlu0 %1367
  %1369 = vrot.lane.b32.xlu0 %v618, 88
  %v1370 = vpop.permute.xlu0 %1369
  %1371 = vrot.lane.b32.xlu0 %v623, 88
  %v1372 = vpop.permute.xlu0 %1371
  %1373 = vrot.lane.b32.xlu0 %v628, 88
  %v1374 = vpop.permute.xlu0 %1373
  %1375 = vrot.lane.b32.xlu0 %v633, 88
  %v1376 = vpop.permute.xlu0 %1375
  %1377 = vrot.lane.b32.xlu0 %v638, 88
  %v1378 = vpop.permute.xlu0 %1377
  %1379 = vrot.lane.b32.xlu0 %v643, 88
  %v1380 = vpop.permute.xlu0 %1379
  %1381 = vrot.lane.b32.xlu0 %v648, 88
  %v1382 = vpop.permute.xlu0 %1381
  %1383 = vrot.lane.b32.xlu0 %v653, 88
  %v1384 = vpop.permute.xlu0 %1383
  %1385 = vrot.lane.b32.xlu0 %v658, 88
  %v1386 = vpop.permute.xlu0 %1385
  %1387 = vrot.lane.b32.xlu0 %v663, 88
  %v1388 = vpop.permute.xlu0 %1387
  %1389 = vrot.lane.b32.xlu0 %v668, 88
  %v1390 = vpop.permute.xlu0 %1389
  %1391 = vrot.lane.b32.xlu0 %v673, 88
  %v1392 = vpop.permute.xlu0 %1391
  %1393 = vrot.lane.b32.xlu0 %v678, 88
  %v1394 = vpop.permute.xlu0 %1393
  %1395 = vrot.lane.b32.xlu0 %v683, 88
  %v1396 = vpop.permute.xlu0 %1395
  %v1397 = vsel %vm754, %v1334, 0
  %v1399 = vsel %vm754, %v1336, 0
  %v1401 = vsel %vm754, %v1338, 0
  %v1403 = vsel %vm754, %v1340, 0
  %v1405 = vsel %vm754, %v1342, 0
  %v1407 = vsel %vm754, %v1344, 0
  %v1409 = vsel %vm754, %v1346, 0
  %v1411 = vsel %vm754, %v1348, 0
  %v1413 = vsel %vm754, %v1350, 0
  %v1415 = vsel %vm754, %v1352, 0
  %v1417 = vsel %vm754, %v1354, 0
  %v1419 = vsel %vm754, %v1356, 0
  %v1421 = vsel %vm754, %v1358, 0
  %v1423 = vsel %vm754, %v1360, 0
  %v1425 = vsel %vm754, %v1362, 0
  %v1427 = vsel %vm754, %v1364, 0
  %v1429 = vsel %vm754, %v1366, 0
  %v1431 = vsel %vm754, %v1368, 0
  %v1433 = vsel %vm754, %v1370, 0
  %v1435 = vsel %vm754, %v1372, 0
  %v1437 = vsel %vm754, %v1374, 0
  %v1439 = vsel %vm754, %v1376, 0
  %v1441 = vsel %vm754, %v1378, 0
  %v1443 = vsel %vm754, %v1380, 0
  %v1445 = vsel %vm754, %v1382, 0
  %v1447 = vsel %vm754, %v1384, 0
  %v1449 = vsel %vm754, %v1386, 0
  %v1451 = vsel %vm754, %v1388, 0
  %v1453 = vsel %vm754, %v1390, 0
  %v1455 = vsel %vm754, %v1392, 0
  %v1457 = vsel %vm754, %v1394, 0
  %v1459 = vsel %vm754, %v1396, 0
  %1461 = vmatprep.subr.mxu0 0.0
  %1462 = vmatpush1.xpose.msra.mxu0 %v1459
  %1463 = vmatprep.subr.mxu0 0.0
  %1464 = vmatpush1.xpose.msra.mxu0 %v1457
  %1465 = vmatprep.subr.mxu0 0.0
  %1466 = vmatpush1.xpose.msra.mxu0 %v1455
  %1467 = vmatprep.subr.mxu0 0.0
  %1468 = vmatpush1.xpose.msra.mxu0 %v1453
  %1469 = vmatprep.subr.mxu0 0.0
  %1470 = vmatpush1.xpose.msra.mxu0 %v1451
  %1471 = vmatprep.subr.mxu0 0.0
  %1472 = vmatpush1.xpose.msra.mxu0 %v1449
  %1473 = vmatprep.subr.mxu0 0.0
  %1474 = vmatpush1.xpose.msra.mxu0 %v1447
  %1475 = vmatprep.subr.mxu0 0.0
  %1476 = vmatpush1.xpose.msra.mxu0 %v1445
  %1477 = vmatprep.subr.mxu0 0.0
  %1478 = vmatpush1.xpose.msra.mxu0 %v1443
  %1479 = vmatprep.subr.mxu0 0.0
  %1480 = vmatpush1.xpose.msra.mxu0 %v1441
  %1481 = vmatprep.subr.mxu0 0.0
  %1482 = vmatpush1.xpose.msra.mxu0 %v1439
  %1483 = vmatprep.subr.mxu0 0.0
  %1484 = vmatpush1.xpose.msra.mxu0 %v1437
  %1485 = vmatprep.subr.mxu0 0.0
  %1486 = vmatpush1.xpose.msra.mxu0 %v1435
  %1487 = vmatprep.subr.mxu0 0.0
  %1488 = vmatpush1.xpose.msra.mxu0 %v1433
  %1489 = vmatprep.subr.mxu0 0.0
  %1490 = vmatpush1.xpose.msra.mxu0 %v1431
  %1491 = vmatprep.subr.mxu0 0.0
  %1492 = vmatpush1.xpose.msra.mxu0 %v1429
  %1493 = vmatprep.subr.mxu0 0.0
  %1494 = vmatpush2.xpose.msra.mxu0 0.0
  %1495 = vmatprep.subr.mxu0 0.0
  %1496 = vmatpush2.xpose.msra.mxu0 0.0
  %1497 = vmatprep.subr.mxu0 0.0
  %1498 = vmatpush2.xpose.msra.mxu0 0.0
  %1499 = vmatprep.subr.mxu0 0.0
  %1500 = vmatpush2.xpose.msra.mxu0 0.0
  %1501 = vmatprep.subr.mxu0 0.0
  %1502 = vmatpush2.xpose.msra.mxu0 0.0
  %1503 = vmatprep.subr.mxu0 0.0
  %1504 = vmatpush2.xpose.msra.mxu0 0.0
  %1505 = vmatprep.subr.mxu0 0.0
  %1506 = vmatpush2.xpose.msra.mxu0 0.0
  %1507 = vmatprep.subr.mxu0 0.0
  %1508 = vmatpush2.xpose.msra.mxu0 0.0
  %1509 = vmatprep.subr.mxu0 0.0
  %1510 = vmatpush2.xpose.msra.mxu0 0.0
  %1511 = vmatprep.subr.mxu0 0.0
  %1512 = vmatpush2.xpose.msra.mxu0 0.0
  %1513 = vmatprep.subr.mxu0 0.0
  %1514 = vmatpush2.xpose.msra.mxu0 0.0
  %1515 = vmatprep.subr.mxu0 0.0
  %1516 = vmatpush2.xpose.msra.mxu0 0.0
  %1517 = vmatprep.subr.mxu0 0.0
  %1518 = vmatpush2.xpose.msra.mxu0 0.0
  %1519 = vmatprep.subr.mxu0 0.0
  %1520 = vmatpush2.xpose.msra.mxu0 0.0
  %1521 = vmatprep.subr.mxu0 0.0
  %1522 = vmatpush2.xpose.msra.mxu0 0.0
  %1523 = vmatprep.subr.mxu0 0.0
  %1524 = vmatpush2.xpose.msra.mxu0 0.0
  %1525 = vmatprep.mubr.f32.mxu0 0.0
  %1526 = vmatmul.mubr.f32.gmra.mxu0 %v1397
  %v1527 = vpop.f32.mrf.mxu0
  %v1528 = vadd.f32 0.0, %v1527
  %v1529 = vpop.f32.mrf.mxu0
  %1530 = vmatprep.mubr.f32.mxu0 0.0
  %1531 = vmatmul.mubr.f32.gmra.mxu0 %v1399
  %v1532 = vpop.f32.mrf.mxu0
  %v1533 = vadd.f32 0.0, %v1532
  %v1534 = vpop.f32.mrf.mxu0
  %1535 = vmatprep.mubr.f32.mxu0 0.0
  %1536 = vmatmul.mubr.f32.gmra.mxu0 %v1401
  %v1537 = vpop.f32.mrf.mxu0
  %v1538 = vadd.f32 0.0, %v1537
  %v1539 = vpop.f32.mrf.mxu0
  %1540 = vmatprep.mubr.f32.mxu0 0.0
  %1541 = vmatmul.mubr.f32.gmra.mxu0 %v1403
  %v1542 = vpop.f32.mrf.mxu0
  %v1543 = vadd.f32 0.0, %v1542
  %v1544 = vpop.f32.mrf.mxu0
  %1545 = vmatprep.mubr.f32.mxu0 0.0
  %1546 = vmatmul.mubr.f32.gmra.mxu0 %v1405
  %v1547 = vpop.f32.mrf.mxu0
  %v1548 = vadd.f32 0.0, %v1547
  %v1549 = vpop.f32.mrf.mxu0
  %1550 = vmatprep.mubr.f32.mxu0 0.0
  %1551 = vmatmul.mubr.f32.gmra.mxu0 %v1407
  %v1552 = vpop.f32.mrf.mxu0
  %v1553 = vadd.f32 0.0, %v1552
  %v1554 = vpop.f32.mrf.mxu0
  %1555 = vmatprep.mubr.f32.mxu0 0.0
  %1556 = vmatmul.mubr.f32.gmra.mxu0 %v1409
  %v1557 = vpop.f32.mrf.mxu0
  %v1558 = vadd.f32 0.0, %v1557
  %v1559 = vpop.f32.mrf.mxu0
  %1560 = vmatprep.mubr.f32.mxu0 0.0
  %1561 = vmatmul.mubr.f32.gmra.mxu0 %v1411
  %v1562 = vpop.f32.mrf.mxu0
  %v1563 = vadd.f32 0.0, %v1562
  %v1564 = vpop.f32.mrf.mxu0
  %1565 = vmatprep.mubr.f32.mxu0 0.0
  %1566 = vmatmul.mubr.f32.gmra.mxu0 %v1413
  %v1567 = vpop.f32.mrf.mxu0
  %v1568 = vadd.f32 0.0, %v1567
  %v1569 = vpop.f32.mrf.mxu0
  %1570 = vmatprep.mubr.f32.mxu0 0.0
  %1571 = vmatmul.mubr.f32.gmra.mxu0 %v1415
  %v1572 = vpop.f32.mrf.mxu0
  %v1573 = vadd.f32 0.0, %v1572
  %v1574 = vpop.f32.mrf.mxu0
  %1575 = vmatprep.mubr.f32.mxu0 0.0
  %1576 = vmatmul.mubr.f32.gmra.mxu0 %v1417
  %v1577 = vpop.f32.mrf.mxu0
  %v1578 = vadd.f32 0.0, %v1577
  %v1579 = vpop.f32.mrf.mxu0
  %1580 = vmatprep.mubr.f32.mxu0 0.0
  %1581 = vmatmul.mubr.f32.gmra.mxu0 %v1419
  %v1582 = vpop.f32.mrf.mxu0
  %v1583 = vadd.f32 0.0, %v1582
  %v1584 = vpop.f32.mrf.mxu0
  %1585 = vmatprep.mubr.f32.mxu0 0.0
  %1586 = vmatmul.mubr.f32.gmra.mxu0 %v1421
  %v1587 = vpop.f32.mrf.mxu0
  %v1588 = vadd.f32 0.0, %v1587
  %v1589 = vpop.f32.mrf.mxu0
  %1590 = vmatprep.mubr.f32.mxu0 0.0
  %1591 = vmatmul.mubr.f32.gmra.mxu0 %v1423
  %v1592 = vpop.f32.mrf.mxu0
  %v1593 = vadd.f32 0.0, %v1592
  %v1594 = vpop.f32.mrf.mxu0
  %1595 = vmatprep.mubr.f32.mxu0 0.0
  %1596 = vmatmul.mubr.f32.gmra.mxu0 %v1425
  %v1597 = vpop.f32.mrf.mxu0
  %v1598 = vadd.f32 0.0, %v1597
  %v1599 = vpop.f32.mrf.mxu0
  %1600 = vmatprep.mubr.f32.mxu0 0.0
  %1601 = vmatmul.mubr.f32.gmra.mxu0 %v1427
  %v1602 = vpop.f32.mrf.mxu0
  %v1603 = vadd.f32 0.0, %v1602
  %v1604 = vpop.f32.mrf.mxu0
  %1605 = vdwg.mxu0
  %v1606 = vmul.f32 %v1528, 0.35355338
  %v1607 = vmul.f32 %v1533, 0.35355338
  %v1608 = vmul.f32 %v1538, 0.35355338
  %v1609 = vmul.f32 %v1543, 0.35355338
  %v1610 = vmul.f32 %v1548, 0.35355338
  %v1611 = vmul.f32 %v1553, 0.35355338
  %v1612 = vmul.f32 %v1558, 0.35355338
  %v1613 = vmul.f32 %v1563, 0.35355338
  %v1614 = vmul.f32 %v1568, 0.35355338
  %v1615 = vmul.f32 %v1573, 0.35355338
  %v1616 = vmul.f32 %v1578, 0.35355338
  %v1617 = vmul.f32 %v1583, 0.35355338
  %v1618 = vmul.f32 %v1588, 0.35355338
  %v1619 = vmul.f32 %v1593, 0.35355338
  %v1620 = vmul.f32 %v1598, 0.35355338
  %v1621 = vmul.f32 %v1603, 0.35355338
  %v1622 = vadd.f32 %v1606, %v686
  %v1623 = vadd.f32 %v1607, %v687
  %v1624 = vadd.f32 %v1608, %v688
  %v1625 = vadd.f32 %v1609, %v689
  %v1626 = vadd.f32 %v1610, %v690
  %v1627 = vadd.f32 %v1611, %v691
  %v1628 = vadd.f32 %v1612, %v692
  %v1629 = vadd.f32 %v1613, %v693
  %v1630 = vadd.f32 %v1614, %v694
  %v1631 = vadd.f32 %v1615, %v695
  %v1632 = vadd.f32 %v1616, %v696
  %v1633 = vadd.f32 %v1617, %v697
  %v1634 = vadd.f32 %v1618, %v698
  %v1635 = vadd.f32 %v1619, %v699
  %v1636 = vadd.f32 %v1620, %v700
  %v1637 = vadd.f32 %v1621, %v701
  %1638 = vmax.xlane.f32.xlu0 %v1622
  %v1639 = vpop.xlane.xlu0 %1638
  %1640 = vmax.xlane.f32.xlu0 %v1623
  %v1641 = vpop.xlane.xlu0 %1640
  %1642 = vmax.xlane.f32.xlu0 %v1624
  %v1643 = vpop.xlane.xlu0 %1642
  %1644 = vmax.xlane.f32.xlu0 %v1625
  %v1645 = vpop.xlane.xlu0 %1644
  %1646 = vmax.xlane.f32.xlu0 %v1626
  %v1647 = vpop.xlane.xlu0 %1646
  %1648 = vmax.xlane.f32.xlu0 %v1627
  %v1649 = vpop.xlane.xlu0 %1648
  %1650 = vmax.xlane.f32.xlu0 %v1628
  %v1651 = vpop.xlane.xlu0 %1650
  %1652 = vmax.xlane.f32.xlu0 %v1629
  %v1653 = vpop.xlane.xlu0 %1652
  %1654 = vmax.xlane.f32.xlu0 %v1630
  %v1655 = vpop.xlane.xlu0 %1654
  %1656 = vmax.xlane.f32.xlu0 %v1631
  %v1657 = vpop.xlane.xlu0 %1656
  %1658 = vmax.xlane.f32.xlu0 %v1632
  %v1659 = vpop.xlane.xlu0 %1658
  %1660 = vmax.xlane.f32.xlu0 %v1633
  %v1661 = vpop.xlane.xlu0 %1660
  %1662 = vmax.xlane.f32.xlu0 %v1634
  %v1663 = vpop.xlane.xlu0 %1662
  %1664 = vmax.xlane.f32.xlu0 %v1635
  %v1665 = vpop.xlane.xlu0 %1664
  %1666 = vmax.xlane.f32.xlu0 %v1636
  %v1667 = vpop.xlane.xlu0 %1666
  %1668 = vmax.xlane.f32.xlu0 %v1637
  %v1669 = vpop.xlane.xlu0 %1668
  %v1670 = vsub.f32 %v1622, %v1639
  %v1671 = vsub.f32 %v1623, %v1641
  %v1672 = vsub.f32 %v1624, %v1643
  %v1673 = vsub.f32 %v1625, %v1645
  %v1674 = vsub.f32 %v1626, %v1647
  %v1675 = vsub.f32 %v1627, %v1649
  %v1676 = vsub.f32 %v1628, %v1651
  %v1677 = vsub.f32 %v1629, %v1653
  %v1678 = vsub.f32 %v1630, %v1655
  %v1679 = vsub.f32 %v1631, %v1657
  %v1680 = vsub.f32 %v1632, %v1659
  %v1681 = vsub.f32 %v1633, %v1661
  %v1682 = vsub.f32 %v1634, %v1663
  %v1683 = vsub.f32 %v1635, %v1665
  %v1684 = vsub.f32 %v1636, %v1667
  %v1685 = vsub.f32 %v1637, %v1669
  %v1686 = vmul.f32 %v1670, 1.442695
  %v1687 = vpow.pop %v1686
  %v1688 = vmul.f32 %v1671, 1.442695
  %v1689 = vpow.pop %v1688
  %v1690 = vmul.f32 %v1672, 1.442695
  %v1691 = vpow.pop %v1690
  %v1692 = vmul.f32 %v1673, 1.442695
  %v1693 = vpow.pop %v1692
  %v1694 = vmul.f32 %v1674, 1.442695
  %v1695 = vpow.pop %v1694
  %v1696 = vmul.f32 %v1675, 1.442695
  %v1697 = vpow.pop %v1696
  %v1698 = vmul.f32 %v1676, 1.442695
  %v1699 = vpow.pop %v1698
  %v1700 = vmul.f32 %v1677, 1.442695
  %v1701 = vpow.pop %v1700
  %v1702 = vmul.f32 %v1678, 1.442695
  %v1703 = vpow.pop %v1702
  %v1704 = vmul.f32 %v1679, 1.442695
  %v1705 = vpow.pop %v1704
  %v1706 = vmul.f32 %v1680, 1.442695
  %v1707 = vpow.pop %v1706
  %v1708 = vmul.f32 %v1681, 1.442695
  %v1709 = vpow.pop %v1708
  %v1710 = vmul.f32 %v1682, 1.442695
  %v1711 = vpow.pop %v1710
  %v1712 = vmul.f32 %v1683, 1.442695
  %v1713 = vpow.pop %v1712
  %v1714 = vmul.f32 %v1684, 1.442695
  %v1715 = vpow.pop %v1714
  %v1716 = vmul.f32 %v1685, 1.442695
  %v1717 = vpow.pop %v1716
  %1718 = vadd.xlane.f32.xlu0 %v1687
  %v1719 = vpop.xlane.xlu0 %1718
  %1720 = vadd.xlane.f32.xlu0 %v1689
  %v1721 = vpop.xlane.xlu0 %1720
  %1722 = vadd.xlane.f32.xlu0 %v1691
  %v1723 = vpop.xlane.xlu0 %1722
  %1724 = vadd.xlane.f32.xlu0 %v1693
  %v1725 = vpop.xlane.xlu0 %1724
  %1726 = vadd.xlane.f32.xlu0 %v1695
  %v1727 = vpop.xlane.xlu0 %1726
  %1728 = vadd.xlane.f32.xlu0 %v1697
  %v1729 = vpop.xlane.xlu0 %1728
  %1730 = vadd.xlane.f32.xlu0 %v1699
  %v1731 = vpop.xlane.xlu0 %1730
  %1732 = vadd.xlane.f32.xlu0 %v1701
  %v1733 = vpop.xlane.xlu0 %1732
  %1734 = vadd.xlane.f32.xlu0 %v1703
  %v1735 = vpop.xlane.xlu0 %1734
  %1736 = vadd.xlane.f32.xlu0 %v1705
  %v1737 = vpop.xlane.xlu0 %1736
  %1738 = vadd.xlane.f32.xlu0 %v1707
  %v1739 = vpop.xlane.xlu0 %1738
  %1740 = vadd.xlane.f32.xlu0 %v1709
  %v1741 = vpop.xlane.xlu0 %1740
  %1742 = vadd.xlane.f32.xlu0 %v1711
  %v1743 = vpop.xlane.xlu0 %1742
  %1744 = vadd.xlane.f32.xlu0 %v1713
  %v1745 = vpop.xlane.xlu0 %1744
  %1746 = vadd.xlane.f32.xlu0 %v1715
  %v1747 = vpop.xlane.xlu0 %1746
  %1748 = vadd.xlane.f32.xlu0 %v1717
  %v1749 = vpop.xlane.xlu0 %1748
  %v1750 = vrcp.pop %v1719
  %v1751 = vrcp.pop %v1721
  %v1752 = vrcp.pop %v1723
  %v1753 = vrcp.pop %v1725
  %v1754 = vrcp.pop %v1727
  %v1755 = vrcp.pop %v1729
  %v1756 = vrcp.pop %v1731
  %v1757 = vrcp.pop %v1733
  %v1758 = vrcp.pop %v1735
  %v1759 = vrcp.pop %v1737
  %v1760 = vrcp.pop %v1739
  %v1761 = vrcp.pop %v1741
  %v1762 = vrcp.pop %v1743
  %v1763 = vrcp.pop %v1745
  %v1764 = vrcp.pop %v1747
  %v1765 = vrcp.pop %v1749
  %v1766 = vmul.f32 %v1687, %v1750
  %v1767 = vmul.f32 %v1689, %v1751
  %v1768 = vmul.f32 %v1691, %v1752
  %v1769 = vmul.f32 %v1693, %v1753
  %v1770 = vmul.f32 %v1695, %v1754
  %v1771 = vmul.f32 %v1697, %v1755
  %v1772 = vmul.f32 %v1699, %v1756
  %v1773 = vmul.f32 %v1701, %v1757
  %v1774 = vmul.f32 %v1703, %v1758
  %v1775 = vmul.f32 %v1705, %v1759
  %v1776 = vmul.f32 %v1707, %v1760
  %v1777 = vmul.f32 %v1709, %v1761
  %v1778 = vmul.f32 %v1711, %v1762
  %v1779 = vmul.f32 %v1713, %v1763
  %v1780 = vmul.f32 %v1715, %v1764
  %v1781 = vmul.f32 %v1717, %v1765
  %1782 = vrot.lane.b32.xlu0 %v608, 56
  %v1783 = vpop.permute.xlu0 %1782
  %1784 = vrot.lane.b32.xlu0 %v613, 56
  %v1785 = vpop.permute.xlu0 %1784
  %1786 = vrot.lane.b32.xlu0 %v618, 56
  %v1787 = vpop.permute.xlu0 %1786
  %1788 = vrot.lane.b32.xlu0 %v623, 56
  %v1789 = vpop.permute.xlu0 %1788
  %1790 = vrot.lane.b32.xlu0 %v628, 56
  %v1791 = vpop.permute.xlu0 %1790
  %1792 = vrot.lane.b32.xlu0 %v633, 56
  %v1793 = vpop.permute.xlu0 %1792
  %1794 = vrot.lane.b32.xlu0 %v638, 56
  %v1795 = vpop.permute.xlu0 %1794
  %1796 = vrot.lane.b32.xlu0 %v643, 56
  %v1797 = vpop.permute.xlu0 %1796
  %1798 = vrot.lane.b32.xlu0 %v648, 56
  %v1799 = vpop.permute.xlu0 %1798
  %1800 = vrot.lane.b32.xlu0 %v653, 56
  %v1801 = vpop.permute.xlu0 %1800
  %1802 = vrot.lane.b32.xlu0 %v658, 56
  %v1803 = vpop.permute.xlu0 %1802
  %1804 = vrot.lane.b32.xlu0 %v663, 56
  %v1805 = vpop.permute.xlu0 %1804
  %1806 = vrot.lane.b32.xlu0 %v668, 56
  %v1807 = vpop.permute.xlu0 %1806
  %1808 = vrot.lane.b32.xlu0 %v673, 56
  %v1809 = vpop.permute.xlu0 %1808
  %1810 = vrot.lane.b32.xlu0 %v678, 56
  %v1811 = vpop.permute.xlu0 %1810
  %1812 = vrot.lane.b32.xlu0 %v683, 56
  %v1813 = vpop.permute.xlu0 %1812
  %1830 = vmatprep.subr.mxu0 0.0
  %1831 = vmatpush1.msra.mxu0 %v1813
  %1832 = vmatprep.subr.mxu0 0.0
  %1833 = vmatpush1.msra.mxu0 %v1811
  %1834 = vmatprep.subr.mxu0 0.0
  %1835 = vmatpush1.msra.mxu0 %v1809
  %1836 = vmatprep.subr.mxu0 0.0
  %1837 = vmatpush1.msra.mxu0 %v1807
  %1838 = vmatprep.subr.mxu0 0.0
  %1839 = vmatpush1.msra.mxu0 %v1805
  %1840 = vmatprep.subr.mxu0 0.0
  %1841 = vmatpush1.msra.mxu0 %v1803
  %1842 = vmatprep.subr.mxu0 0.0
  %1843 = vmatpush1.msra.mxu0 %v1801
  %1844 = vmatprep.subr.mxu0 0.0
  %1845 = vmatpush1.msra.mxu0 %v1799
  %1846 = vmatprep.subr.mxu0 0.0
  %1847 = vmatpush1.msra.mxu0 %v1797
  %1848 = vmatprep.subr.mxu0 0.0
  %1849 = vmatpush1.msra.mxu0 %v1795
  %1850 = vmatprep.subr.mxu0 0.0
  %1851 = vmatpush1.msra.mxu0 %v1793
  %1852 = vmatprep.subr.mxu0 0.0
  %1853 = vmatpush1.msra.mxu0 %v1791
  %1854 = vmatprep.subr.mxu0 0.0
  %1855 = vmatpush1.msra.mxu0 %v1789
  %1856 = vmatprep.subr.mxu0 0.0
  %1857 = vmatpush1.msra.mxu0 %v1787
  %1858 = vmatprep.subr.mxu0 0.0
  %1859 = vmatpush1.msra.mxu0 %v1785
  %1860 = vmatprep.subr.mxu0 0.0
  %1861 = vmatpush1.msra.mxu0 %v1783
  %1862 = vmatprep.subr.mxu0 0.0
  %1863 = vmatpush2.msra.mxu0 0.0
  %1864 = vmatprep.subr.mxu0 0.0
  %1865 = vmatpush2.msra.mxu0 0.0
  %1866 = vmatprep.subr.mxu0 0.0
  %1867 = vmatpush2.msra.mxu0 0.0
  %1868 = vmatprep.subr.mxu0 0.0
  %1869 = vmatpush2.msra.mxu0 0.0
  %1870 = vmatprep.subr.mxu0 0.0
  %1871 = vmatpush2.msra.mxu0 0.0
  %1872 = vmatprep.subr.mxu0 0.0
  %1873 = vmatpush2.msra.mxu0 0.0
  %1874 = vmatprep.subr.mxu0 0.0
  %1875 = vmatpush2.msra.mxu0 0.0
  %1876 = vmatprep.subr.mxu0 0.0
  %1877 = vmatpush2.msra.mxu0 0.0
  %1878 = vmatprep.subr.mxu0 0.0
  %1879 = vmatpush2.msra.mxu0 0.0
  %1880 = vmatprep.subr.mxu0 0.0
  %1881 = vmatpush2.msra.mxu0 0.0
  %1882 = vmatprep.subr.mxu0 0.0
  %1883 = vmatpush2.msra.mxu0 0.0
  %1884 = vmatprep.subr.mxu0 0.0
  %1885 = vmatpush2.msra.mxu0 0.0
  %1886 = vmatprep.subr.mxu0 0.0
  %1887 = vmatpush2.msra.mxu0 0.0
  %1888 = vmatprep.subr.mxu0 0.0
  %1889 = vmatpush2.msra.mxu0 0.0
  %1890 = vmatprep.subr.mxu0 0.0
  %1891 = vmatpush2.msra.mxu0 0.0
  %1892 = vmatprep.subr.mxu0 0.0
  %1893 = vmatpush2.msra.mxu0 0.0
  %1894 = vmatprep.mubr.f32.mxu0 0.0
  %1895 = vmatmul.mubr.f32.gmra.mxu0 %v1766
  %v1896 = vpop.f32.mrf.mxu0
  %v1897 = vadd.f32 0.0, %v1896
  %v1898 = vpop.f32.mrf.mxu0
  %1899 = vmatprep.mubr.f32.mxu0 0.0
  %1900 = vmatmul.mubr.f32.gmra.mxu0 %v1767
  %v1901 = vpop.f32.mrf.mxu0
  %v1902 = vadd.f32 0.0, %v1901
  %v1903 = vpop.f32.mrf.mxu0
  %1904 = vmatprep.mubr.f32.mxu0 0.0
  %1905 = vmatmul.mubr.f32.gmra.mxu0 %v1768
  %v1906 = vpop.f32.mrf.mxu0
  %v1907 = vadd.f32 0.0, %v1906
  %v1908 = vpop.f32.mrf.mxu0
  %1909 = vmatprep.mubr.f32.mxu0 0.0
  %1910 = vmatmul.mubr.f32.gmra.mxu0 %v1769
  %v1911 = vpop.f32.mrf.mxu0
  %v1912 = vadd.f32 0.0, %v1911
  %v1913 = vpop.f32.mrf.mxu0
  %1914 = vmatprep.mubr.f32.mxu0 0.0
  %1915 = vmatmul.mubr.f32.gmra.mxu0 %v1770
  %v1916 = vpop.f32.mrf.mxu0
  %v1917 = vadd.f32 0.0, %v1916
  %v1918 = vpop.f32.mrf.mxu0
  %1919 = vmatprep.mubr.f32.mxu0 0.0
  %1920 = vmatmul.mubr.f32.gmra.mxu0 %v1771
  %v1921 = vpop.f32.mrf.mxu0
  %v1922 = vadd.f32 0.0, %v1921
  %v1923 = vpop.f32.mrf.mxu0
  %1924 = vmatprep.mubr.f32.mxu0 0.0
  %1925 = vmatmul.mubr.f32.gmra.mxu0 %v1772
  %v1926 = vpop.f32.mrf.mxu0
  %v1927 = vadd.f32 0.0, %v1926
  %v1928 = vpop.f32.mrf.mxu0
  %1929 = vmatprep.mubr.f32.mxu0 0.0
  %1930 = vmatmul.mubr.f32.gmra.mxu0 %v1773
  %v1931 = vpop.f32.mrf.mxu0
  %v1932 = vadd.f32 0.0, %v1931
  %v1933 = vpop.f32.mrf.mxu0
  %1934 = vmatprep.mubr.f32.mxu0 0.0
  %1935 = vmatmul.mubr.f32.gmra.mxu0 %v1774
  %v1936 = vpop.f32.mrf.mxu0
  %v1937 = vadd.f32 0.0, %v1936
  %v1938 = vpop.f32.mrf.mxu0
  %1939 = vmatprep.mubr.f32.mxu0 0.0
  %1940 = vmatmul.mubr.f32.gmra.mxu0 %v1775
  %v1941 = vpop.f32.mrf.mxu0
  %v1942 = vadd.f32 0.0, %v1941
  %v1943 = vpop.f32.mrf.mxu0
  %1944 = vmatprep.mubr.f32.mxu0 0.0
  %1945 = vmatmul.mubr.f32.gmra.mxu0 %v1776
  %v1946 = vpop.f32.mrf.mxu0
  %v1947 = vadd.f32 0.0, %v1946
  %v1948 = vpop.f32.mrf.mxu0
  %1949 = vmatprep.mubr.f32.mxu0 0.0
  %1950 = vmatmul.mubr.f32.gmra.mxu0 %v1777
  %v1951 = vpop.f32.mrf.mxu0
  %v1952 = vadd.f32 0.0, %v1951
  %v1953 = vpop.f32.mrf.mxu0
  %1954 = vmatprep.mubr.f32.mxu0 0.0
  %1955 = vmatmul.mubr.f32.gmra.mxu0 %v1778
  %v1956 = vpop.f32.mrf.mxu0
  %v1957 = vadd.f32 0.0, %v1956
  %v1958 = vpop.f32.mrf.mxu0
  %1959 = vmatprep.mubr.f32.mxu0 0.0
  %1960 = vmatmul.mubr.f32.gmra.mxu0 %v1779
  %v1961 = vpop.f32.mrf.mxu0
  %v1962 = vadd.f32 0.0, %v1961
  %v1963 = vpop.f32.mrf.mxu0
  %1964 = vmatprep.mubr.f32.mxu0 0.0
  %1965 = vmatmul.mubr.f32.gmra.mxu0 %v1780
  %v1966 = vpop.f32.mrf.mxu0
  %v1967 = vadd.f32 0.0, %v1966
  %v1968 = vpop.f32.mrf.mxu0
  %1969 = vmatprep.mubr.f32.mxu0 0.0
  %1970 = vmatmul.mubr.f32.gmra.mxu0 %v1781
  %v1971 = vpop.f32.mrf.mxu0
  %v1972 = vadd.f32 0.0, %v1971
  %v1973 = vpop.f32.mrf.mxu0
  %1974 = vdwg.mxu0
  %v1976 = vsel %vm754, %v1897, 0
  %v1979 = vsel %vm754, %v1902, 0
  %v1982 = vsel %vm754, %v1907, 0
  %v1985 = vsel %vm754, %v1912, 0
  %v1988 = vsel %vm754, %v1917, 0
  %v1991 = vsel %vm754, %v1922, 0
  %v1994 = vsel %vm754, %v1927, 0
  %v1997 = vsel %vm754, %v1932, 0
  %v2000 = vsel %vm754, %v1937, 0
  %v2003 = vsel %vm754, %v1942, 0
  %v2006 = vsel %vm754, %v1947, 0
  %v2009 = vsel %vm754, %v1952, 0
  %v2012 = vsel %vm754, %v1957, 0
  %v2015 = vsel %vm754, %v1962, 0
  %v2018 = vsel %vm754, %v1967, 0
  %v2021 = vsel %vm754, %v1972, 0
  %2023 = vmatprep.subr.mxu0 0.0
  %2024 = vmatpush1.msra.mxu0 0.0
  %2025 = vmatprep.subr.mxu0 0.0
  %2026 = vmatpush1.msra.mxu0 0.0
  %2027 = vmatprep.subr.mxu0 0.0
  %2028 = vmatpush1.msra.mxu0 0.0
  %2029 = vmatprep.subr.mxu0 0.0
  %2030 = vmatpush1.msra.mxu0 0.0
  %2031 = vmatprep.subr.mxu0 0.0
  %2032 = vmatpush1.msra.mxu0 0.0
  %2033 = vmatprep.subr.mxu0 0.0
  %2034 = vmatpush1.msra.mxu0 0.0
  %2035 = vmatprep.subr.mxu0 0.0
  %2036 = vmatpush1.msra.mxu0 0.0
  %2037 = vmatprep.subr.mxu0 0.0
  %2038 = vmatpush1.msra.mxu0 0.0
  %2039 = vmatprep.subr.mxu0 0.0
  %2040 = vmatpush1.msra.mxu0 0.0
  %2041 = vmatprep.subr.mxu0 0.0
  %2042 = vmatpush1.msra.mxu0 0.0
  %2043 = vmatprep.subr.mxu0 0.0
  %2044 = vmatpush1.msra.mxu0 0.0
  %2045 = vmatprep.subr.mxu0 0.0
  %2046 = vmatpush1.msra.mxu0 0.0
  %2047 = vmatprep.subr.mxu0 0.0
  %2048 = vmatpush1.msra.mxu0 0.0
  %2049 = vmatprep.subr.mxu0 0.0
  %2050 = vmatpush1.msra.mxu0 0.0
  %2051 = vmatprep.subr.mxu0 0.0
  %2052 = vmatpush1.msra.mxu0 0.0
  %2053 = vmatprep.subr.mxu0 0.0
  %2054 = vmatpush1.msra.mxu0 %v703
  %2055 = vmatprep.subr.mxu0 0.0
  %2056 = vmatpush2.msra.mxu0 0.0
  %2057 = vmatprep.subr.mxu0 0.0
  %2058 = vmatpush2.msra.mxu0 0.0
  %2059 = vmatprep.subr.mxu0 0.0
  %2060 = vmatpush2.msra.mxu0 0.0
  %2061 = vmatprep.subr.mxu0 0.0
  %2062 = vmatpush2.msra.mxu0 0.0
  %2063 = vmatprep.subr.mxu0 0.0
  %2064 = vmatpush2.msra.mxu0 0.0
  %2065 = vmatprep.subr.mxu0 0.0
  %2066 = vmatpush2.msra.mxu0 0.0
  %2067 = vmatprep.subr.mxu0 0.0
  %2068 = vmatpush2.msra.mxu0 0.0
  %2069 = vmatprep.subr.mxu0 0.0
  %2070 = vmatpush2.msra.mxu0 0.0
  %2071 = vmatprep.subr.mxu0 0.0
  %2072 = vmatpush2.msra.mxu0 0.0
  %2073 = vmatprep.subr.mxu0 0.0
  %2074 = vmatpush2.msra.mxu0 0.0
  %2075 = vmatprep.subr.mxu0 0.0
  %2076 = vmatpush2.msra.mxu0 0.0
  %2077 = vmatprep.subr.mxu0 0.0
  %2078 = vmatpush2.msra.mxu0 0.0
  %2079 = vmatprep.subr.mxu0 0.0
  %2080 = vmatpush2.msra.mxu0 0.0
  %2081 = vmatprep.subr.mxu0 0.0
  %2082 = vmatpush2.msra.mxu0 0.0
  %2083 = vmatprep.subr.mxu0 0.0
  %2084 = vmatpush2.msra.mxu0 0.0
  %2085 = vmatprep.subr.mxu0 0.0
  %2086 = vmatpush2.msra.mxu0 0.0
  %2087 = vmatprep.mubr.f32.mxu0 0.0
  %2088 = vmatmul.mubr.f32.gmra.mxu0 %v1976
  %v2089 = vpop.f32.mrf.mxu0
  %v2090 = vadd.f32 0.0, %v2089
  %v2091 = vpop.f32.mrf.mxu0
  %2092 = vmatprep.mubr.f32.mxu0 0.0
  %2093 = vmatmul.mubr.f32.gmra.mxu0 %v1979
  %v2094 = vpop.f32.mrf.mxu0
  %v2095 = vadd.f32 0.0, %v2094
  %v2096 = vpop.f32.mrf.mxu0
  %2097 = vmatprep.mubr.f32.mxu0 0.0
  %2098 = vmatmul.mubr.f32.gmra.mxu0 %v1982
  %v2099 = vpop.f32.mrf.mxu0
  %v2100 = vadd.f32 0.0, %v2099
  %v2101 = vpop.f32.mrf.mxu0
  %2102 = vmatprep.mubr.f32.mxu0 0.0
  %2103 = vmatmul.mubr.f32.gmra.mxu0 %v1985
  %v2104 = vpop.f32.mrf.mxu0
  %v2105 = vadd.f32 0.0, %v2104
  %v2106 = vpop.f32.mrf.mxu0
  %2107 = vmatprep.mubr.f32.mxu0 0.0
  %2108 = vmatmul.mubr.f32.gmra.mxu0 %v1988
  %v2109 = vpop.f32.mrf.mxu0
  %v2110 = vadd.f32 0.0, %v2109
  %v2111 = vpop.f32.mrf.mxu0
  %2112 = vmatprep.mubr.f32.mxu0 0.0
  %2113 = vmatmul.mubr.f32.gmra.mxu0 %v1991
  %v2114 = vpop.f32.mrf.mxu0
  %v2115 = vadd.f32 0.0, %v2114
  %v2116 = vpop.f32.mrf.mxu0
  %2117 = vmatprep.mubr.f32.mxu0 0.0
  %2118 = vmatmul.mubr.f32.gmra.mxu0 %v1994
  %v2119 = vpop.f32.mrf.mxu0
  %v2120 = vadd.f32 0.0, %v2119
  %v2121 = vpop.f32.mrf.mxu0
  %2122 = vmatprep.mubr.f32.mxu0 0.0
  %2123 = vmatmul.mubr.f32.gmra.mxu0 %v1997
  %v2124 = vpop.f32.mrf.mxu0
  %v2125 = vadd.f32 0.0, %v2124
  %v2126 = vpop.f32.mrf.mxu0
  %2127 = vmatprep.mubr.f32.mxu0 0.0
  %2128 = vmatmul.mubr.f32.gmra.mxu0 %v2000
  %v2129 = vpop.f32.mrf.mxu0
  %v2130 = vadd.f32 0.0, %v2129
  %v2131 = vpop.f32.mrf.mxu0
  %2132 = vmatprep.mubr.f32.mxu0 0.0
  %2133 = vmatmul.mubr.f32.gmra.mxu0 %v2003
  %v2134 = vpop.f32.mrf.mxu0
  %v2135 = vadd.f32 0.0, %v2134
  %v2136 = vpop.f32.mrf.mxu0
  %2137 = vmatprep.mubr.f32.mxu0 0.0
  %2138 = vmatmul.mubr.f32.gmra.mxu0 %v2006
  %v2139 = vpop.f32.mrf.mxu0
  %v2140 = vadd.f32 0.0, %v2139
  %v2141 = vpop.f32.mrf.mxu0
  %2142 = vmatprep.mubr.f32.mxu0 0.0
  %2143 = vmatmul.mubr.f32.gmra.mxu0 %v2009
  %v2144 = vpop.f32.mrf.mxu0
  %v2145 = vadd.f32 0.0, %v2144
  %v2146 = vpop.f32.mrf.mxu0
  %2147 = vmatprep.mubr.f32.mxu0 0.0
  %2148 = vmatmul.mubr.f32.gmra.mxu0 %v2012
  %v2149 = vpop.f32.mrf.mxu0
  %v2150 = vadd.f32 0.0, %v2149
  %v2151 = vpop.f32.mrf.mxu0
  %2152 = vmatprep.mubr.f32.mxu0 0.0
  %2153 = vmatmul.mubr.f32.gmra.mxu0 %v2015
  %v2154 = vpop.f32.mrf.mxu0
  %v2155 = vadd.f32 0.0, %v2154
  %v2156 = vpop.f32.mrf.mxu0
  %2157 = vmatprep.mubr.f32.mxu0 0.0
  %2158 = vmatmul.mubr.f32.gmra.mxu0 %v2018
  %v2159 = vpop.f32.mrf.mxu0
  %v2160 = vadd.f32 0.0, %v2159
  %v2161 = vpop.f32.mrf.mxu0
  %2162 = vmatprep.mubr.f32.mxu0 0.0
  %2163 = vmatmul.mubr.f32.gmra.mxu0 %v2021
  %v2164 = vpop.f32.mrf.mxu0
  %v2165 = vadd.f32 0.0, %v2164
  %v2166 = vpop.f32.mrf.mxu0
  %2167 = vdwg.mxu0
  %v2169 = vsel %vm754, %v1255, 0
  %v2172 = vsel %vm754, %v1260, 0
  %v2175 = vsel %vm754, %v1265, 0
  %v2178 = vsel %vm754, %v1270, 0
  %v2181 = vsel %vm754, %v1275, 0
  %v2184 = vsel %vm754, %v1280, 0
  %v2187 = vsel %vm754, %v1285, 0
  %v2190 = vsel %vm754, %v1290, 0
  %v2193 = vsel %vm754, %v1295, 0
  %v2196 = vsel %vm754, %v1300, 0
  %v2199 = vsel %vm754, %v1305, 0
  %v2202 = vsel %vm754, %v1310, 0
  %v2205 = vsel %vm754, %v1315, 0
  %v2208 = vsel %vm754, %v1320, 0
  %v2211 = vsel %vm754, %v1325, 0
  %v2214 = vsel %vm754, %v1330, 0
  %2216 = vmatprep.subr.mxu0 0.0
  %2217 = vmatpush1.msra.mxu0 0.0
  %2218 = vmatprep.subr.mxu0 0.0
  %2219 = vmatpush1.msra.mxu0 0.0
  %2220 = vmatprep.subr.mxu0 0.0
  %2221 = vmatpush1.msra.mxu0 0.0
  %2222 = vmatprep.subr.mxu0 0.0
  %2223 = vmatpush1.msra.mxu0 0.0
  %2224 = vmatprep.subr.mxu0 0.0
  %2225 = vmatpush1.msra.mxu0 0.0
  %2226 = vmatprep.subr.mxu0 0.0
  %2227 = vmatpush1.msra.mxu0 0.0
  %2228 = vmatprep.subr.mxu0 0.0
  %2229 = vmatpush1.msra.mxu0 0.0
  %2230 = vmatprep.subr.mxu0 0.0
  %2231 = vmatpush1.msra.mxu0 0.0
  %2232 = vmatprep.subr.mxu0 0.0
  %2233 = vmatpush1.msra.mxu0 0.0
  %2234 = vmatprep.subr.mxu0 0.0
  %2235 = vmatpush1.msra.mxu0 0.0
  %2236 = vmatprep.subr.mxu0 0.0
  %2237 = vmatpush1.msra.mxu0 0.0
  %2238 = vmatprep.subr.mxu0 0.0
  %2239 = vmatpush1.msra.mxu0 0.0
  %2240 = vmatprep.subr.mxu0 0.0
  %2241 = vmatpush1.msra.mxu0 0.0
  %2242 = vmatprep.subr.mxu0 0.0
  %2243 = vmatpush1.msra.mxu0 0.0
  %2244 = vmatprep.subr.mxu0 0.0
  %2245 = vmatpush1.msra.mxu0 0.0
  %2246 = vmatprep.subr.mxu0 0.0
  %2247 = vmatpush1.msra.mxu0 %v702
  %2248 = vmatprep.subr.mxu0 0.0
  %2249 = vmatpush2.msra.mxu0 0.0
  %2250 = vmatprep.subr.mxu0 0.0
  %2251 = vmatpush2.msra.mxu0 0.0
  %2252 = vmatprep.subr.mxu0 0.0
  %2253 = vmatpush2.msra.mxu0 0.0
  %2254 = vmatprep.subr.mxu0 0.0
  %2255 = vmatpush2.msra.mxu0 0.0
  %2256 = vmatprep.subr.mxu0 0.0
  %2257 = vmatpush2.msra.mxu0 0.0
  %2258 = vmatprep.subr.mxu0 0.0
  %2259 = vmatpush2.msra.mxu0 0.0
  %2260 = vmatprep.subr.mxu0 0.0
  %2261 = vmatpush2.msra.mxu0 0.0
  %2262 = vmatprep.subr.mxu0 0.0
  %2263 = vmatpush2.msra.mxu0 0.0
  %2264 = vmatprep.subr.mxu0 0.0
  %2265 = vmatpush2.msra.mxu0 0.0
  %2266 = vmatprep.subr.mxu0 0.0
  %2267 = vmatpush2.msra.mxu0 0.0
  %2268 = vmatprep.subr.mxu0 0.0
  %2269 = vmatpush2.msra.mxu0 0.0
  %2270 = vmatprep.subr.mxu0 0.0
  %2271 = vmatpush2.msra.mxu0 0.0
  %2272 = vmatprep.subr.mxu0 0.0
  %2273 = vmatpush2.msra.mxu0 0.0
  %2274 = vmatprep.subr.mxu0 0.0
  %2275 = vmatpush2.msra.mxu0 0.0
  %2276 = vmatprep.subr.mxu0 0.0
  %2277 = vmatpush2.msra.mxu0 0.0
  %2278 = vmatprep.subr.mxu0 0.0
  %2279 = vmatpush2.msra.mxu0 0.0
  %2280 = vmatprep.mubr.f32.mxu0 0.0
  %2281 = vmatmul.mubr.f32.gmra.mxu0 %v2169
  %v2282 = vpop.f32.mrf.mxu0
  %v2283 = vadd.f32 %v2090, %v2282
  %v2284 = vpop.f32.mrf.mxu0
  %2285 = vmatprep.mubr.f32.mxu0 0.0
  %2286 = vmatmul.mubr.f32.gmra.mxu0 %v2172
  %v2287 = vpop.f32.mrf.mxu0
  %v2288 = vadd.f32 %v2095, %v2287
  %v2289 = vpop.f32.mrf.mxu0
  %2290 = vmatprep.mubr.f32.mxu0 0.0
  %2291 = vmatmul.mubr.f32.gmra.mxu0 %v2175
  %v2292 = vpop.f32.mrf.mxu0
  %v2293 = vadd.f32 %v2100, %v2292
  %v2294 = vpop.f32.mrf.mxu0
  %2295 = vmatprep.mubr.f32.mxu0 0.0
  %2296 = vmatmul.mubr.f32.gmra.mxu0 %v2178
  %v2297 = vpop.f32.mrf.mxu0
  %v2298 = vadd.f32 %v2105, %v2297
  %v2299 = vpop.f32.mrf.mxu0
  %2300 = vmatprep.mubr.f32.mxu0 0.0
  %2301 = vmatmul.mubr.f32.gmra.mxu0 %v2181
  %v2302 = vpop.f32.mrf.mxu0
  %v2303 = vadd.f32 %v2110, %v2302
  %v2304 = vpop.f32.mrf.mxu0
  %2305 = vmatprep.mubr.f32.mxu0 0.0
  %2306 = vmatmul.mubr.f32.gmra.mxu0 %v2184
  %v2307 = vpop.f32.mrf.mxu0
  %v2308 = vadd.f32 %v2115, %v2307
  %v2309 = vpop.f32.mrf.mxu0
  %2310 = vmatprep.mubr.f32.mxu0 0.0
  %2311 = vmatmul.mubr.f32.gmra.mxu0 %v2187
  %v2312 = vpop.f32.mrf.mxu0
  %v2313 = vadd.f32 %v2120, %v2312
  %v2314 = vpop.f32.mrf.mxu0
  %2315 = vmatprep.mubr.f32.mxu0 0.0
  %2316 = vmatmul.mubr.f32.gmra.mxu0 %v2190
  %v2317 = vpop.f32.mrf.mxu0
  %v2318 = vadd.f32 %v2125, %v2317
  %v2319 = vpop.f32.mrf.mxu0
  %2320 = vmatprep.mubr.f32.mxu0 0.0
  %2321 = vmatmul.mubr.f32.gmra.mxu0 %v2193
  %v2322 = vpop.f32.mrf.mxu0
  %v2323 = vadd.f32 %v2130, %v2322
  %v2324 = vpop.f32.mrf.mxu0
  %2325 = vmatprep.mubr.f32.mxu0 0.0
  %2326 = vmatmul.mubr.f32.gmra.mxu0 %v2196
  %v2327 = vpop.f32.mrf.mxu0
  %v2328 = vadd.f32 %v2135, %v2327
  %v2329 = vpop.f32.mrf.mxu0
  %2330 = vmatprep.mubr.f32.mxu0 0.0
  %2331 = vmatmul.mubr.f32.gmra.mxu0 %v2199
  %v2332 = vpop.f32.mrf.mxu0
  %v2333 = vadd.f32 %v2140, %v2332
  %v2334 = vpop.f32.mrf.mxu0
  %2335 = vmatprep.mubr.f32.mxu0 0.0
  %2336 = vmatmul.mubr.f32.gmra.mxu0 %v2202
  %v2337 = vpop.f32.mrf.mxu0
  %v2338 = vadd.f32 %v2145, %v2337
  %v2339 = vpop.f32.mrf.mxu0
  %2340 = vmatprep.mubr.f32.mxu0 0.0
  %2341 = vmatmul.mubr.f32.gmra.mxu0 %v2205
  %v2342 = vpop.f32.mrf.mxu0
  %v2343 = vadd.f32 %v2150, %v2342
  %v2344 = vpop.f32.mrf.mxu0
  %2345 = vmatprep.mubr.f32.mxu0 0.0
  %2346 = vmatmul.mubr.f32.gmra.mxu0 %v2208
  %v2347 = vpop.f32.mrf.mxu0
  %v2348 = vadd.f32 %v2155, %v2347
  %v2349 = vpop.f32.mrf.mxu0
  %2350 = vmatprep.mubr.f32.mxu0 0.0
  %2351 = vmatmul.mubr.f32.gmra.mxu0 %v2211
  %v2352 = vpop.f32.mrf.mxu0
  %v2353 = vadd.f32 %v2160, %v2352
  %v2354 = vpop.f32.mrf.mxu0
  %2355 = vmatprep.mubr.f32.mxu0 0.0
  %2356 = vmatmul.mubr.f32.gmra.mxu0 %v2214
  %v2357 = vpop.f32.mrf.mxu0
  %v2358 = vadd.f32 %v2165, %v2357
  %v2359 = vpop.f32.mrf.mxu0
  %2360 = vdwg.mxu0
  %2361 = vrot.lane.b32.xlu0 %v608, 112
  %v2362 = vpop.permute.xlu0 %2361
  %2363 = vrot.lane.b32.xlu0 %v613, 112
  %v2364 = vpop.permute.xlu0 %2363
  %2365 = vrot.lane.b32.xlu0 %v618, 112
  %v2366 = vpop.permute.xlu0 %2365
  %2367 = vrot.lane.b32.xlu0 %v623, 112
  %v2368 = vpop.permute.xlu0 %2367
  %2369 = vrot.lane.b32.xlu0 %v628, 112
  %v2370 = vpop.permute.xlu0 %2369
  %2371 = vrot.lane.b32.xlu0 %v633, 112
  %v2372 = vpop.permute.xlu0 %2371
  %2373 = vrot.lane.b32.xlu0 %v638, 112
  %v2374 = vpop.permute.xlu0 %2373
  %2375 = vrot.lane.b32.xlu0 %v643, 112
  %v2376 = vpop.permute.xlu0 %2375
  %2377 = vrot.lane.b32.xlu0 %v648, 112
  %v2378 = vpop.permute.xlu0 %2377
  %2379 = vrot.lane.b32.xlu0 %v653, 112
  %v2380 = vpop.permute.xlu0 %2379
  %2381 = vrot.lane.b32.xlu0 %v658, 112
  %v2382 = vpop.permute.xlu0 %2381
  %2383 = vrot.lane.b32.xlu0 %v663, 112
  %v2384 = vpop.permute.xlu0 %2383
  %2385 = vrot.lane.b32.xlu0 %v668, 112
  %v2386 = vpop.permute.xlu0 %2385
  %2387 = vrot.lane.b32.xlu0 %v673, 112
  %v2388 = vpop.permute.xlu0 %2387
  %2389 = vrot.lane.b32.xlu0 %v678, 112
  %v2390 = vpop.permute.xlu0 %2389
  %2391 = vrot.lane.b32.xlu0 %v683, 112
  %v2392 = vpop.permute.xlu0 %2391
  %2393 = vrot.lane.b32.xlu0 %v608, 80
  %v2394 = vpop.permute.xlu0 %2393
  %2395 = vrot.lane.b32.xlu0 %v613, 80
  %v2396 = vpop.permute.xlu0 %2395
  %2397 = vrot.lane.b32.xlu0 %v618, 80
  %v2398 = vpop.permute.xlu0 %2397
  %2399 = vrot.lane.b32.xlu0 %v623, 80
  %v2400 = vpop.permute.xlu0 %2399
  %2401 = vrot.lane.b32.xlu0 %v628, 80
  %v2402 = vpop.permute.xlu0 %2401
  %2403 = vrot.lane.b32.xlu0 %v633, 80
  %v2404 = vpop.permute.xlu0 %2403
  %2405 = vrot.lane.b32.xlu0 %v638, 80
  %v2406 = vpop.permute.xlu0 %2405
  %2407 = vrot.lane.b32.xlu0 %v643, 80
  %v2408 = vpop.permute.xlu0 %2407
  %2409 = vrot.lane.b32.xlu0 %v648, 80
  %v2410 = vpop.permute.xlu0 %2409
  %2411 = vrot.lane.b32.xlu0 %v653, 80
  %v2412 = vpop.permute.xlu0 %2411
  %2413 = vrot.lane.b32.xlu0 %v658, 80
  %v2414 = vpop.permute.xlu0 %2413
  %2415 = vrot.lane.b32.xlu0 %v663, 80
  %v2416 = vpop.permute.xlu0 %2415
  %2417 = vrot.lane.b32.xlu0 %v668, 80
  %v2418 = vpop.permute.xlu0 %2417
  %2419 = vrot.lane.b32.xlu0 %v673, 80
  %v2420 = vpop.permute.xlu0 %2419
  %2421 = vrot.lane.b32.xlu0 %v678, 80
  %v2422 = vpop.permute.xlu0 %2421
  %2423 = vrot.lane.b32.xlu0 %v683, 80
  %v2424 = vpop.permute.xlu0 %2423
  %v2425 = vsel %vm754, %v2362, 0
  %v2427 = vsel %vm754, %v2364, 0
  %v2429 = vsel %vm754, %v2366, 0
  %v2431 = vsel %vm754, %v2368, 0
  %v2433 = vsel %vm754, %v2370, 0
  %v2435 = vsel %vm754, %v2372, 0
  %v2437 = vsel %vm754, %v2374, 0
  %v2439 = vsel %vm754, %v2376, 0
  %v2441 = vsel %vm754, %v2378, 0
  %v2443 = vsel %vm754, %v2380, 0
  %v2445 = vsel %vm754, %v2382, 0
  %v2447 = vsel %vm754, %v2384, 0
  %v2449 = vsel %vm754, %v2386, 0
  %v2451 = vsel %vm754, %v2388, 0
  %v2453 = vsel %vm754, %v2390, 0
  %v2455 = vsel %vm754, %v2392, 0
  %v2457 = vsel %vm754, %v2394, 0
  %v2459 = vsel %vm754, %v2396, 0
  %v2461 = vsel %vm754, %v2398, 0
  %v2463 = vsel %vm754, %v2400, 0
  %v2465 = vsel %vm754, %v2402, 0
  %v2467 = vsel %vm754, %v2404, 0
  %v2469 = vsel %vm754, %v2406, 0
  %v2471 = vsel %vm754, %v2408, 0
  %v2473 = vsel %vm754, %v2410, 0
  %v2475 = vsel %vm754, %v2412, 0
  %v2477 = vsel %vm754, %v2414, 0
  %v2479 = vsel %vm754, %v2416, 0
  %v2481 = vsel %vm754, %v2418, 0
  %v2483 = vsel %vm754, %v2420, 0
  %v2485 = vsel %vm754, %v2422, 0
  %v2487 = vsel %vm754, %v2424, 0
  %2489 = vmatprep.subr.mxu0 0.0
  %2490 = vmatpush1.xpose.msra.mxu0 %v2487
  %2491 = vmatprep.subr.mxu0 0.0
  %2492 = vmatpush1.xpose.msra.mxu0 %v2485
  %2493 = vmatprep.subr.mxu0 0.0
  %2494 = vmatpush1.xpose.msra.mxu0 %v2483
  %2495 = vmatprep.subr.mxu0 0.0
  %2496 = vmatpush1.xpose.msra.mxu0 %v2481
  %2497 = vmatprep.subr.mxu0 0.0
  %2498 = vmatpush1.xpose.msra.mxu0 %v2479
  %2499 = vmatprep.subr.mxu0 0.0
  %2500 = vmatpush1.xpose.msra.mxu0 %v2477
  %2501 = vmatprep.subr.mxu0 0.0
  %2502 = vmatpush1.xpose.msra.mxu0 %v2475
  %2503 = vmatprep.subr.mxu0 0.0
  %2504 = vmatpush1.xpose.msra.mxu0 %v2473
  %2505 = vmatprep.subr.mxu0 0.0
  %2506 = vmatpush1.xpose.msra.mxu0 %v2471
  %2507 = vmatprep.subr.mxu0 0.0
  %2508 = vmatpush1.xpose.msra.mxu0 %v2469
  %2509 = vmatprep.subr.mxu0 0.0
  %2510 = vmatpush1.xpose.msra.mxu0 %v2467
  %2511 = vmatprep.subr.mxu0 0.0
  %2512 = vmatpush1.xpose.msra.mxu0 %v2465
  %2513 = vmatprep.subr.mxu0 0.0
  %2514 = vmatpush1.xpose.msra.mxu0 %v2463
  %2515 = vmatprep.subr.mxu0 0.0
  %2516 = vmatpush1.xpose.msra.mxu0 %v2461
  %2517 = vmatprep.subr.mxu0 0.0
  %2518 = vmatpush1.xpose.msra.mxu0 %v2459
  %2519 = vmatprep.subr.mxu0 0.0
  %2520 = vmatpush1.xpose.msra.mxu0 %v2457
  %2521 = vmatprep.subr.mxu0 0.0
  %2522 = vmatpush2.xpose.msra.mxu0 0.0
  %2523 = vmatprep.subr.mxu0 0.0
  %2524 = vmatpush2.xpose.msra.mxu0 0.0
  %2525 = vmatprep.subr.mxu0 0.0
  %2526 = vmatpush2.xpose.msra.mxu0 0.0
  %2527 = vmatprep.subr.mxu0 0.0
  %2528 = vmatpush2.xpose.msra.mxu0 0.0
  %2529 = vmatprep.subr.mxu0 0.0
  %2530 = vmatpush2.xpose.msra.mxu0 0.0
  %2531 = vmatprep.subr.mxu0 0.0
  %2532 = vmatpush2.xpose.msra.mxu0 0.0
  %2533 = vmatprep.subr.mxu0 0.0
  %2534 = vmatpush2.xpose.msra.mxu0 0.0
  %2535 = vmatprep.subr.mxu0 0.0
  %2536 = vmatpush2.xpose.msra.mxu0 0.0
  %2537 = vmatprep.subr.mxu0 0.0
  %2538 = vmatpush2.xpose.msra.mxu0 0.0
  %2539 = vmatprep.subr.mxu0 0.0
  %2540 = vmatpush2.xpose.msra.mxu0 0.0
  %2541 = vmatprep.subr.mxu0 0.0
  %2542 = vmatpush2.xpose.msra.mxu0 0.0
  %2543 = vmatprep.subr.mxu0 0.0
  %2544 = vmatpush2.xpose.msra.mxu0 0.0
  %2545 = vmatprep.subr.mxu0 0.0
  %2546 = vmatpush2.xpose.msra.mxu0 0.0
  %2547 = vmatprep.subr.mxu0 0.0
  %2548 = vmatpush2.xpose.msra.mxu0 0.0
  %2549 = vmatprep.subr.mxu0 0.0
  %2550 = vmatpush2.xpose.msra.mxu0 0.0
  %2551 = vmatprep.subr.mxu0 0.0
  %2552 = vmatpush2.xpose.msra.mxu0 0.0
  %2553 = vmatprep.mubr.f32.mxu0 0.0
  %2554 = vmatmul.mubr.f32.gmra.mxu0 %v2425
  %v2555 = vpop.f32.mrf.mxu0
  %v2556 = vadd.f32 0.0, %v2555
  %v2557 = vpop.f32.mrf.mxu0
  %2558 = vmatprep.mubr.f32.mxu0 0.0
  %2559 = vmatmul.mubr.f32.gmra.mxu0 %v2427
  %v2560 = vpop.f32.mrf.mxu0
  %v2561 = vadd.f32 0.0, %v2560
  %v2562 = vpop.f32.mrf.mxu0
  %2563 = vmatprep.mubr.f32.mxu0 0.0
  %2564 = vmatmul.mubr.f32.gmra.mxu0 %v2429
  %v2565 = vpop.f32.mrf.mxu0
  %v2566 = vadd.f32 0.0, %v2565
  %v2567 = vpop.f32.mrf.mxu0
  %2568 = vmatprep.mubr.f32.mxu0 0.0
  %2569 = vmatmul.mubr.f32.gmra.mxu0 %v2431
  %v2570 = vpop.f32.mrf.mxu0
  %v2571 = vadd.f32 0.0, %v2570
  %v2572 = vpop.f32.mrf.mxu0
  %2573 = vmatprep.mubr.f32.mxu0 0.0
  %2574 = vmatmul.mubr.f32.gmra.mxu0 %v2433
  %v2575 = vpop.f32.mrf.mxu0
  %v2576 = vadd.f32 0.0, %v2575
  %v2577 = vpop.f32.mrf.mxu0
  %2578 = vmatprep.mubr.f32.mxu0 0.0
  %2579 = vmatmul.mubr.f32.gmra.mxu0 %v2435
  %v2580 = vpop.f32.mrf.mxu0
  %v2581 = vadd.f32 0.0, %v2580
  %v2582 = vpop.f32.mrf.mxu0
  %2583 = vmatprep.mubr.f32.mxu0 0.0
  %2584 = vmatmul.mubr.f32.gmra.mxu0 %v2437
  %v2585 = vpop.f32.mrf.mxu0
  %v2586 = vadd.f32 0.0, %v2585
  %v2587 = vpop.f32.mrf.mxu0
  %2588 = vmatprep.mubr.f32.mxu0 0.0
  %2589 = vmatmul.mubr.f32.gmra.mxu0 %v2439
  %v2590 = vpop.f32.mrf.mxu0
  %v2591 = vadd.f32 0.0, %v2590
  %v2592 = vpop.f32.mrf.mxu0
  %2593 = vmatprep.mubr.f32.mxu0 0.0
  %2594 = vmatmul.mubr.f32.gmra.mxu0 %v2441
  %v2595 = vpop.f32.mrf.mxu0
  %v2596 = vadd.f32 0.0, %v2595
  %v2597 = vpop.f32.mrf.mxu0
  %2598 = vmatprep.mubr.f32.mxu0 0.0
  %2599 = vmatmul.mubr.f32.gmra.mxu0 %v2443
  %v2600 = vpop.f32.mrf.mxu0
  %v2601 = vadd.f32 0.0, %v2600
  %v2602 = vpop.f32.mrf.mxu0
  %2603 = vmatprep.mubr.f32.mxu0 0.0
  %2604 = vmatmul.mubr.f32.gmra.mxu0 %v2445
  %v2605 = vpop.f32.mrf.mxu0
  %v2606 = vadd.f32 0.0, %v2605
  %v2607 = vpop.f32.mrf.mxu0
  %2608 = vmatprep.mubr.f32.mxu0 0.0
  %2609 = vmatmul.mubr.f32.gmra.mxu0 %v2447
  %v2610 = vpop.f32.mrf.mxu0
  %v2611 = vadd.f32 0.0, %v2610
  %v2612 = vpop.f32.mrf.mxu0
  %2613 = vmatprep.mubr.f32.mxu0 0.0
  %2614 = vmatmul.mubr.f32.gmra.mxu0 %v2449
  %v2615 = vpop.f32.mrf.mxu0
  %v2616 = vadd.f32 0.0, %v2615
  %v2617 = vpop.f32.mrf.mxu0
  %2618 = vmatprep.mubr.f32.mxu0 0.0
  %2619 = vmatmul.mubr.f32.gmra.mxu0 %v2451
  %v2620 = vpop.f32.mrf.mxu0
  %v2621 = vadd.f32 0.0, %v2620
  %v2622 = vpop.f32.mrf.mxu0
  %2623 = vmatprep.mubr.f32.mxu0 0.0
  %2624 = vmatmul.mubr.f32.gmra.mxu0 %v2453
  %v2625 = vpop.f32.mrf.mxu0
  %v2626 = vadd.f32 0.0, %v2625
  %v2627 = vpop.f32.mrf.mxu0
  %2628 = vmatprep.mubr.f32.mxu0 0.0
  %2629 = vmatmul.mubr.f32.gmra.mxu0 %v2455
  %v2630 = vpop.f32.mrf.mxu0
  %v2631 = vadd.f32 0.0, %v2630
  %v2632 = vpop.f32.mrf.mxu0
  %2633 = vdwg.mxu0
  %v2634 = vmul.f32 %v2556, 0.35355338
  %v2635 = vmul.f32 %v2561, 0.35355338
  %v2636 = vmul.f32 %v2566, 0.35355338
  %v2637 = vmul.f32 %v2571, 0.35355338
  %v2638 = vmul.f32 %v2576, 0.35355338
  %v2639 = vmul.f32 %v2581, 0.35355338
  %v2640 = vmul.f32 %v2586, 0.35355338
  %v2641 = vmul.f32 %v2591, 0.35355338
  %v2642 = vmul.f32 %v2596, 0.35355338
  %v2643 = vmul.f32 %v2601, 0.35355338
  %v2644 = vmul.f32 %v2606, 0.35355338
  %v2645 = vmul.f32 %v2611, 0.35355338
  %v2646 = vmul.f32 %v2616, 0.35355338
  %v2647 = vmul.f32 %v2621, 0.35355338
  %v2648 = vmul.f32 %v2626, 0.35355338
  %v2649 = vmul.f32 %v2631, 0.35355338
  %v2650 = vadd.f32 %v2634, %v686
  %v2651 = vadd.f32 %v2635, %v687
  %v2652 = vadd.f32 %v2636, %v688
  %v2653 = vadd.f32 %v2637, %v689
  %v2654 = vadd.f32 %v2638, %v690
  %v2655 = vadd.f32 %v2639, %v691
  %v2656 = vadd.f32 %v2640, %v692
  %v2657 = vadd.f32 %v2641, %v693
  %v2658 = vadd.f32 %v2642, %v694
  %v2659 = vadd.f32 %v2643, %v695
  %v2660 = vadd.f32 %v2644, %v696
  %v2661 = vadd.f32 %v2645, %v697
  %v2662 = vadd.f32 %v2646, %v698
  %v2663 = vadd.f32 %v2647, %v699
  %v2664 = vadd.f32 %v2648, %v700
  %v2665 = vadd.f32 %v2649, %v701
  %2666 = vmax.xlane.f32.xlu0 %v2650
  %v2667 = vpop.xlane.xlu0 %2666
  %2668 = vmax.xlane.f32.xlu0 %v2651
  %v2669 = vpop.xlane.xlu0 %2668
  %2670 = vmax.xlane.f32.xlu0 %v2652
  %v2671 = vpop.xlane.xlu0 %2670
  %2672 = vmax.xlane.f32.xlu0 %v2653
  %v2673 = vpop.xlane.xlu0 %2672
  %2674 = vmax.xlane.f32.xlu0 %v2654
  %v2675 = vpop.xlane.xlu0 %2674
  %2676 = vmax.xlane.f32.xlu0 %v2655
  %v2677 = vpop.xlane.xlu0 %2676
  %2678 = vmax.xlane.f32.xlu0 %v2656
  %v2679 = vpop.xlane.xlu0 %2678
  %2680 = vmax.xlane.f32.xlu0 %v2657
  %v2681 = vpop.xlane.xlu0 %2680
  %2682 = vmax.xlane.f32.xlu0 %v2658
  %v2683 = vpop.xlane.xlu0 %2682
  %2684 = vmax.xlane.f32.xlu0 %v2659
  %v2685 = vpop.xlane.xlu0 %2684
  %2686 = vmax.xlane.f32.xlu0 %v2660
  %v2687 = vpop.xlane.xlu0 %2686
  %2688 = vmax.xlane.f32.xlu0 %v2661
  %v2689 = vpop.xlane.xlu0 %2688
  %2690 = vmax.xlane.f32.xlu0 %v2662
  %v2691 = vpop.xlane.xlu0 %2690
  %2692 = vmax.xlane.f32.xlu0 %v2663
  %v2693 = vpop.xlane.xlu0 %2692
  %2694 = vmax.xlane.f32.xlu0 %v2664
  %v2695 = vpop.xlane.xlu0 %2694
  %2696 = vmax.xlane.f32.xlu0 %v2665
  %v2697 = vpop.xlane.xlu0 %2696
  %v2698 = vsub.f32 %v2650, %v2667
  %v2699 = vsub.f32 %v2651, %v2669
  %v2700 = vsub.f32 %v2652, %v2671
  %v2701 = vsub.f32 %v2653, %v2673
  %v2702 = vsub.f32 %v2654, %v2675
  %v2703 = vsub.f32 %v2655, %v2677
  %v2704 = vsub.f32 %v2656, %v2679
  %v2705 = vsub.f32 %v2657, %v2681
  %v2706 = vsub.f32 %v2658, %v2683
  %v2707 = vsub.f32 %v2659, %v2685
  %v2708 = vsub.f32 %v2660, %v2687
  %v2709 = vsub.f32 %v2661, %v2689
  %v2710 = vsub.f32 %v2662, %v2691
  %v2711 = vsub.f32 %v2663, %v2693
  %v2712 = vsub.f32 %v2664, %v2695
  %v2713 = vsub.f32 %v2665, %v2697
  %v2714 = vmul.f32 %v2698, 1.442695
  %v2715 = vpow.pop %v2714
  %v2716 = vmul.f32 %v2699, 1.442695
  %v2717 = vpow.pop %v2716
  %v2718 = vmul.f32 %v2700, 1.442695
  %v2719 = vpow.pop %v2718
  %v2720 = vmul.f32 %v2701, 1.442695
  %v2721 = vpow.pop %v2720
  %v2722 = vmul.f32 %v2702, 1.442695
  %v2723 = vpow.pop %v2722
  %v2724 = vmul.f32 %v2703, 1.442695
  %v2725 = vpow.pop %v2724
  %v2726 = vmul.f32 %v2704, 1.442695
  %v2727 = vpow.pop %v2726
  %v2728 = vmul.f32 %v2705, 1.442695
  %v2729 = vpow.pop %v2728
  %v2730 = vmul.f32 %v2706, 1.442695
  %v2731 = vpow.pop %v2730
  %v2732 = vmul.f32 %v2707, 1.442695
  %v2733 = vpow.pop %v2732
  %v2734 = vmul.f32 %v2708, 1.442695
  %v2735 = vpow.pop %v2734
  %v2736 = vmul.f32 %v2709, 1.442695
  %v2737 = vpow.pop %v2736
  %v2738 = vmul.f32 %v2710, 1.442695
  %v2739 = vpow.pop %v2738
  %v2740 = vmul.f32 %v2711, 1.442695
  %v2741 = vpow.pop %v2740
  %v2742 = vmul.f32 %v2712, 1.442695
  %v2743 = vpow.pop %v2742
  %v2744 = vmul.f32 %v2713, 1.442695
  %v2745 = vpow.pop %v2744
  %2746 = vadd.xlane.f32.xlu0 %v2715
  %v2747 = vpop.xlane.xlu0 %2746
  %2748 = vadd.xlane.f32.xlu0 %v2717
  %v2749 = vpop.xlane.xlu0 %2748
  %2750 = vadd.xlane.f32.xlu0 %v2719
  %v2751 = vpop.xlane.xlu0 %2750
  %2752 = vadd.xlane.f32.xlu0 %v2721
  %v2753 = vpop.xlane.xlu0 %2752
  %2754 = vadd.xlane.f32.xlu0 %v2723
  %v2755 = vpop.xlane.xlu0 %2754
  %2756 = vadd.xlane.f32.xlu0 %v2725
  %v2757 = vpop.xlane.xlu0 %2756
  %2758 = vadd.xlane.f32.xlu0 %v2727
  %v2759 = vpop.xlane.xlu0 %2758
  %2760 = vadd.xlane.f32.xlu0 %v2729
  %v2761 = vpop.xlane.xlu0 %2760
  %2762 = vadd.xlane.f32.xlu0 %v2731
  %v2763 = vpop.xlane.xlu0 %2762
  %2764 = vadd.xlane.f32.xlu0 %v2733
  %v2765 = vpop.xlane.xlu0 %2764
  %2766 = vadd.xlane.f32.xlu0 %v2735
  %v2767 = vpop.xlane.xlu0 %2766
  %2768 = vadd.xlane.f32.xlu0 %v2737
  %v2769 = vpop.xlane.xlu0 %2768
  %2770 = vadd.xlane.f32.xlu0 %v2739
  %v2771 = vpop.xlane.xlu0 %2770
  %2772 = vadd.xlane.f32.xlu0 %v2741
  %v2773 = vpop.xlane.xlu0 %2772
  %2774 = vadd.xlane.f32.xlu0 %v2743
  %v2775 = vpop.xlane.xlu0 %2774
  %2776 = vadd.xlane.f32.xlu0 %v2745
  %v2777 = vpop.xlane.xlu0 %2776
  %v2778 = vrcp.pop %v2747
  %v2779 = vrcp.pop %v2749
  %v2780 = vrcp.pop %v2751
  %v2781 = vrcp.pop %v2753
  %v2782 = vrcp.pop %v2755
  %v2783 = vrcp.pop %v2757
  %v2784 = vrcp.pop %v2759
  %v2785 = vrcp.pop %v2761
  %v2786 = vrcp.pop %v2763
  %v2787 = vrcp.pop %v2765
  %v2788 = vrcp.pop %v2767
  %v2789 = vrcp.pop %v2769
  %v2790 = vrcp.pop %v2771
  %v2791 = vrcp.pop %v2773
  %v2792 = vrcp.pop %v2775
  %v2793 = vrcp.pop %v2777
  %v2794 = vmul.f32 %v2715, %v2778
  %v2795 = vmul.f32 %v2717, %v2779
  %v2796 = vmul.f32 %v2719, %v2780
  %v2797 = vmul.f32 %v2721, %v2781
  %v2798 = vmul.f32 %v2723, %v2782
  %v2799 = vmul.f32 %v2725, %v2783
  %v2800 = vmul.f32 %v2727, %v2784
  %v2801 = vmul.f32 %v2729, %v2785
  %v2802 = vmul.f32 %v2731, %v2786
  %v2803 = vmul.f32 %v2733, %v2787
  %v2804 = vmul.f32 %v2735, %v2788
  %v2805 = vmul.f32 %v2737, %v2789
  %v2806 = vmul.f32 %v2739, %v2790
  %v2807 = vmul.f32 %v2741, %v2791
  %v2808 = vmul.f32 %v2743, %v2792
  %v2809 = vmul.f32 %v2745, %v2793
  %2810 = vrot.lane.b32.xlu0 %v608, 48
  %v2811 = vpop.permute.xlu0 %2810
  %2812 = vrot.lane.b32.xlu0 %v613, 48
  %v2813 = vpop.permute.xlu0 %2812
  %2814 = vrot.lane.b32.xlu0 %v618, 48
  %v2815 = vpop.permute.xlu0 %2814
  %2816 = vrot.lane.b32.xlu0 %v623, 48
  %v2817 = vpop.permute.xlu0 %2816
  %2818 = vrot.lane.b32.xlu0 %v628, 48
  %v2819 = vpop.permute.xlu0 %2818
  %2820 = vrot.lane.b32.xlu0 %v633, 48
  %v2821 = vpop.permute.xlu0 %2820
  %2822 = vrot.lane.b32.xlu0 %v638, 48
  %v2823 = vpop.permute.xlu0 %2822
  %2824 = vrot.lane.b32.xlu0 %v643, 48
  %v2825 = vpop.permute.xlu0 %2824
  %2826 = vrot.lane.b32.xlu0 %v648, 48
  %v2827 = vpop.permute.xlu0 %2826
  %2828 = vrot.lane.b32.xlu0 %v653, 48
  %v2829 = vpop.permute.xlu0 %2828
  %2830 = vrot.lane.b32.xlu0 %v658, 48
  %v2831 = vpop.permute.xlu0 %2830
  %2832 = vrot.lane.b32.xlu0 %v663, 48
  %v2833 = vpop.permute.xlu0 %2832
  %2834 = vrot.lane.b32.xlu0 %v668, 48
  %v2835 = vpop.permute.xlu0 %2834
  %2836 = vrot.lane.b32.xlu0 %v673, 48
  %v2837 = vpop.permute.xlu0 %2836
  %2838 = vrot.lane.b32.xlu0 %v678, 48
  %v2839 = vpop.permute.xlu0 %2838
  %2840 = vrot.lane.b32.xlu0 %v683, 48
  %v2841 = vpop.permute.xlu0 %2840
  %2858 = vmatprep.subr.mxu0 0.0
  %2859 = vmatpush1.msra.mxu0 %v2841
  %2860 = vmatprep.subr.mxu0 0.0
  %2861 = vmatpush1.msra.mxu0 %v2839
  %2862 = vmatprep.subr.mxu0 0.0
  %2863 = vmatpush1.msra.mxu0 %v2837
  %2864 = vmatprep.subr.mxu0 0.0
  %2865 = vmatpush1.msra.mxu0 %v2835
  %2866 = vmatprep.subr.mxu0 0.0
  %2867 = vmatpush1.msra.mxu0 %v2833
  %2868 = vmatprep.subr.mxu0 0.0
  %2869 = vmatpush1.msra.mxu0 %v2831
  %2870 = vmatprep.subr.mxu0 0.0
  %2871 = vmatpush1.msra.mxu0 %v2829
  %2872 = vmatprep.subr.mxu0 0.0
  %2873 = vmatpush1.msra.mxu0 %v2827
  %2874 = vmatprep.subr.mxu0 0.0
  %2875 = vmatpush1.msra.mxu0 %v2825
  %2876 = vmatprep.subr.mxu0 0.0
  %2877 = vmatpush1.msra.mxu0 %v2823
  %2878 = vmatprep.subr.mxu0 0.0
  %2879 = vmatpush1.msra.mxu0 %v2821
  %2880 = vmatprep.subr.mxu0 0.0
  %2881 = vmatpush1.msra.mxu0 %v2819
  %2882 = vmatprep.subr.mxu0 0.0
  %2883 = vmatpush1.msra.mxu0 %v2817
  %2884 = vmatprep.subr.mxu0 0.0
  %2885 = vmatpush1.msra.mxu0 %v2815
  %2886 = vmatprep.subr.mxu0 0.0
  %2887 = vmatpush1.msra.mxu0 %v2813
  %2888 = vmatprep.subr.mxu0 0.0
  %2889 = vmatpush1.msra.mxu0 %v2811
  %2890 = vmatprep.subr.mxu0 0.0
  %2891 = vmatpush2.msra.mxu0 0.0
  %2892 = vmatprep.subr.mxu0 0.0
  %2893 = vmatpush2.msra.mxu0 0.0
  %2894 = vmatprep.subr.mxu0 0.0
  %2895 = vmatpush2.msra.mxu0 0.0
  %2896 = vmatprep.subr.mxu0 0.0
  %2897 = vmatpush2.msra.mxu0 0.0
  %2898 = vmatprep.subr.mxu0 0.0
  %2899 = vmatpush2.msra.mxu0 0.0
  %2900 = vmatprep.subr.mxu0 0.0
  %2901 = vmatpush2.msra.mxu0 0.0
  %2902 = vmatprep.subr.mxu0 0.0
  %2903 = vmatpush2.msra.mxu0 0.0
  %2904 = vmatprep.subr.mxu0 0.0
  %2905 = vmatpush2.msra.mxu0 0.0
  %2906 = vmatprep.subr.mxu0 0.0
  %2907 = vmatpush2.msra.mxu0 0.0
  %2908 = vmatprep.subr.mxu0 0.0
  %2909 = vmatpush2.msra.mxu0 0.0
  %2910 = vmatprep.subr.mxu0 0.0
  %2911 = vmatpush2.msra.mxu0 0.0
  %2912 = vmatprep.subr.mxu0 0.0
  %2913 = vmatpush2.msra.mxu0 0.0
  %2914 = vmatprep.subr.mxu0 0.0
  %2915 = vmatpush2.msra.mxu0 0.0
  %2916 = vmatprep.subr.mxu0 0.0
  %2917 = vmatpush2.msra.mxu0 0.0
  %2918 = vmatprep.subr.mxu0 0.0
  %2919 = vmatpush2.msra.mxu0 0.0
  %2920 = vmatprep.subr.mxu0 0.0
  %2921 = vmatpush2.msra.mxu0 0.0
  %2922 = vmatprep.mubr.f32.mxu0 0.0
  %2923 = vmatmul.mubr.f32.gmra.mxu0 %v2794
  %v2924 = vpop.f32.mrf.mxu0
  %v2925 = vadd.f32 0.0, %v2924
  %v2926 = vpop.f32.mrf.mxu0
  %2927 = vmatprep.mubr.f32.mxu0 0.0
  %2928 = vmatmul.mubr.f32.gmra.mxu0 %v2795
  %v2929 = vpop.f32.mrf.mxu0
  %v2930 = vadd.f32 0.0, %v2929
  %v2931 = vpop.f32.mrf.mxu0
  %2932 = vmatprep.mubr.f32.mxu0 0.0
  %2933 = vmatmul.mubr.f32.gmra.mxu0 %v2796
  %v2934 = vpop.f32.mrf.mxu0
  %v2935 = vadd.f32 0.0, %v2934
  %v2936 = vpop.f32.mrf.mxu0
  %2937 = vmatprep.mubr.f32.mxu0 0.0
  %2938 = vmatmul.mubr.f32.gmra.mxu0 %v2797
  %v2939 = vpop.f32.mrf.mxu0
  %v2940 = vadd.f32 0.0, %v2939
  %v2941 = vpop.f32.mrf.mxu0
  %2942 = vmatprep.mubr.f32.mxu0 0.0
  %2943 = vmatmul.mubr.f32.gmra.mxu0 %v2798
  %v2944 = vpop.f32.mrf.mxu0
  %v2945 = vadd.f32 0.0, %v2944
  %v2946 = vpop.f32.mrf.mxu0
  %2947 = vmatprep.mubr.f32.mxu0 0.0
  %2948 = vmatmul.mubr.f32.gmra.mxu0 %v2799
  %v2949 = vpop.f32.mrf.mxu0
  %v2950 = vadd.f32 0.0, %v2949
  %v2951 = vpop.f32.mrf.mxu0
  %2952 = vmatprep.mubr.f32.mxu0 0.0
  %2953 = vmatmul.mubr.f32.gmra.mxu0 %v2800
  %v2954 = vpop.f32.mrf.mxu0
  %v2955 = vadd.f32 0.0, %v2954
  %v2956 = vpop.f32.mrf.mxu0
  %2957 = vmatprep.mubr.f32.mxu0 0.0
  %2958 = vmatmul.mubr.f32.gmra.mxu0 %v2801
  %v2959 = vpop.f32.mrf.mxu0
  %v2960 = vadd.f32 0.0, %v2959
  %v2961 = vpop.f32.mrf.mxu0
  %2962 = vmatprep.mubr.f32.mxu0 0.0
  %2963 = vmatmul.mubr.f32.gmra.mxu0 %v2802
  %v2964 = vpop.f32.mrf.mxu0
  %v2965 = vadd.f32 0.0, %v2964
  %v2966 = vpop.f32.mrf.mxu0
  %2967 = vmatprep.mubr.f32.mxu0 0.0
  %2968 = vmatmul.mubr.f32.gmra.mxu0 %v2803
  %v2969 = vpop.f32.mrf.mxu0
  %v2970 = vadd.f32 0.0, %v2969
  %v2971 = vpop.f32.mrf.mxu0
  %2972 = vmatprep.mubr.f32.mxu0 0.0
  %2973 = vmatmul.mubr.f32.gmra.mxu0 %v2804
  %v2974 = vpop.f32.mrf.mxu0
  %v2975 = vadd.f32 0.0, %v2974
  %v2976 = vpop.f32.mrf.mxu0
  %2977 = vmatprep.mubr.f32.mxu0 0.0
  %2978 = vmatmul.mubr.f32.gmra.mxu0 %v2805
  %v2979 = vpop.f32.mrf.mxu0
  %v2980 = vadd.f32 0.0, %v2979
  %v2981 = vpop.f32.mrf.mxu0
  %2982 = vmatprep.mubr.f32.mxu0 0.0
  %2983 = vmatmul.mubr.f32.gmra.mxu0 %v2806
  %v2984 = vpop.f32.mrf.mxu0
  %v2985 = vadd.f32 0.0, %v2984
  %v2986 = vpop.f32.mrf.mxu0
  %2987 = vmatprep.mubr.f32.mxu0 0.0
  %2988 = vmatmul.mubr.f32.gmra.mxu0 %v2807
  %v2989 = vpop.f32.mrf.mxu0
  %v2990 = vadd.f32 0.0, %v2989
  %v2991 = vpop.f32.mrf.mxu0
  %2992 = vmatprep.mubr.f32.mxu0 0.0
  %2993 = vmatmul.mubr.f32.gmra.mxu0 %v2808
  %v2994 = vpop.f32.mrf.mxu0
  %v2995 = vadd.f32 0.0, %v2994
  %v2996 = vpop.f32.mrf.mxu0
  %2997 = vmatprep.mubr.f32.mxu0 0.0
  %2998 = vmatmul.mubr.f32.gmra.mxu0 %v2809
  %v2999 = vpop.f32.mrf.mxu0
  %v3000 = vadd.f32 0.0, %v2999
  %v3001 = vpop.f32.mrf.mxu0
  %3002 = vdwg.mxu0
  %v3004 = vsel %vm754, %v2925, 0
  %v3007 = vsel %vm754, %v2930, 0
  %v3010 = vsel %vm754, %v2935, 0
  %v3013 = vsel %vm754, %v2940, 0
  %v3016 = vsel %vm754, %v2945, 0
  %v3019 = vsel %vm754, %v2950, 0
  %v3022 = vsel %vm754, %v2955, 0
  %v3025 = vsel %vm754, %v2960, 0
  %v3028 = vsel %vm754, %v2965, 0
  %v3031 = vsel %vm754, %v2970, 0
  %v3034 = vsel %vm754, %v2975, 0
  %v3037 = vsel %vm754, %v2980, 0
  %v3040 = vsel %vm754, %v2985, 0
  %v3043 = vsel %vm754, %v2990, 0
  %v3046 = vsel %vm754, %v2995, 0
  %v3049 = vsel %vm754, %v3000, 0
  %3051 = vmatprep.subr.mxu0 0.0
  %3052 = vmatpush1.msra.mxu0 0.0
  %3053 = vmatprep.subr.mxu0 0.0
  %3054 = vmatpush1.msra.mxu0 0.0
  %3055 = vmatprep.subr.mxu0 0.0
  %3056 = vmatpush1.msra.mxu0 0.0
  %3057 = vmatprep.subr.mxu0 0.0
  %3058 = vmatpush1.msra.mxu0 0.0
  %3059 = vmatprep.subr.mxu0 0.0
  %3060 = vmatpush1.msra.mxu0 0.0
  %3061 = vmatprep.subr.mxu0 0.0
  %3062 = vmatpush1.msra.mxu0 0.0
  %3063 = vmatprep.subr.mxu0 0.0
  %3064 = vmatpush1.msra.mxu0 0.0
  %3065 = vmatprep.subr.mxu0 0.0
  %3066 = vmatpush1.msra.mxu0 0.0
  %3067 = vmatprep.subr.mxu0 0.0
  %3068 = vmatpush1.msra.mxu0 0.0
  %3069 = vmatprep.subr.mxu0 0.0
  %3070 = vmatpush1.msra.mxu0 0.0
  %3071 = vmatprep.subr.mxu0 0.0
  %3072 = vmatpush1.msra.mxu0 0.0
  %3073 = vmatprep.subr.mxu0 0.0
  %3074 = vmatpush1.msra.mxu0 0.0
  %3075 = vmatprep.subr.mxu0 0.0
  %3076 = vmatpush1.msra.mxu0 0.0
  %3077 = vmatprep.subr.mxu0 0.0
  %3078 = vmatpush1.msra.mxu0 0.0
  %3079 = vmatprep.subr.mxu0 0.0
  %3080 = vmatpush1.msra.mxu0 0.0
  %3081 = vmatprep.subr.mxu0 0.0
  %3082 = vmatpush1.msra.mxu0 %v704
  %3083 = vmatprep.subr.mxu0 0.0
  %3084 = vmatpush2.msra.mxu0 0.0
  %3085 = vmatprep.subr.mxu0 0.0
  %3086 = vmatpush2.msra.mxu0 0.0
  %3087 = vmatprep.subr.mxu0 0.0
  %3088 = vmatpush2.msra.mxu0 0.0
  %3089 = vmatprep.subr.mxu0 0.0
  %3090 = vmatpush2.msra.mxu0 0.0
  %3091 = vmatprep.subr.mxu0 0.0
  %3092 = vmatpush2.msra.mxu0 0.0
  %3093 = vmatprep.subr.mxu0 0.0
  %3094 = vmatpush2.msra.mxu0 0.0
  %3095 = vmatprep.subr.mxu0 0.0
  %3096 = vmatpush2.msra.mxu0 0.0
  %3097 = vmatprep.subr.mxu0 0.0
  %3098 = vmatpush2.msra.mxu0 0.0
  %3099 = vmatprep.subr.mxu0 0.0
  %3100 = vmatpush2.msra.mxu0 0.0
  %3101 = vmatprep.subr.mxu0 0.0
  %3102 = vmatpush2.msra.mxu0 0.0
  %3103 = vmatprep.subr.mxu0 0.0
  %3104 = vmatpush2.msra.mxu0 0.0
  %3105 = vmatprep.subr.mxu0 0.0
  %3106 = vmatpush2.msra.mxu0 0.0
  %3107 = vmatprep.subr.mxu0 0.0
  %3108 = vmatpush2.msra.mxu0 0.0
  %3109 = vmatprep.subr.mxu0 0.0
  %3110 = vmatpush2.msra.mxu0 0.0
  %3111 = vmatprep.subr.mxu0 0.0
  %3112 = vmatpush2.msra.mxu0 0.0
  %3113 = vmatprep.subr.mxu0 0.0
  %3114 = vmatpush2.msra.mxu0 0.0
  %3115 = vmatprep.mubr.f32.mxu0 0.0
  %3116 = vmatmul.mubr.f32.gmra.mxu0 %v3004
  %v3117 = vpop.f32.mrf.mxu0
  %v3118 = vadd.f32 0.0, %v3117
  %v3119 = vpop.f32.mrf.mxu0
  %3120 = vmatprep.mubr.f32.mxu0 0.0
  %3121 = vmatmul.mubr.f32.gmra.mxu0 %v3007
  %v3122 = vpop.f32.mrf.mxu0
  %v3123 = vadd.f32 0.0, %v3122
  %v3124 = vpop.f32.mrf.mxu0
  %3125 = vmatprep.mubr.f32.mxu0 0.0
  %3126 = vmatmul.mubr.f32.gmra.mxu0 %v3010
  %v3127 = vpop.f32.mrf.mxu0
  %v3128 = vadd.f32 0.0, %v3127
  %v3129 = vpop.f32.mrf.mxu0
  %3130 = vmatprep.mubr.f32.mxu0 0.0
  %3131 = vmatmul.mubr.f32.gmra.mxu0 %v3013
  %v3132 = vpop.f32.mrf.mxu0
  %v3133 = vadd.f32 0.0, %v3132
  %v3134 = vpop.f32.mrf.mxu0
  %3135 = vmatprep.mubr.f32.mxu0 0.0
  %3136 = vmatmul.mubr.f32.gmra.mxu0 %v3016
  %v3137 = vpop.f32.mrf.mxu0
  %v3138 = vadd.f32 0.0, %v3137
  %v3139 = vpop.f32.mrf.mxu0
  %3140 = vmatprep.mubr.f32.mxu0 0.0
  %3141 = vmatmul.mubr.f32.gmra.mxu0 %v3019
  %v3142 = vpop.f32.mrf.mxu0
  %v3143 = vadd.f32 0.0, %v3142
  %v3144 = vpop.f32.mrf.mxu0
  %3145 = vmatprep.mubr.f32.mxu0 0.0
  %3146 = vmatmul.mubr.f32.gmra.mxu0 %v3022
  %v3147 = vpop.f32.mrf.mxu0
  %v3148 = vadd.f32 0.0, %v3147
  %v3149 = vpop.f32.mrf.mxu0
  %3150 = vmatprep.mubr.f32.mxu0 0.0
  %3151 = vmatmul.mubr.f32.gmra.mxu0 %v3025
  %v3152 = vpop.f32.mrf.mxu0
  %v3153 = vadd.f32 0.0, %v3152
  %v3154 = vpop.f32.mrf.mxu0
  %3155 = vmatprep.mubr.f32.mxu0 0.0
  %3156 = vmatmul.mubr.f32.gmra.mxu0 %v3028
  %v3157 = vpop.f32.mrf.mxu0
  %v3158 = vadd.f32 0.0, %v3157
  %v3159 = vpop.f32.mrf.mxu0
  %3160 = vmatprep.mubr.f32.mxu0 0.0
  %3161 = vmatmul.mubr.f32.gmra.mxu0 %v3031
  %v3162 = vpop.f32.mrf.mxu0
  %v3163 = vadd.f32 0.0, %v3162
  %v3164 = vpop.f32.mrf.mxu0
  %3165 = vmatprep.mubr.f32.mxu0 0.0
  %3166 = vmatmul.mubr.f32.gmra.mxu0 %v3034
  %v3167 = vpop.f32.mrf.mxu0
  %v3168 = vadd.f32 0.0, %v3167
  %v3169 = vpop.f32.mrf.mxu0
  %3170 = vmatprep.mubr.f32.mxu0 0.0
  %3171 = vmatmul.mubr.f32.gmra.mxu0 %v3037
  %v3172 = vpop.f32.mrf.mxu0
  %v3173 = vadd.f32 0.0, %v3172
  %v3174 = vpop.f32.mrf.mxu0
  %3175 = vmatprep.mubr.f32.mxu0 0.0
  %3176 = vmatmul.mubr.f32.gmra.mxu0 %v3040
  %v3177 = vpop.f32.mrf.mxu0
  %v3178 = vadd.f32 0.0, %v3177
  %v3179 = vpop.f32.mrf.mxu0
  %3180 = vmatprep.mubr.f32.mxu0 0.0
  %3181 = vmatmul.mubr.f32.gmra.mxu0 %v3043
  %v3182 = vpop.f32.mrf.mxu0
  %v3183 = vadd.f32 0.0, %v3182
  %v3184 = vpop.f32.mrf.mxu0
  %3185 = vmatprep.mubr.f32.mxu0 0.0
  %3186 = vmatmul.mubr.f32.gmra.mxu0 %v3046
  %v3187 = vpop.f32.mrf.mxu0
  %v3188 = vadd.f32 0.0, %v3187
  %v3189 = vpop.f32.mrf.mxu0
  %3190 = vmatprep.mubr.f32.mxu0 0.0
  %3191 = vmatmul.mubr.f32.gmra.mxu0 %v3049
  %v3192 = vpop.f32.mrf.mxu0
  %v3193 = vadd.f32 0.0, %v3192
  %v3194 = vpop.f32.mrf.mxu0
  %3195 = vdwg.mxu0
  %v3196 = vadd.f32 %v2283, %v3118
  %v3197 = vadd.f32 %v2288, %v3123
  %v3198 = vadd.f32 %v2293, %v3128
  %v3199 = vadd.f32 %v2298, %v3133
  %v3200 = vadd.f32 %v2303, %v3138
  %v3201 = vadd.f32 %v2308, %v3143
  %v3202 = vadd.f32 %v2313, %v3148
  %v3203 = vadd.f32 %v2318, %v3153
  %v3204 = vadd.f32 %v2323, %v3158
  %v3205 = vadd.f32 %v2328, %v3163
  %v3206 = vadd.f32 %v2333, %v3168
  %v3207 = vadd.f32 %v2338, %v3173
  %v3208 = vadd.f32 %v2343, %v3178
  %v3209 = vadd.f32 %v2348, %v3183
  %v3210 = vadd.f32 %v2353, %v3188
  %v3211 = vadd.f32 %v2358, %v3193
  %3212 = vrot.lane.b32.xlu0 %v608, 104
  %v3213 = vpop.permute.xlu0 %3212
  %3214 = vrot.lane.b32.xlu0 %v613, 104
  %v3215 = vpop.permute.xlu0 %3214
  %3216 = vrot.lane.b32.xlu0 %v618, 104
  %v3217 = vpop.permute.xlu0 %3216
  %3218 = vrot.lane.b32.xlu0 %v623, 104
  %v3219 = vpop.permute.xlu0 %3218
  %3220 = vrot.lane.b32.xlu0 %v628, 104
  %v3221 = vpop.permute.xlu0 %3220
  %3222 = vrot.lane.b32.xlu0 %v633, 104
  %v3223 = vpop.permute.xlu0 %3222
  %3224 = vrot.lane.b32.xlu0 %v638, 104
  %v3225 = vpop.permute.xlu0 %3224
  %3226 = vrot.lane.b32.xlu0 %v643, 104
  %v3227 = vpop.permute.xlu0 %3226
  %3228 = vrot.lane.b32.xlu0 %v648, 104
  %v3229 = vpop.permute.xlu0 %3228
  %3230 = vrot.lane.b32.xlu0 %v653, 104
  %v3231 = vpop.permute.xlu0 %3230
  %3232 = vrot.lane.b32.xlu0 %v658, 104
  %v3233 = vpop.permute.xlu0 %3232
  %3234 = vrot.lane.b32.xlu0 %v663, 104
  %v3235 = vpop.permute.xlu0 %3234
  %3236 = vrot.lane.b32.xlu0 %v668, 104
  %v3237 = vpop.permute.xlu0 %3236
  %3238 = vrot.lane.b32.xlu0 %v673, 104
  %v3239 = vpop.permute.xlu0 %3238
  %3240 = vrot.lane.b32.xlu0 %v678, 104
  %v3241 = vpop.permute.xlu0 %3240
  %3242 = vrot.lane.b32.xlu0 %v683, 104
  %v3243 = vpop.permute.xlu0 %3242
  %3244 = vrot.lane.b32.xlu0 %v608, 72
  %v3245 = vpop.permute.xlu0 %3244
  %3246 = vrot.lane.b32.xlu0 %v613, 72
  %v3247 = vpop.permute.xlu0 %3246
  %3248 = vrot.lane.b32.xlu0 %v618, 72
  %v3249 = vpop.permute.xlu0 %3248
  %3250 = vrot.lane.b32.xlu0 %v623, 72
  %v3251 = vpop.permute.xlu0 %3250
  %3252 = vrot.lane.b32.xlu0 %v628, 72
  %v3253 = vpop.permute.xlu0 %3252
  %3254 = vrot.lane.b32.xlu0 %v633, 72
  %v3255 = vpop.permute.xlu0 %3254
  %3256 = vrot.lane.b32.xlu0 %v638, 72
  %v3257 = vpop.permute.xlu0 %3256
  %3258 = vrot.lane.b32.xlu0 %v643, 72
  %v3259 = vpop.permute.xlu0 %3258
  %3260 = vrot.lane.b32.xlu0 %v648, 72
  %v3261 = vpop.permute.xlu0 %3260
  %3262 = vrot.lane.b32.xlu0 %v653, 72
  %v3263 = vpop.permute.xlu0 %3262
  %3264 = vrot.lane.b32.xlu0 %v658, 72
  %v3265 = vpop.permute.xlu0 %3264
  %3266 = vrot.lane.b32.xlu0 %v663, 72
  %v3267 = vpop.permute.xlu0 %3266
  %3268 = vrot.lane.b32.xlu0 %v668, 72
  %v3269 = vpop.permute.xlu0 %3268
  %3270 = vrot.lane.b32.xlu0 %v673, 72
  %v3271 = vpop.permute.xlu0 %3270
  %3272 = vrot.lane.b32.xlu0 %v678, 72
  %v3273 = vpop.permute.xlu0 %3272
  %3274 = vrot.lane.b32.xlu0 %v683, 72
  %v3275 = vpop.permute.xlu0 %3274
  %v3276 = vsel %vm754, %v3213, 0
  %v3278 = vsel %vm754, %v3215, 0
  %v3280 = vsel %vm754, %v3217, 0
  %v3282 = vsel %vm754, %v3219, 0
  %v3284 = vsel %vm754, %v3221, 0
  %v3286 = vsel %vm754, %v3223, 0
  %v3288 = vsel %vm754, %v3225, 0
  %v3290 = vsel %vm754, %v3227, 0
  %v3292 = vsel %vm754, %v3229, 0
  %v3294 = vsel %vm754, %v3231, 0
  %v3296 = vsel %vm754, %v3233, 0
  %v3298 = vsel %vm754, %v3235, 0
  %v3300 = vsel %vm754, %v3237, 0
  %v3302 = vsel %vm754, %v3239, 0
  %v3304 = vsel %vm754, %v3241, 0
  %v3306 = vsel %vm754, %v3243, 0
  %v3308 = vsel %vm754, %v3245, 0
  %v3310 = vsel %vm754, %v3247, 0
  %v3312 = vsel %vm754, %v3249, 0
  %v3314 = vsel %vm754, %v3251, 0
  %v3316 = vsel %vm754, %v3253, 0
  %v3318 = vsel %vm754, %v3255, 0
  %v3320 = vsel %vm754, %v3257, 0
  %v3322 = vsel %vm754, %v3259, 0
  %v3324 = vsel %vm754, %v3261, 0
  %v3326 = vsel %vm754, %v3263, 0
  %v3328 = vsel %vm754, %v3265, 0
  %v3330 = vsel %vm754, %v3267, 0
  %v3332 = vsel %vm754, %v3269, 0
  %v3334 = vsel %vm754, %v3271, 0
  %v3336 = vsel %vm754, %v3273, 0
  %v3338 = vsel %vm754, %v3275, 0
  %3340 = vmatprep.subr.mxu0 0.0
  %3341 = vmatpush1.xpose.msra.mxu0 %v3338
  %3342 = vmatprep.subr.mxu0 0.0
  %3343 = vmatpush1.xpose.msra.mxu0 %v3336
  %3344 = vmatprep.subr.mxu0 0.0
  %3345 = vmatpush1.xpose.msra.mxu0 %v3334
  %3346 = vmatprep.subr.mxu0 0.0
  %3347 = vmatpush1.xpose.msra.mxu0 %v3332
  %3348 = vmatprep.subr.mxu0 0.0
  %3349 = vmatpush1.xpose.msra.mxu0 %v3330
  %3350 = vmatprep.subr.mxu0 0.0
  %3351 = vmatpush1.xpose.msra.mxu0 %v3328
  %3352 = vmatprep.subr.mxu0 0.0
  %3353 = vmatpush1.xpose.msra.mxu0 %v3326
  %3354 = vmatprep.subr.mxu0 0.0
  %3355 = vmatpush1.xpose.msra.mxu0 %v3324
  %3356 = vmatprep.subr.mxu0 0.0
  %3357 = vmatpush1.xpose.msra.mxu0 %v3322
  %3358 = vmatprep.subr.mxu0 0.0
  %3359 = vmatpush1.xpose.msra.mxu0 %v3320
  %3360 = vmatprep.subr.mxu0 0.0
  %3361 = vmatpush1.xpose.msra.mxu0 %v3318
  %3362 = vmatprep.subr.mxu0 0.0
  %3363 = vmatpush1.xpose.msra.mxu0 %v3316
  %3364 = vmatprep.subr.mxu0 0.0
  %3365 = vmatpush1.xpose.msra.mxu0 %v3314
  %3366 = vmatprep.subr.mxu0 0.0
  %3367 = vmatpush1.xpose.msra.mxu0 %v3312
  %3368 = vmatprep.subr.mxu0 0.0
  %3369 = vmatpush1.xpose.msra.mxu0 %v3310
  %3370 = vmatprep.subr.mxu0 0.0
  %3371 = vmatpush1.xpose.msra.mxu0 %v3308
  %3372 = vmatprep.subr.mxu0 0.0
  %3373 = vmatpush2.xpose.msra.mxu0 0.0
  %3374 = vmatprep.subr.mxu0 0.0
  %3375 = vmatpush2.xpose.msra.mxu0 0.0
  %3376 = vmatprep.subr.mxu0 0.0
  %3377 = vmatpush2.xpose.msra.mxu0 0.0
  %3378 = vmatprep.subr.mxu0 0.0
  %3379 = vmatpush2.xpose.msra.mxu0 0.0
  %3380 = vmatprep.subr.mxu0 0.0
  %3381 = vmatpush2.xpose.msra.mxu0 0.0
  %3382 = vmatprep.subr.mxu0 0.0
  %3383 = vmatpush2.xpose.msra.mxu0 0.0
  %3384 = vmatprep.subr.mxu0 0.0
  %3385 = vmatpush2.xpose.msra.mxu0 0.0
  %3386 = vmatprep.subr.mxu0 0.0
  %3387 = vmatpush2.xpose.msra.mxu0 0.0
  %3388 = vmatprep.subr.mxu0 0.0
  %3389 = vmatpush2.xpose.msra.mxu0 0.0
  %3390 = vmatprep.subr.mxu0 0.0
  %3391 = vmatpush2.xpose.msra.mxu0 0.0
  %3392 = vmatprep.subr.mxu0 0.0
  %3393 = vmatpush2.xpose.msra.mxu0 0.0
  %3394 = vmatprep.subr.mxu0 0.0
  %3395 = vmatpush2.xpose.msra.mxu0 0.0
  %3396 = vmatprep.subr.mxu0 0.0
  %3397 = vmatpush2.xpose.msra.mxu0 0.0
  %3398 = vmatprep.subr.mxu0 0.0
  %3399 = vmatpush2.xpose.msra.mxu0 0.0
  %3400 = vmatprep.subr.mxu0 0.0
  %3401 = vmatpush2.xpose.msra.mxu0 0.0
  %3402 = vmatprep.subr.mxu0 0.0
  %3403 = vmatpush2.xpose.msra.mxu0 0.0
  %3404 = vmatprep.mubr.f32.mxu0 0.0
  %3405 = vmatmul.mubr.f32.gmra.mxu0 %v3276
  %v3406 = vpop.f32.mrf.mxu0
  %v3407 = vadd.f32 0.0, %v3406
  %v3408 = vpop.f32.mrf.mxu0
  %3409 = vmatprep.mubr.f32.mxu0 0.0
  %3410 = vmatmul.mubr.f32.gmra.mxu0 %v3278
  %v3411 = vpop.f32.mrf.mxu0
  %v3412 = vadd.f32 0.0, %v3411
  %v3413 = vpop.f32.mrf.mxu0
  %3414 = vmatprep.mubr.f32.mxu0 0.0
  %3415 = vmatmul.mubr.f32.gmra.mxu0 %v3280
  %v3416 = vpop.f32.mrf.mxu0
  %v3417 = vadd.f32 0.0, %v3416
  %v3418 = vpop.f32.mrf.mxu0
  %3419 = vmatprep.mubr.f32.mxu0 0.0
  %3420 = vmatmul.mubr.f32.gmra.mxu0 %v3282
  %v3421 = vpop.f32.mrf.mxu0
  %v3422 = vadd.f32 0.0, %v3421
  %v3423 = vpop.f32.mrf.mxu0
  %3424 = vmatprep.mubr.f32.mxu0 0.0
  %3425 = vmatmul.mubr.f32.gmra.mxu0 %v3284
  %v3426 = vpop.f32.mrf.mxu0
  %v3427 = vadd.f32 0.0, %v3426
  %v3428 = vpop.f32.mrf.mxu0
  %3429 = vmatprep.mubr.f32.mxu0 0.0
  %3430 = vmatmul.mubr.f32.gmra.mxu0 %v3286
  %v3431 = vpop.f32.mrf.mxu0
  %v3432 = vadd.f32 0.0, %v3431
  %v3433 = vpop.f32.mrf.mxu0
  %3434 = vmatprep.mubr.f32.mxu0 0.0
  %3435 = vmatmul.mubr.f32.gmra.mxu0 %v3288
  %v3436 = vpop.f32.mrf.mxu0
  %v3437 = vadd.f32 0.0, %v3436
  %v3438 = vpop.f32.mrf.mxu0
  %3439 = vmatprep.mubr.f32.mxu0 0.0
  %3440 = vmatmul.mubr.f32.gmra.mxu0 %v3290
  %v3441 = vpop.f32.mrf.mxu0
  %v3442 = vadd.f32 0.0, %v3441
  %v3443 = vpop.f32.mrf.mxu0
  %3444 = vmatprep.mubr.f32.mxu0 0.0
  %3445 = vmatmul.mubr.f32.gmra.mxu0 %v3292
  %v3446 = vpop.f32.mrf.mxu0
  %v3447 = vadd.f32 0.0, %v3446
  %v3448 = vpop.f32.mrf.mxu0
  %3449 = vmatprep.mubr.f32.mxu0 0.0
  %3450 = vmatmul.mubr.f32.gmra.mxu0 %v3294
  %v3451 = vpop.f32.mrf.mxu0
  %v3452 = vadd.f32 0.0, %v3451
  %v3453 = vpop.f32.mrf.mxu0
  %3454 = vmatprep.mubr.f32.mxu0 0.0
  %3455 = vmatmul.mubr.f32.gmra.mxu0 %v3296
  %v3456 = vpop.f32.mrf.mxu0
  %v3457 = vadd.f32 0.0, %v3456
  %v3458 = vpop.f32.mrf.mxu0
  %3459 = vmatprep.mubr.f32.mxu0 0.0
  %3460 = vmatmul.mubr.f32.gmra.mxu0 %v3298
  %v3461 = vpop.f32.mrf.mxu0
  %v3462 = vadd.f32 0.0, %v3461
  %v3463 = vpop.f32.mrf.mxu0
  %3464 = vmatprep.mubr.f32.mxu0 0.0
  %3465 = vmatmul.mubr.f32.gmra.mxu0 %v3300
  %v3466 = vpop.f32.mrf.mxu0
  %v3467 = vadd.f32 0.0, %v3466
  %v3468 = vpop.f32.mrf.mxu0
  %3469 = vmatprep.mubr.f32.mxu0 0.0
  %3470 = vmatmul.mubr.f32.gmra.mxu0 %v3302
  %v3471 = vpop.f32.mrf.mxu0
  %v3472 = vadd.f32 0.0, %v3471
  %v3473 = vpop.f32.mrf.mxu0
  %3474 = vmatprep.mubr.f32.mxu0 0.0
  %3475 = vmatmul.mubr.f32.gmra.mxu0 %v3304
  %v3476 = vpop.f32.mrf.mxu0
  %v3477 = vadd.f32 0.0, %v3476
  %v3478 = vpop.f32.mrf.mxu0
  %3479 = vmatprep.mubr.f32.mxu0 0.0
  %3480 = vmatmul.mubr.f32.gmra.mxu0 %v3306
  %v3481 = vpop.f32.mrf.mxu0
  %v3482 = vadd.f32 0.0, %v3481
  %v3483 = vpop.f32.mrf.mxu0
  %3484 = vdwg.mxu0
  %v3485 = vmul.f32 %v3407, 0.35355338
  %v3486 = vmul.f32 %v3412, 0.35355338
  %v3487 = vmul.f32 %v3417, 0.35355338
  %v3488 = vmul.f32 %v3422, 0.35355338
  %v3489 = vmul.f32 %v3427, 0.35355338
  %v3490 = vmul.f32 %v3432, 0.35355338
  %v3491 = vmul.f32 %v3437, 0.35355338
  %v3492 = vmul.f32 %v3442, 0.35355338
  %v3493 = vmul.f32 %v3447, 0.35355338
  %v3494 = vmul.f32 %v3452, 0.35355338
  %v3495 = vmul.f32 %v3457, 0.35355338
  %v3496 = vmul.f32 %v3462, 0.35355338
  %v3497 = vmul.f32 %v3467, 0.35355338
  %v3498 = vmul.f32 %v3472, 0.35355338
  %v3499 = vmul.f32 %v3477, 0.35355338
  %v3500 = vmul.f32 %v3482, 0.35355338
  %v3501 = vadd.f32 %v3485, %v686
  %v3502 = vadd.f32 %v3486, %v687
  %v3503 = vadd.f32 %v3487, %v688
  %v3504 = vadd.f32 %v3488, %v689
  %v3505 = vadd.f32 %v3489, %v690
  %v3506 = vadd.f32 %v3490, %v691
  %v3507 = vadd.f32 %v3491, %v692
  %v3508 = vadd.f32 %v3492, %v693
  %v3509 = vadd.f32 %v3493, %v694
  %v3510 = vadd.f32 %v3494, %v695
  %v3511 = vadd.f32 %v3495, %v696
  %v3512 = vadd.f32 %v3496, %v697
  %v3513 = vadd.f32 %v3497, %v698
  %v3514 = vadd.f32 %v3498, %v699
  %v3515 = vadd.f32 %v3499, %v700
  %v3516 = vadd.f32 %v3500, %v701
  %3517 = vmax.xlane.f32.xlu0 %v3501
  %v3518 = vpop.xlane.xlu0 %3517
  %3519 = vmax.xlane.f32.xlu0 %v3502
  %v3520 = vpop.xlane.xlu0 %3519
  %3521 = vmax.xlane.f32.xlu0 %v3503
  %v3522 = vpop.xlane.xlu0 %3521
  %3523 = vmax.xlane.f32.xlu0 %v3504
  %v3524 = vpop.xlane.xlu0 %3523
  %3525 = vmax.xlane.f32.xlu0 %v3505
  %v3526 = vpop.xlane.xlu0 %3525
  %3527 = vmax.xlane.f32.xlu0 %v3506
  %v3528 = vpop.xlane.xlu0 %3527
  %3529 = vmax.xlane.f32.xlu0 %v3507
  %v3530 = vpop.xlane.xlu0 %3529
  %3531 = vmax.xlane.f32.xlu0 %v3508
  %v3532 = vpop.xlane.xlu0 %3531
  %3533 = vmax.xlane.f32.xlu0 %v3509
  %v3534 = vpop.xlane.xlu0 %3533
  %3535 = vmax.xlane.f32.xlu0 %v3510
  %v3536 = vpop.xlane.xlu0 %3535
  %3537 = vmax.xlane.f32.xlu0 %v3511
  %v3538 = vpop.xlane.xlu0 %3537
  %3539 = vmax.xlane.f32.xlu0 %v3512
  %v3540 = vpop.xlane.xlu0 %3539
  %3541 = vmax.xlane.f32.xlu0 %v3513
  %v3542 = vpop.xlane.xlu0 %3541
  %3543 = vmax.xlane.f32.xlu0 %v3514
  %v3544 = vpop.xlane.xlu0 %3543
  %3545 = vmax.xlane.f32.xlu0 %v3515
  %v3546 = vpop.xlane.xlu0 %3545
  %3547 = vmax.xlane.f32.xlu0 %v3516
  %v3548 = vpop.xlane.xlu0 %3547
  %v3549 = vsub.f32 %v3501, %v3518
  %v3550 = vsub.f32 %v3502, %v3520
  %v3551 = vsub.f32 %v3503, %v3522
  %v3552 = vsub.f32 %v3504, %v3524
  %v3553 = vsub.f32 %v3505, %v3526
  %v3554 = vsub.f32 %v3506, %v3528
  %v3555 = vsub.f32 %v3507, %v3530
  %v3556 = vsub.f32 %v3508, %v3532
  %v3557 = vsub.f32 %v3509, %v3534
  %v3558 = vsub.f32 %v3510, %v3536
  %v3559 = vsub.f32 %v3511, %v3538
  %v3560 = vsub.f32 %v3512, %v3540
  %v3561 = vsub.f32 %v3513, %v3542
  %v3562 = vsub.f32 %v3514, %v3544
  %v3563 = vsub.f32 %v3515, %v3546
  %v3564 = vsub.f32 %v3516, %v3548
  %v3565 = vmul.f32 %v3549, 1.442695
  %v3566 = vpow.pop %v3565
  %v3567 = vmul.f32 %v3550, 1.442695
  %v3568 = vpow.pop %v3567
  %v3569 = vmul.f32 %v3551, 1.442695
  %v3570 = vpow.pop %v3569
  %v3571 = vmul.f32 %v3552, 1.442695
  %v3572 = vpow.pop %v3571
  %v3573 = vmul.f32 %v3553, 1.442695
  %v3574 = vpow.pop %v3573
  %v3575 = vmul.f32 %v3554, 1.442695
  %v3576 = vpow.pop %v3575
  %v3577 = vmul.f32 %v3555, 1.442695
  %v3578 = vpow.pop %v3577
  %v3579 = vmul.f32 %v3556, 1.442695
  %v3580 = vpow.pop %v3579
  %v3581 = vmul.f32 %v3557, 1.442695
  %v3582 = vpow.pop %v3581
  %v3583 = vmul.f32 %v3558, 1.442695
  %v3584 = vpow.pop %v3583
  %v3585 = vmul.f32 %v3559, 1.442695
  %v3586 = vpow.pop %v3585
  %v3587 = vmul.f32 %v3560, 1.442695
  %v3588 = vpow.pop %v3587
  %v3589 = vmul.f32 %v3561, 1.442695
  %v3590 = vpow.pop %v3589
  %v3591 = vmul.f32 %v3562, 1.442695
  %v3592 = vpow.pop %v3591
  %v3593 = vmul.f32 %v3563, 1.442695
  %v3594 = vpow.pop %v3593
  %v3595 = vmul.f32 %v3564, 1.442695
  %v3596 = vpow.pop %v3595
  %3597 = vadd.xlane.f32.xlu0 %v3566
  %v3598 = vpop.xlane.xlu0 %3597
  %3599 = vadd.xlane.f32.xlu0 %v3568
  %v3600 = vpop.xlane.xlu0 %3599
  %3601 = vadd.xlane.f32.xlu0 %v3570
  %v3602 = vpop.xlane.xlu0 %3601
  %3603 = vadd.xlane.f32.xlu0 %v3572
  %v3604 = vpop.xlane.xlu0 %3603
  %3605 = vadd.xlane.f32.xlu0 %v3574
  %v3606 = vpop.xlane.xlu0 %3605
  %3607 = vadd.xlane.f32.xlu0 %v3576
  %v3608 = vpop.xlane.xlu0 %3607
  %3609 = vadd.xlane.f32.xlu0 %v3578
  %v3610 = vpop.xlane.xlu0 %3609
  %3611 = vadd.xlane.f32.xlu0 %v3580
  %v3612 = vpop.xlane.xlu0 %3611
  %3613 = vadd.xlane.f32.xlu0 %v3582
  %v3614 = vpop.xlane.xlu0 %3613
  %3615 = vadd.xlane.f32.xlu0 %v3584
  %v3616 = vpop.xlane.xlu0 %3615
  %3617 = vadd.xlane.f32.xlu0 %v3586
  %v3618 = vpop.xlane.xlu0 %3617
  %3619 = vadd.xlane.f32.xlu0 %v3588
  %v3620 = vpop.xlane.xlu0 %3619
  %3621 = vadd.xlane.f32.xlu0 %v3590
  %v3622 = vpop.xlane.xlu0 %3621
  %3623 = vadd.xlane.f32.xlu0 %v3592
  %v3624 = vpop.xlane.xlu0 %3623
  %3625 = vadd.xlane.f32.xlu0 %v3594
  %v3626 = vpop.xlane.xlu0 %3625
  %3627 = vadd.xlane.f32.xlu0 %v3596
  %v3628 = vpop.xlane.xlu0 %3627
  %v3629 = vrcp.pop %v3598
  %v3630 = vrcp.pop %v3600
  %v3631 = vrcp.pop %v3602
  %v3632 = vrcp.pop %v3604
  %v3633 = vrcp.pop %v3606
  %v3634 = vrcp.pop %v3608
  %v3635 = vrcp.pop %v3610
  %v3636 = vrcp.pop %v3612
  %v3637 = vrcp.pop %v3614
  %v3638 = vrcp.pop %v3616
  %v3639 = vrcp.pop %v3618
  %v3640 = vrcp.pop %v3620
  %v3641 = vrcp.pop %v3622
  %v3642 = vrcp.pop %v3624
  %v3643 = vrcp.pop %v3626
  %v3644 = vrcp.pop %v3628
  %v3645 = vmul.f32 %v3566, %v3629
  %v3646 = vmul.f32 %v3568, %v3630
  %v3647 = vmul.f32 %v3570, %v3631
  %v3648 = vmul.f32 %v3572, %v3632
  %v3649 = vmul.f32 %v3574, %v3633
  %v3650 = vmul.f32 %v3576, %v3634
  %v3651 = vmul.f32 %v3578, %v3635
  %v3652 = vmul.f32 %v3580, %v3636
  %v3653 = vmul.f32 %v3582, %v3637
  %v3654 = vmul.f32 %v3584, %v3638
  %v3655 = vmul.f32 %v3586, %v3639
  %v3656 = vmul.f32 %v3588, %v3640
  %v3657 = vmul.f32 %v3590, %v3641
  %v3658 = vmul.f32 %v3592, %v3642
  %v3659 = vmul.f32 %v3594, %v3643
  %v3660 = vmul.f32 %v3596, %v3644
  %3661 = vrot.lane.b32.xlu0 %v608, 40
  %v3662 = vpop.permute.xlu0 %3661
  %3663 = vrot.lane.b32.xlu0 %v613, 40
  %v3664 = vpop.permute.xlu0 %3663
  %3665 = vrot.lane.b32.xlu0 %v618, 40
  %v3666 = vpop.permute.xlu0 %3665
  %3667 = vrot.lane.b32.xlu0 %v623, 40
  %v3668 = vpop.permute.xlu0 %3667
  %3669 = vrot.lane.b32.xlu0 %v628, 40
  %v3670 = vpop.permute.xlu0 %3669
  %3671 = vrot.lane.b32.xlu0 %v633, 40
  %v3672 = vpop.permute.xlu0 %3671
  %3673 = vrot.lane.b32.xlu0 %v638, 40
  %v3674 = vpop.permute.xlu0 %3673
  %3675 = vrot.lane.b32.xlu0 %v643, 40
  %v3676 = vpop.permute.xlu0 %3675
  %3677 = vrot.lane.b32.xlu0 %v648, 40
  %v3678 = vpop.permute.xlu0 %3677
  %3679 = vrot.lane.b32.xlu0 %v653, 40
  %v3680 = vpop.permute.xlu0 %3679
  %3681 = vrot.lane.b32.xlu0 %v658, 40
  %v3682 = vpop.permute.xlu0 %3681
  %3683 = vrot.lane.b32.xlu0 %v663, 40
  %v3684 = vpop.permute.xlu0 %3683
  %3685 = vrot.lane.b32.xlu0 %v668, 40
  %v3686 = vpop.permute.xlu0 %3685
  %3687 = vrot.lane.b32.xlu0 %v673, 40
  %v3688 = vpop.permute.xlu0 %3687
  %3689 = vrot.lane.b32.xlu0 %v678, 40
  %v3690 = vpop.permute.xlu0 %3689
  %3691 = vrot.lane.b32.xlu0 %v683, 40
  %v3692 = vpop.permute.xlu0 %3691
  %3709 = vmatprep.subr.mxu0 0.0
  %3710 = vmatpush1.msra.mxu0 %v3692
  %3711 = vmatprep.subr.mxu0 0.0
  %3712 = vmatpush1.msra.mxu0 %v3690
  %3713 = vmatprep.subr.mxu0 0.0
  %3714 = vmatpush1.msra.mxu0 %v3688
  %3715 = vmatprep.subr.mxu0 0.0
  %3716 = vmatpush1.msra.mxu0 %v3686
  %3717 = vmatprep.subr.mxu0 0.0
  %3718 = vmatpush1.msra.mxu0 %v3684
  %3719 = vmatprep.subr.mxu0 0.0
  %3720 = vmatpush1.msra.mxu0 %v3682
  %3721 = vmatprep.subr.mxu0 0.0
  %3722 = vmatpush1.msra.mxu0 %v3680
  %3723 = vmatprep.subr.mxu0 0.0
  %3724 = vmatpush1.msra.mxu0 %v3678
  %3725 = vmatprep.subr.mxu0 0.0
  %3726 = vmatpush1.msra.mxu0 %v3676
  %3727 = vmatprep.subr.mxu0 0.0
  %3728 = vmatpush1.msra.mxu0 %v3674
  %3729 = vmatprep.subr.mxu0 0.0
  %3730 = vmatpush1.msra.mxu0 %v3672
  %3731 = vmatprep.subr.mxu0 0.0
  %3732 = vmatpush1.msra.mxu0 %v3670
  %3733 = vmatprep.subr.mxu0 0.0
  %3734 = vmatpush1.msra.mxu0 %v3668
  %3735 = vmatprep.subr.mxu0 0.0
  %3736 = vmatpush1.msra.mxu0 %v3666
  %3737 = vmatprep.subr.mxu0 0.0
  %3738 = vmatpush1.msra.mxu0 %v3664
  %3739 = vmatprep.subr.mxu0 0.0
  %3740 = vmatpush1.msra.mxu0 %v3662
  %3741 = vmatprep.subr.mxu0 0.0
  %3742 = vmatpush2.msra.mxu0 0.0
  %3743 = vmatprep.subr.mxu0 0.0
  %3744 = vmatpush2.msra.mxu0 0.0
  %3745 = vmatprep.subr.mxu0 0.0
  %3746 = vmatpush2.msra.mxu0 0.0
  %3747 = vmatprep.subr.mxu0 0.0
  %3748 = vmatpush2.msra.mxu0 0.0
  %3749 = vmatprep.subr.mxu0 0.0
  %3750 = vmatpush2.msra.mxu0 0.0
  %3751 = vmatprep.subr.mxu0 0.0
  %3752 = vmatpush2.msra.mxu0 0.0
  %3753 = vmatprep.subr.mxu0 0.0
  %3754 = vmatpush2.msra.mxu0 0.0
  %3755 = vmatprep.subr.mxu0 0.0
  %3756 = vmatpush2.msra.mxu0 0.0
  %3757 = vmatprep.subr.mxu0 0.0
  %3758 = vmatpush2.msra.mxu0 0.0
  %3759 = vmatprep.subr.mxu0 0.0
  %3760 = vmatpush2.msra.mxu0 0.0
  %3761 = vmatprep.subr.mxu0 0.0
  %3762 = vmatpush2.msra.mxu0 0.0
  %3763 = vmatprep.subr.mxu0 0.0
  %3764 = vmatpush2.msra.mxu0 0.0
  %3765 = vmatprep.subr.mxu0 0.0
  %3766 = vmatpush2.msra.mxu0 0.0
  %3767 = vmatprep.subr.mxu0 0.0
  %3768 = vmatpush2.msra.mxu0 0.0
  %3769 = vmatprep.subr.mxu0 0.0
  %3770 = vmatpush2.msra.mxu0 0.0
  %3771 = vmatprep.subr.mxu0 0.0
  %3772 = vmatpush2.msra.mxu0 0.0
  %3773 = vmatprep.mubr.f32.mxu0 0.0
  %3774 = vmatmul.mubr.f32.gmra.mxu0 %v3645
  %v3775 = vpop.f32.mrf.mxu0
  %v3776 = vadd.f32 0.0, %v3775
  %v3777 = vpop.f32.mrf.mxu0
  %3778 = vmatprep.mubr.f32.mxu0 0.0
  %3779 = vmatmul.mubr.f32.gmra.mxu0 %v3646
  %v3780 = vpop.f32.mrf.mxu0
  %v3781 = vadd.f32 0.0, %v3780
  %v3782 = vpop.f32.mrf.mxu0
  %3783 = vmatprep.mubr.f32.mxu0 0.0
  %3784 = vmatmul.mubr.f32.gmra.mxu0 %v3647
  %v3785 = vpop.f32.mrf.mxu0
  %v3786 = vadd.f32 0.0, %v3785
  %v3787 = vpop.f32.mrf.mxu0
  %3788 = vmatprep.mubr.f32.mxu0 0.0
  %3789 = vmatmul.mubr.f32.gmra.mxu0 %v3648
  %v3790 = vpop.f32.mrf.mxu0
  %v3791 = vadd.f32 0.0, %v3790
  %v3792 = vpop.f32.mrf.mxu0
  %3793 = vmatprep.mubr.f32.mxu0 0.0
  %3794 = vmatmul.mubr.f32.gmra.mxu0 %v3649
  %v3795 = vpop.f32.mrf.mxu0
  %v3796 = vadd.f32 0.0, %v3795
  %v3797 = vpop.f32.mrf.mxu0
  %3798 = vmatprep.mubr.f32.mxu0 0.0
  %3799 = vmatmul.mubr.f32.gmra.mxu0 %v3650
  %v3800 = vpop.f32.mrf.mxu0
  %v3801 = vadd.f32 0.0, %v3800
  %v3802 = vpop.f32.mrf.mxu0
  %3803 = vmatprep.mubr.f32.mxu0 0.0
  %3804 = vmatmul.mubr.f32.gmra.mxu0 %v3651
  %v3805 = vpop.f32.mrf.mxu0
  %v3806 = vadd.f32 0.0, %v3805
  %v3807 = vpop.f32.mrf.mxu0
  %3808 = vmatprep.mubr.f32.mxu0 0.0
  %3809 = vmatmul.mubr.f32.gmra.mxu0 %v3652
  %v3810 = vpop.f32.mrf.mxu0
  %v3811 = vadd.f32 0.0, %v3810
  %v3812 = vpop.f32.mrf.mxu0
  %3813 = vmatprep.mubr.f32.mxu0 0.0
  %3814 = vmatmul.mubr.f32.gmra.mxu0 %v3653
  %v3815 = vpop.f32.mrf.mxu0
  %v3816 = vadd.f32 0.0, %v3815
  %v3817 = vpop.f32.mrf.mxu0
  %3818 = vmatprep.mubr.f32.mxu0 0.0
  %3819 = vmatmul.mubr.f32.gmra.mxu0 %v3654
  %v3820 = vpop.f32.mrf.mxu0
  %v3821 = vadd.f32 0.0, %v3820
  %v3822 = vpop.f32.mrf.mxu0
  %3823 = vmatprep.mubr.f32.mxu0 0.0
  %3824 = vmatmul.mubr.f32.gmra.mxu0 %v3655
  %v3825 = vpop.f32.mrf.mxu0
  %v3826 = vadd.f32 0.0, %v3825
  %v3827 = vpop.f32.mrf.mxu0
  %3828 = vmatprep.mubr.f32.mxu0 0.0
  %3829 = vmatmul.mubr.f32.gmra.mxu0 %v3656
  %v3830 = vpop.f32.mrf.mxu0
  %v3831 = vadd.f32 0.0, %v3830
  %v3832 = vpop.f32.mrf.mxu0
  %3833 = vmatprep.mubr.f32.mxu0 0.0
  %3834 = vmatmul.mubr.f32.gmra.mxu0 %v3657
  %v3835 = vpop.f32.mrf.mxu0
  %v3836 = vadd.f32 0.0, %v3835
  %v3837 = vpop.f32.mrf.mxu0
  %3838 = vmatprep.mubr.f32.mxu0 0.0
  %3839 = vmatmul.mubr.f32.gmra.mxu0 %v3658
  %v3840 = vpop.f32.mrf.mxu0
  %v3841 = vadd.f32 0.0, %v3840
  %v3842 = vpop.f32.mrf.mxu0
  %3843 = vmatprep.mubr.f32.mxu0 0.0
  %3844 = vmatmul.mubr.f32.gmra.mxu0 %v3659
  %v3845 = vpop.f32.mrf.mxu0
  %v3846 = vadd.f32 0.0, %v3845
  %v3847 = vpop.f32.mrf.mxu0
  %3848 = vmatprep.mubr.f32.mxu0 0.0
  %3849 = vmatmul.mubr.f32.gmra.mxu0 %v3660
  %v3850 = vpop.f32.mrf.mxu0
  %v3851 = vadd.f32 0.0, %v3850
  %v3852 = vpop.f32.mrf.mxu0
  %3853 = vdwg.mxu0
  %v3855 = vsel %vm754, %v3776, 0
  %v3858 = vsel %vm754, %v3781, 0
  %v3861 = vsel %vm754, %v3786, 0
  %v3864 = vsel %vm754, %v3791, 0
  %v3867 = vsel %vm754, %v3796, 0
  %v3870 = vsel %vm754, %v3801, 0
  %v3873 = vsel %vm754, %v3806, 0
  %v3876 = vsel %vm754, %v3811, 0
  %v3879 = vsel %vm754, %v3816, 0
  %v3882 = vsel %vm754, %v3821, 0
  %v3885 = vsel %vm754, %v3826, 0
  %v3888 = vsel %vm754, %v3831, 0
  %v3891 = vsel %vm754, %v3836, 0
  %v3894 = vsel %vm754, %v3841, 0
  %v3897 = vsel %vm754, %v3846, 0
  %v3900 = vsel %vm754, %v3851, 0
  %3902 = vmatprep.subr.mxu0 0.0
  %3903 = vmatpush1.msra.mxu0 0.0
  %3904 = vmatprep.subr.mxu0 0.0
  %3905 = vmatpush1.msra.mxu0 0.0
  %3906 = vmatprep.subr.mxu0 0.0
  %3907 = vmatpush1.msra.mxu0 0.0
  %3908 = vmatprep.subr.mxu0 0.0
  %3909 = vmatpush1.msra.mxu0 0.0
  %3910 = vmatprep.subr.mxu0 0.0
  %3911 = vmatpush1.msra.mxu0 0.0
  %3912 = vmatprep.subr.mxu0 0.0
  %3913 = vmatpush1.msra.mxu0 0.0
  %3914 = vmatprep.subr.mxu0 0.0
  %3915 = vmatpush1.msra.mxu0 0.0
  %3916 = vmatprep.subr.mxu0 0.0
  %3917 = vmatpush1.msra.mxu0 0.0
  %3918 = vmatprep.subr.mxu0 0.0
  %3919 = vmatpush1.msra.mxu0 0.0
  %3920 = vmatprep.subr.mxu0 0.0
  %3921 = vmatpush1.msra.mxu0 0.0
  %3922 = vmatprep.subr.mxu0 0.0
  %3923 = vmatpush1.msra.mxu0 0.0
  %3924 = vmatprep.subr.mxu0 0.0
  %3925 = vmatpush1.msra.mxu0 0.0
  %3926 = vmatprep.subr.mxu0 0.0
  %3927 = vmatpush1.msra.mxu0 0.0
  %3928 = vmatprep.subr.mxu0 0.0
  %3929 = vmatpush1.msra.mxu0 0.0
  %3930 = vmatprep.subr.mxu0 0.0
  %3931 = vmatpush1.msra.mxu0 0.0
  %3932 = vmatprep.subr.mxu0 0.0
  %3933 = vmatpush1.msra.mxu0 %v705
  %3934 = vmatprep.subr.mxu0 0.0
  %3935 = vmatpush2.msra.mxu0 0.0
  %3936 = vmatprep.subr.mxu0 0.0
  %3937 = vmatpush2.msra.mxu0 0.0
  %3938 = vmatprep.subr.mxu0 0.0
  %3939 = vmatpush2.msra.mxu0 0.0
  %3940 = vmatprep.subr.mxu0 0.0
  %3941 = vmatpush2.msra.mxu0 0.0
  %3942 = vmatprep.subr.mxu0 0.0
  %3943 = vmatpush2.msra.mxu0 0.0
  %3944 = vmatprep.subr.mxu0 0.0
  %3945 = vmatpush2.msra.mxu0 0.0
  %3946 = vmatprep.subr.mxu0 0.0
  %3947 = vmatpush2.msra.mxu0 0.0
  %3948 = vmatprep.subr.mxu0 0.0
  %3949 = vmatpush2.msra.mxu0 0.0
  %3950 = vmatprep.subr.mxu0 0.0
  %3951 = vmatpush2.msra.mxu0 0.0
  %3952 = vmatprep.subr.mxu0 0.0
  %3953 = vmatpush2.msra.mxu0 0.0
  %3954 = vmatprep.subr.mxu0 0.0
  %3955 = vmatpush2.msra.mxu0 0.0
  %3956 = vmatprep.subr.mxu0 0.0
  %3957 = vmatpush2.msra.mxu0 0.0
  %3958 = vmatprep.subr.mxu0 0.0
  %3959 = vmatpush2.msra.mxu0 0.0
  %3960 = vmatprep.subr.mxu0 0.0
  %3961 = vmatpush2.msra.mxu0 0.0
  %3962 = vmatprep.subr.mxu0 0.0
  %3963 = vmatpush2.msra.mxu0 0.0
  %3964 = vmatprep.subr.mxu0 0.0
  %3965 = vmatpush2.msra.mxu0 0.0
  %3966 = vmatprep.mubr.f32.mxu0 0.0
  %3967 = vmatmul.mubr.f32.gmra.mxu0 %v3855
  %v3968 = vpop.f32.mrf.mxu0
  %v3969 = vadd.f32 0.0, %v3968
  %v3970 = vpop.f32.mrf.mxu0
  %3971 = vmatprep.mubr.f32.mxu0 0.0
  %3972 = vmatmul.mubr.f32.gmra.mxu0 %v3858
  %v3973 = vpop.f32.mrf.mxu0
  %v3974 = vadd.f32 0.0, %v3973
  %v3975 = vpop.f32.mrf.mxu0
  %3976 = vmatprep.mubr.f32.mxu0 0.0
  %3977 = vmatmul.mubr.f32.gmra.mxu0 %v3861
  %v3978 = vpop.f32.mrf.mxu0
  %v3979 = vadd.f32 0.0, %v3978
  %v3980 = vpop.f32.mrf.mxu0
  %3981 = vmatprep.mubr.f32.mxu0 0.0
  %3982 = vmatmul.mubr.f32.gmra.mxu0 %v3864
  %v3983 = vpop.f32.mrf.mxu0
  %v3984 = vadd.f32 0.0, %v3983
  %v3985 = vpop.f32.mrf.mxu0
  %3986 = vmatprep.mubr.f32.mxu0 0.0
  %3987 = vmatmul.mubr.f32.gmra.mxu0 %v3867
  %v3988 = vpop.f32.mrf.mxu0
  %v3989 = vadd.f32 0.0, %v3988
  %v3990 = vpop.f32.mrf.mxu0
  %3991 = vmatprep.mubr.f32.mxu0 0.0
  %3992 = vmatmul.mubr.f32.gmra.mxu0 %v3870
  %v3993 = vpop.f32.mrf.mxu0
  %v3994 = vadd.f32 0.0, %v3993
  %v3995 = vpop.f32.mrf.mxu0
  %3996 = vmatprep.mubr.f32.mxu0 0.0
  %3997 = vmatmul.mubr.f32.gmra.mxu0 %v3873
  %v3998 = vpop.f32.mrf.mxu0
  %v3999 = vadd.f32 0.0, %v3998
  %v4000 = vpop.f32.mrf.mxu0
  %4001 = vmatprep.mubr.f32.mxu0 0.0
  %4002 = vmatmul.mubr.f32.gmra.mxu0 %v3876
  %v4003 = vpop.f32.mrf.mxu0
  %v4004 = vadd.f32 0.0, %v4003
  %v4005 = vpop.f32.mrf.mxu0
  %4006 = vmatprep.mubr.f32.mxu0 0.0
  %4007 = vmatmul.mubr.f32.gmra.mxu0 %v3879
  %v4008 = vpop.f32.mrf.mxu0
  %v4009 = vadd.f32 0.0, %v4008
  %v4010 = vpop.f32.mrf.mxu0
  %4011 = vmatprep.mubr.f32.mxu0 0.0
  %4012 = vmatmul.mubr.f32.gmra.mxu0 %v3882
  %v4013 = vpop.f32.mrf.mxu0
  %v4014 = vadd.f32 0.0, %v4013
  %v4015 = vpop.f32.mrf.mxu0
  %4016 = vmatprep.mubr.f32.mxu0 0.0
  %4017 = vmatmul.mubr.f32.gmra.mxu0 %v3885
  %v4018 = vpop.f32.mrf.mxu0
  %v4019 = vadd.f32 0.0, %v4018
  %v4020 = vpop.f32.mrf.mxu0
  %4021 = vmatprep.mubr.f32.mxu0 0.0
  %4022 = vmatmul.mubr.f32.gmra.mxu0 %v3888
  %v4023 = vpop.f32.mrf.mxu0
  %v4024 = vadd.f32 0.0, %v4023
  %v4025 = vpop.f32.mrf.mxu0
  %4026 = vmatprep.mubr.f32.mxu0 0.0
  %4027 = vmatmul.mubr.f32.gmra.mxu0 %v3891
  %v4028 = vpop.f32.mrf.mxu0
  %v4029 = vadd.f32 0.0, %v4028
  %v4030 = vpop.f32.mrf.mxu0
  %4031 = vmatprep.mubr.f32.mxu0 0.0
  %4032 = vmatmul.mubr.f32.gmra.mxu0 %v3894
  %v4033 = vpop.f32.mrf.mxu0
  %v4034 = vadd.f32 0.0, %v4033
  %v4035 = vpop.f32.mrf.mxu0
  %4036 = vmatprep.mubr.f32.mxu0 0.0
  %4037 = vmatmul.mubr.f32.gmra.mxu0 %v3897
  %v4038 = vpop.f32.mrf.mxu0
  %v4039 = vadd.f32 0.0, %v4038
  %v4040 = vpop.f32.mrf.mxu0
  %4041 = vmatprep.mubr.f32.mxu0 0.0
  %4042 = vmatmul.mubr.f32.gmra.mxu0 %v3900
  %v4043 = vpop.f32.mrf.mxu0
  %v4044 = vadd.f32 0.0, %v4043
  %v4045 = vpop.f32.mrf.mxu0
  %4046 = vdwg.mxu0
  %v4047 = vadd.f32 %v3196, %v3969
  %v4048 = vadd.f32 %v3197, %v3974
  %v4049 = vadd.f32 %v3198, %v3979
  %v4050 = vadd.f32 %v3199, %v3984
  %v4051 = vadd.f32 %v3200, %v3989
  %v4052 = vadd.f32 %v3201, %v3994
  %v4053 = vadd.f32 %v3202, %v3999
  %v4054 = vadd.f32 %v3203, %v4004
  %v4055 = vadd.f32 %v3204, %v4009
  %v4056 = vadd.f32 %v3205, %v4014
  %v4057 = vadd.f32 %v3206, %v4019
  %v4058 = vadd.f32 %v3207, %v4024
  %v4059 = vadd.f32 %v3208, %v4029
  %v4060 = vadd.f32 %v3209, %v4034
  %v4061 = vadd.f32 %v3210, %v4039
  %v4062 = vadd.f32 %v3211, %v4044
  %v4063 = vld [vmem:[%s8] sm:$0x1]
  %v4065 = vlaneseq
  %v4066 = vshrl.u32 %v4065, 7
  %v4067 = vsub.s32 0, %v4066
  %v4068 = vrot.slane %v4063, %v4067
  %v4070 = vadd.f32 %v4047, %v4068
  %v4071 = vadd.f32 %v4048, %v4068
  %v4072 = vadd.f32 %v4049, %v4068
  %v4073 = vadd.f32 %v4050, %v4068
  %v4074 = vadd.f32 %v4051, %v4068
  %v4075 = vadd.f32 %v4052, %v4068
  %v4076 = vadd.f32 %v4053, %v4068
  %v4077 = vadd.f32 %v4054, %v4068
  %v4078 = vadd.f32 %v4055, %v4068
  %v4079 = vadd.f32 %v4056, %v4068
  %v4080 = vadd.f32 %v4057, %v4068
  %v4081 = vadd.f32 %v4058, %v4068
  %v4082 = vadd.f32 %v4059, %v4068
  %v4083 = vadd.f32 %v4060, %v4068
  %v4084 = vadd.f32 %v4061, %v4068
  %v4085 = vadd.f32 %v4062, %v4068
  %4102 = vrot.lane.b32.xlu0 %v4070, 64
  %v4103 = vpop.permute.xlu0 %4102
  %4104 = vrot.lane.b32.xlu0 %v4071, 64
  %v4105 = vpop.permute.xlu0 %4104
  %4106 = vrot.lane.b32.xlu0 %v4072, 64
  %v4107 = vpop.permute.xlu0 %4106
  %4108 = vrot.lane.b32.xlu0 %v4073, 64
  %v4109 = vpop.permute.xlu0 %4108
  %4110 = vrot.lane.b32.xlu0 %v4074, 64
  %v4111 = vpop.permute.xlu0 %4110
  %4112 = vrot.lane.b32.xlu0 %v4075, 64
  %v4113 = vpop.permute.xlu0 %4112
  %4114 = vrot.lane.b32.xlu0 %v4076, 64
  %v4115 = vpop.permute.xlu0 %4114
  %4116 = vrot.lane.b32.xlu0 %v4077, 64
  %v4117 = vpop.permute.xlu0 %4116
  %4118 = vrot.lane.b32.xlu0 %v4078, 64
  %v4119 = vpop.permute.xlu0 %4118
  %4120 = vrot.lane.b32.xlu0 %v4079, 64
  %v4121 = vpop.permute.xlu0 %4120
  %4122 = vrot.lane.b32.xlu0 %v4080, 64
  %v4123 = vpop.permute.xlu0 %4122
  %4124 = vrot.lane.b32.xlu0 %v4081, 64
  %v4125 = vpop.permute.xlu0 %4124
  %4126 = vrot.lane.b32.xlu0 %v4082, 64
  %v4127 = vpop.permute.xlu0 %4126
  %4128 = vrot.lane.b32.xlu0 %v4083, 64
  %v4129 = vpop.permute.xlu0 %4128
  %4130 = vrot.lane.b32.xlu0 %v4084, 64
  %v4131 = vpop.permute.xlu0 %4130
  %4132 = vrot.lane.b32.xlu0 %v4085, 64
  %v4133 = vpop.permute.xlu0 %4132
  %v4150 = vmul.f32 %v459, %v4103
  %v4151 = vmul.f32 %v459, %v4105
  %v4152 = vmul.f32 %v459, %v4107
  %v4153 = vmul.f32 %v459, %v4109
  %v4154 = vmul.f32 %v459, %v4111
  %v4155 = vmul.f32 %v459, %v4113
  %v4156 = vmul.f32 %v459, %v4115
  %v4157 = vmul.f32 %v459, %v4117
  %v4158 = vmul.f32 %v463, %v4119
  %v4159 = vmul.f32 %v463, %v4121
  %v4160 = vmul.f32 %v463, %v4123
  %v4161 = vmul.f32 %v463, %v4125
  %v4162 = vmul.f32 %v463, %v4127
  %v4163 = vmul.f32 %v463, %v4129
  %v4164 = vmul.f32 %v463, %v4131
  %v4165 = vmul.f32 %v463, %v4133
  %4182 = vrot.lane.b32.xlu0 %v4150, 64
  %v4183 = vpop.permute.xlu0 %4182
  %4184 = vrot.lane.b32.xlu0 %v4151, 64
  %v4185 = vpop.permute.xlu0 %4184
  %4186 = vrot.lane.b32.xlu0 %v4152, 64
  %v4187 = vpop.permute.xlu0 %4186
  %4188 = vrot.lane.b32.xlu0 %v4153, 64
  %v4189 = vpop.permute.xlu0 %4188
  %4190 = vrot.lane.b32.xlu0 %v4154, 64
  %v4191 = vpop.permute.xlu0 %4190
  %4192 = vrot.lane.b32.xlu0 %v4155, 64
  %v4193 = vpop.permute.xlu0 %4192
  %4194 = vrot.lane.b32.xlu0 %v4156, 64
  %v4195 = vpop.permute.xlu0 %4194
  %4196 = vrot.lane.b32.xlu0 %v4157, 64
  %v4197 = vpop.permute.xlu0 %4196
  %4198 = vrot.lane.b32.xlu0 %v4158, 64
  %v4199 = vpop.permute.xlu0 %4198
  %4200 = vrot.lane.b32.xlu0 %v4159, 64
  %v4201 = vpop.permute.xlu0 %4200
  %4202 = vrot.lane.b32.xlu0 %v4160, 64
  %v4203 = vpop.permute.xlu0 %4202
  %4204 = vrot.lane.b32.xlu0 %v4161, 64
  %v4205 = vpop.permute.xlu0 %4204
  %4206 = vrot.lane.b32.xlu0 %v4162, 64
  %v4207 = vpop.permute.xlu0 %4206
  %4208 = vrot.lane.b32.xlu0 %v4163, 64
  %v4209 = vpop.permute.xlu0 %4208
  %4210 = vrot.lane.b32.xlu0 %v4164, 64
  %v4211 = vpop.permute.xlu0 %4210
  %4212 = vrot.lane.b32.xlu0 %v4165, 64
  %v4213 = vpop.permute.xlu0 %4212
  %v4230 = vadd.f32 %v44, %v4183
  %v4231 = vadd.f32 %v45, %v4185
  %v4232 = vadd.f32 %v46, %v4187
  %v4233 = vadd.f32 %v47, %v4189
  %v4234 = vadd.f32 %v48, %v4191
  %v4235 = vadd.f32 %v49, %v4193
  %v4236 = vadd.f32 %v50, %v4195
  %v4237 = vadd.f32 %v51, %v4197
  %v4238 = vadd.f32 %v52, %v4199
  %v4239 = vadd.f32 %v53, %v4201
  %v4240 = vadd.f32 %v54, %v4203
  %v4241 = vadd.f32 %v55, %v4205
  %v4242 = vadd.f32 %v56, %v4207
  %v4243 = vadd.f32 %v57, %v4209
  %v4244 = vadd.f32 %v58, %v4211
  %v4245 = vadd.f32 %v59, %v4213
  %v4246 = vsel %vm88, %v4230, 0.0
  %4247 = vadd.xlane.f32.xlu0 %v4246
  %v4248 = vpop.xlane.xlu0 %4247
  %v4249 = vsel %vm88, %v4231, 0.0
  %4250 = vadd.xlane.f32.xlu0 %v4249
  %v4251 = vpop.xlane.xlu0 %4250
  %v4252 = vsel %vm88, %v4232, 0.0
  %4253 = vadd.xlane.f32.xlu0 %v4252
  %v4254 = vpop.xlane.xlu0 %4253
  %v4255 = vsel %vm88, %v4233, 0.0
  %4256 = vadd.xlane.f32.xlu0 %v4255
  %v4257 = vpop.xlane.xlu0 %4256
  %v4258 = vsel %vm88, %v4234, 0.0
  %4259 = vadd.xlane.f32.xlu0 %v4258
  %v4260 = vpop.xlane.xlu0 %4259
  %v4261 = vsel %vm88, %v4235, 0.0
  %4262 = vadd.xlane.f32.xlu0 %v4261
  %v4263 = vpop.xlane.xlu0 %4262
  %v4264 = vsel %vm88, %v4236, 0.0
  %4265 = vadd.xlane.f32.xlu0 %v4264
  %v4266 = vpop.xlane.xlu0 %4265
  %v4267 = vsel %vm88, %v4237, 0.0
  %4268 = vadd.xlane.f32.xlu0 %v4267
  %v4269 = vpop.xlane.xlu0 %4268
  %v4270 = vsel %vm88, %v4238, 0.0
  %4271 = vadd.xlane.f32.xlu0 %v4270
  %v4272 = vpop.xlane.xlu0 %4271
  %v4273 = vsel %vm88, %v4239, 0.0
  %4274 = vadd.xlane.f32.xlu0 %v4273
  %v4275 = vpop.xlane.xlu0 %4274
  %v4276 = vsel %vm88, %v4240, 0.0
  %4277 = vadd.xlane.f32.xlu0 %v4276
  %v4278 = vpop.xlane.xlu0 %4277
  %v4279 = vsel %vm88, %v4241, 0.0
  %4280 = vadd.xlane.f32.xlu0 %v4279
  %v4281 = vpop.xlane.xlu0 %4280
  %v4282 = vsel %vm88, %v4242, 0.0
  %4283 = vadd.xlane.f32.xlu0 %v4282
  %v4284 = vpop.xlane.xlu0 %4283
  %v4285 = vsel %vm88, %v4243, 0.0
  %4286 = vadd.xlane.f32.xlu0 %v4285
  %v4287 = vpop.xlane.xlu0 %4286
  %v4288 = vsel %vm88, %v4244, 0.0
  %4289 = vadd.xlane.f32.xlu0 %v4288
  %v4290 = vpop.xlane.xlu0 %4289
  %v4291 = vsel %vm88, %v4245, 0.0
  %4292 = vadd.xlane.f32.xlu0 %v4291
  %v4293 = vpop.xlane.xlu0 %4292
  %v4294 = vmul.f32 %v4248, %v261
  %v4295 = vmul.f32 %v4251, %v261
  %v4296 = vmul.f32 %v4254, %v261
  %v4297 = vmul.f32 %v4257, %v261
  %v4298 = vmul.f32 %v4260, %v261
  %v4299 = vmul.f32 %v4263, %v261
  %v4300 = vmul.f32 %v4266, %v261
  %v4301 = vmul.f32 %v4269, %v261
  %v4302 = vmul.f32 %v4272, %v261
  %v4303 = vmul.f32 %v4275, %v261
  %v4304 = vmul.f32 %v4278, %v261
  %v4305 = vmul.f32 %v4281, %v261
  %v4306 = vmul.f32 %v4284, %v261
  %v4307 = vmul.f32 %v4287, %v261
  %v4308 = vmul.f32 %v4290, %v261
  %v4309 = vmul.f32 %v4293, %v261
  %v4310 = vsub.f32 %v4230, %v4294
  %v4311 = vsub.f32 %v4231, %v4295
  %v4312 = vsub.f32 %v4232, %v4296
  %v4313 = vsub.f32 %v4233, %v4297
  %v4314 = vsub.f32 %v4234, %v4298
  %v4315 = vsub.f32 %v4235, %v4299
  %v4316 = vsub.f32 %v4236, %v4300
  %v4317 = vsub.f32 %v4237, %v4301
  %v4318 = vsub.f32 %v4238, %v4302
  %v4319 = vsub.f32 %v4239, %v4303
  %v4320 = vsub.f32 %v4240, %v4304
  %v4321 = vsub.f32 %v4241, %v4305
  %v4322 = vsub.f32 %v4242, %v4306
  %v4323 = vsub.f32 %v4243, %v4307
  %v4324 = vsub.f32 %v4244, %v4308
  %v4325 = vsub.f32 %v4245, %v4309
  %v4326 = vmul.f32 %v4310, %v4310
  %v4327 = vmul.f32 %v4311, %v4311
  %v4328 = vmul.f32 %v4312, %v4312
  %v4329 = vmul.f32 %v4313, %v4313
  %v4330 = vmul.f32 %v4314, %v4314
  %v4331 = vmul.f32 %v4315, %v4315
  %v4332 = vmul.f32 %v4316, %v4316
  %v4333 = vmul.f32 %v4317, %v4317
  %v4334 = vmul.f32 %v4318, %v4318
  %v4335 = vmul.f32 %v4319, %v4319
  %v4336 = vmul.f32 %v4320, %v4320
  %v4337 = vmul.f32 %v4321, %v4321
  %v4338 = vmul.f32 %v4322, %v4322
  %v4339 = vmul.f32 %v4323, %v4323
  %v4340 = vmul.f32 %v4324, %v4324
  %v4341 = vmul.f32 %v4325, %v4325
  %v4342 = vsel %vm88, %v4326, 0.0
  %4343 = vadd.xlane.f32.xlu0 %v4342
  %v4344 = vpop.xlane.xlu0 %4343
  %v4345 = vsel %vm88, %v4327, 0.0
  %4346 = vadd.xlane.f32.xlu0 %v4345
  %v4347 = vpop.xlane.xlu0 %4346
  %v4348 = vsel %vm88, %v4328, 0.0
  %4349 = vadd.xlane.f32.xlu0 %v4348
  %v4350 = vpop.xlane.xlu0 %4349
  %v4351 = vsel %vm88, %v4329, 0.0
  %4352 = vadd.xlane.f32.xlu0 %v4351
  %v4353 = vpop.xlane.xlu0 %4352
  %v4354 = vsel %vm88, %v4330, 0.0
  %4355 = vadd.xlane.f32.xlu0 %v4354
  %v4356 = vpop.xlane.xlu0 %4355
  %v4357 = vsel %vm88, %v4331, 0.0
  %4358 = vadd.xlane.f32.xlu0 %v4357
  %v4359 = vpop.xlane.xlu0 %4358
  %v4360 = vsel %vm88, %v4332, 0.0
  %4361 = vadd.xlane.f32.xlu0 %v4360
  %v4362 = vpop.xlane.xlu0 %4361
  %v4363 = vsel %vm88, %v4333, 0.0
  %4364 = vadd.xlane.f32.xlu0 %v4363
  %v4365 = vpop.xlane.xlu0 %4364
  %v4366 = vsel %vm88, %v4334, 0.0
  %4367 = vadd.xlane.f32.xlu0 %v4366
  %v4368 = vpop.xlane.xlu0 %4367
  %v4369 = vsel %vm88, %v4335, 0.0
  %4370 = vadd.xlane.f32.xlu0 %v4369
  %v4371 = vpop.xlane.xlu0 %4370
  %v4372 = vsel %vm88, %v4336, 0.0
  %4373 = vadd.xlane.f32.xlu0 %v4372
  %v4374 = vpop.xlane.xlu0 %4373
  %v4375 = vsel %vm88, %v4337, 0.0
  %4376 = vadd.xlane.f32.xlu0 %v4375
  %v4377 = vpop.xlane.xlu0 %4376
  %v4378 = vsel %vm88, %v4338, 0.0
  %4379 = vadd.xlane.f32.xlu0 %v4378
  %v4380 = vpop.xlane.xlu0 %4379
  %v4381 = vsel %vm88, %v4339, 0.0
  %4382 = vadd.xlane.f32.xlu0 %v4381
  %v4383 = vpop.xlane.xlu0 %4382
  %v4384 = vsel %vm88, %v4340, 0.0
  %4385 = vadd.xlane.f32.xlu0 %v4384
  %v4386 = vpop.xlane.xlu0 %4385
  %v4387 = vsel %vm88, %v4341, 0.0
  %4388 = vadd.xlane.f32.xlu0 %v4387
  %v4389 = vpop.xlane.xlu0 %4388
  %v4390 = vmul.f32 %v4344, %v261
  %v4391 = vmul.f32 %v4347, %v261
  %v4392 = vmul.f32 %v4350, %v261
  %v4393 = vmul.f32 %v4353, %v261
  %v4394 = vmul.f32 %v4356, %v261
  %v4395 = vmul.f32 %v4359, %v261
  %v4396 = vmul.f32 %v4362, %v261
  %v4397 = vmul.f32 %v4365, %v261
  %v4398 = vmul.f32 %v4368, %v261
  %v4399 = vmul.f32 %v4371, %v261
  %v4400 = vmul.f32 %v4374, %v261
  %v4401 = vmul.f32 %v4377, %v261
  %v4402 = vmul.f32 %v4380, %v261
  %v4403 = vmul.f32 %v4383, %v261
  %v4404 = vmul.f32 %v4386, %v261
  %v4405 = vmul.f32 %v4389, %v261
  %v4406 = vadd.f32 %v4390, 1e-06
  %v4407 = vadd.f32 %v4391, 1e-06
  %v4408 = vadd.f32 %v4392, 1e-06
  %v4409 = vadd.f32 %v4393, 1e-06
  %v4410 = vadd.f32 %v4394, 1e-06
  %v4411 = vadd.f32 %v4395, 1e-06
  %v4412 = vadd.f32 %v4396, 1e-06
  %v4413 = vadd.f32 %v4397, 1e-06
  %v4414 = vadd.f32 %v4398, 1e-06
  %v4415 = vadd.f32 %v4399, 1e-06
  %v4416 = vadd.f32 %v4400, 1e-06
  %v4417 = vadd.f32 %v4401, 1e-06
  %v4418 = vadd.f32 %v4402, 1e-06
  %v4419 = vadd.f32 %v4403, 1e-06
  %v4420 = vadd.f32 %v4404, 1e-06
  %v4421 = vadd.f32 %v4405, 1e-06
  %v4422 = vrsqrt.pop %v4406
  %v4423 = vrsqrt.pop %v4407
  %v4424 = vrsqrt.pop %v4408
  %v4425 = vrsqrt.pop %v4409
  %v4426 = vrsqrt.pop %v4410
  %v4427 = vrsqrt.pop %v4411
  %v4428 = vrsqrt.pop %v4412
  %v4429 = vrsqrt.pop %v4413
  %v4430 = vrsqrt.pop %v4414
  %v4431 = vrsqrt.pop %v4415
  %v4432 = vrsqrt.pop %v4416
  %v4433 = vrsqrt.pop %v4417
  %v4434 = vrsqrt.pop %v4418
  %v4435 = vrsqrt.pop %v4419
  %v4436 = vrsqrt.pop %v4420
  %v4437 = vrsqrt.pop %v4421
  %v4438 = vmul.f32 %v4310, %v4422
  %v4439 = vmul.f32 %v4311, %v4423
  %v4440 = vmul.f32 %v4312, %v4424
  %v4441 = vmul.f32 %v4313, %v4425
  %v4442 = vmul.f32 %v4314, %v4426
  %v4443 = vmul.f32 %v4315, %v4427
  %v4444 = vmul.f32 %v4316, %v4428
  %v4445 = vmul.f32 %v4317, %v4429
  %v4446 = vmul.f32 %v4318, %v4430
  %v4447 = vmul.f32 %v4319, %v4431
  %v4448 = vmul.f32 %v4320, %v4432
  %v4449 = vmul.f32 %v4321, %v4433
  %v4450 = vmul.f32 %v4322, %v4434
  %v4451 = vmul.f32 %v4323, %v4435
  %v4452 = vmul.f32 %v4324, %v4436
  %v4453 = vmul.f32 %v4325, %v4437
  %v4454 = vadd.f32 %v203, 1.0
  %v4455 = vadd.f32 %v210, 1.0
  %v4458 = vlaneseq
  %v4459 = vshrl.u32 %v4458, 7
  %v4460 = vsub.s32 0, %v4459
  %v4461 = vrot.slane %v4454, %v4460
  %v4462 = vlaneseq
  %v4463 = vshrl.u32 %v4462, 7
  %v4464 = vsub.s32 0, %v4463
  %v4465 = vrot.slane %v4455, %v4464
  %v4468 = vmul.f32 %v4438, %v4461
  %v4469 = vmul.f32 %v4439, %v4461
  %v4470 = vmul.f32 %v4440, %v4461
  %v4471 = vmul.f32 %v4441, %v4461
  %v4472 = vmul.f32 %v4442, %v4461
  %v4473 = vmul.f32 %v4443, %v4461
  %v4474 = vmul.f32 %v4444, %v4461
  %v4475 = vmul.f32 %v4445, %v4461
  %v4476 = vmul.f32 %v4446, %v4465
  %v4477 = vmul.f32 %v4447, %v4465
  %v4478 = vmul.f32 %v4448, %v4465
  %v4479 = vmul.f32 %v4449, %v4465
  %v4480 = vmul.f32 %v4450, %v4465
  %v4481 = vmul.f32 %v4451, %v4465
  %v4482 = vmul.f32 %v4452, %v4465
  %v4483 = vmul.f32 %v4453, %v4465
  %4484 = vrot.lane.b32.xlu0 %v459, 32
  %v4485 = vpop.permute.xlu0 %4484
  %4486 = vrot.lane.b32.xlu0 %v463, 32
  %v4487 = vpop.permute.xlu0 %4486
  %v4490 = vadd.f32 %v4468, %v4485
  %v4491 = vadd.f32 %v4469, %v4485
  %v4492 = vadd.f32 %v4470, %v4485
  %v4493 = vadd.f32 %v4471, %v4485
  %v4494 = vadd.f32 %v4472, %v4485
  %v4495 = vadd.f32 %v4473, %v4485
  %v4496 = vadd.f32 %v4474, %v4485
  %v4497 = vadd.f32 %v4475, %v4485
  %v4498 = vadd.f32 %v4476, %v4487
  %v4499 = vadd.f32 %v4477, %v4487
  %v4500 = vadd.f32 %v4478, %v4487
  %v4501 = vadd.f32 %v4479, %v4487
  %v4502 = vadd.f32 %v4480, %v4487
  %v4503 = vadd.f32 %v4481, %v4487
  %v4504 = vadd.f32 %v4482, %v4487
  %v4505 = vadd.f32 %v4483, %v4487
  %v4506 = vld [vmem:[%s9] sm:$0xff]
  %v4507 = vld [vmem:[%s9 + $0x8] sm:$0xff]
  %v4508 = vld [vmem:[%s9 + $0x10] sm:$0xff]
  %v4509 = vld [vmem:[%s9 + $0x18] sm:$0xff]
  %v4510 = vld [vmem:[%s10] sm:$0x1]
  %v4512 = vlaneseq
  %v4513 = vshrl.u32 %v4512, 7
  %v4514 = vsub.s32 0, %v4513
  %v4515 = vrot.slane %v4510, %v4514
  %v4518 = vsel %vm88, %v4490, 0
  %v4521 = vsel %vm88, %v4491, 0
  %v4524 = vsel %vm88, %v4492, 0
  %v4527 = vsel %vm88, %v4493, 0
  %v4530 = vsel %vm88, %v4494, 0
  %v4533 = vsel %vm88, %v4495, 0
  %v4536 = vsel %vm88, %v4496, 0
  %v4539 = vsel %vm88, %v4497, 0
  %v4542 = vsel %vm88, %v4498, 0
  %v4545 = vsel %vm88, %v4499, 0
  %v4548 = vsel %vm88, %v4500, 0
  %v4551 = vsel %vm88, %v4501, 0
  %v4554 = vsel %vm88, %v4502, 0
  %v4557 = vsel %vm88, %v4503, 0
  %v4560 = vsel %vm88, %v4504, 0
  %v4563 = vsel %vm88, %v4505, 0
  %4565 = vmatprep.subr.mxu0 0.0
  %4566 = vmatpush1.msra.mxu0 0.0
  %4567 = vmatprep.subr.mxu0 0.0
  %4568 = vmatpush1.msra.mxu0 0.0
  %4569 = vmatprep.subr.mxu0 0.0
  %4570 = vmatpush1.msra.mxu0 0.0
  %4571 = vmatprep.subr.mxu0 0.0
  %4572 = vmatpush1.msra.mxu0 0.0
  %4573 = vmatprep.subr.mxu0 0.0
  %4574 = vmatpush1.msra.mxu0 0.0
  %4575 = vmatprep.subr.mxu0 0.0
  %4576 = vmatpush1.msra.mxu0 0.0
  %4577 = vmatprep.subr.mxu0 0.0
  %4578 = vmatpush1.msra.mxu0 0.0
  %4579 = vmatprep.subr.mxu0 0.0
  %4580 = vmatpush1.msra.mxu0 0.0
  %4581 = vmatprep.subr.mxu0 0.0
  %4582 = vmatpush1.msra.mxu0 0.0
  %4583 = vmatprep.subr.mxu0 0.0
  %4584 = vmatpush1.msra.mxu0 0.0
  %4585 = vmatprep.subr.mxu0 0.0
  %4586 = vmatpush1.msra.mxu0 0.0
  %4587 = vmatprep.subr.mxu0 0.0
  %4588 = vmatpush1.msra.mxu0 0.0
  %4589 = vmatprep.subr.mxu0 0.0
  %4590 = vmatpush1.msra.mxu0 %v4509
  %4591 = vmatprep.subr.mxu0 0.0
  %4592 = vmatpush1.msra.mxu0 %v4508
  %4593 = vmatprep.subr.mxu0 0.0
  %4594 = vmatpush1.msra.mxu0 %v4507
  %4595 = vmatprep.subr.mxu0 0.0
  %4596 = vmatpush1.msra.mxu0 %v4506
  %4597 = vmatprep.subr.mxu0 0.0
  %4598 = vmatpush2.msra.mxu0 0.0
  %4599 = vmatprep.subr.mxu0 0.0
  %4600 = vmatpush2.msra.mxu0 0.0
  %4601 = vmatprep.subr.mxu0 0.0
  %4602 = vmatpush2.msra.mxu0 0.0
  %4603 = vmatprep.subr.mxu0 0.0
  %4604 = vmatpush2.msra.mxu0 0.0
  %4605 = vmatprep.subr.mxu0 0.0
  %4606 = vmatpush2.msra.mxu0 0.0
  %4607 = vmatprep.subr.mxu0 0.0
  %4608 = vmatpush2.msra.mxu0 0.0
  %4609 = vmatprep.subr.mxu0 0.0
  %4610 = vmatpush2.msra.mxu0 0.0
  %4611 = vmatprep.subr.mxu0 0.0
  %4612 = vmatpush2.msra.mxu0 0.0
  %4613 = vmatprep.subr.mxu0 0.0
  %4614 = vmatpush2.msra.mxu0 0.0
  %4615 = vmatprep.subr.mxu0 0.0
  %4616 = vmatpush2.msra.mxu0 0.0
  %4617 = vmatprep.subr.mxu0 0.0
  %4618 = vmatpush2.msra.mxu0 0.0
  %4619 = vmatprep.subr.mxu0 0.0
  %4620 = vmatpush2.msra.mxu0 0.0
  %4621 = vmatprep.subr.mxu0 0.0
  %4622 = vmatpush2.msra.mxu0 0.0
  %4623 = vmatprep.subr.mxu0 0.0
  %4624 = vmatpush2.msra.mxu0 0.0
  %4625 = vmatprep.subr.mxu0 0.0
  %4626 = vmatpush2.msra.mxu0 0.0
  %4627 = vmatprep.subr.mxu0 0.0
  %4628 = vmatpush2.msra.mxu0 0.0
  %4629 = vmatprep.mubr.f32.mxu0 0.0
  %4630 = vmatmul.mubr.f32.gmra.mxu0 %v4518
  %v4631 = vpop.f32.mrf.mxu0
  %v4632 = vadd.f32 %v4515, %v4631
  %v4633 = vpop.f32.mrf.mxu0
  %4634 = vmatprep.mubr.f32.mxu0 0.0
  %4635 = vmatmul.mubr.f32.gmra.mxu0 %v4521
  %v4636 = vpop.f32.mrf.mxu0
  %v4637 = vadd.f32 %v4515, %v4636
  %v4638 = vpop.f32.mrf.mxu0
  %4639 = vmatprep.mubr.f32.mxu0 0.0
  %4640 = vmatmul.mubr.f32.gmra.mxu0 %v4524
  %v4641 = vpop.f32.mrf.mxu0
  %v4642 = vadd.f32 %v4515, %v4641
  %v4643 = vpop.f32.mrf.mxu0
  %4644 = vmatprep.mubr.f32.mxu0 0.0
  %4645 = vmatmul.mubr.f32.gmra.mxu0 %v4527
  %v4646 = vpop.f32.mrf.mxu0
  %v4647 = vadd.f32 %v4515, %v4646
  %v4648 = vpop.f32.mrf.mxu0
  %4649 = vmatprep.mubr.f32.mxu0 0.0
  %4650 = vmatmul.mubr.f32.gmra.mxu0 %v4530
  %v4651 = vpop.f32.mrf.mxu0
  %v4652 = vadd.f32 %v4515, %v4651
  %v4653 = vpop.f32.mrf.mxu0
  %4654 = vmatprep.mubr.f32.mxu0 0.0
  %4655 = vmatmul.mubr.f32.gmra.mxu0 %v4533
  %v4656 = vpop.f32.mrf.mxu0
  %v4657 = vadd.f32 %v4515, %v4656
  %v4658 = vpop.f32.mrf.mxu0
  %4659 = vmatprep.mubr.f32.mxu0 0.0
  %4660 = vmatmul.mubr.f32.gmra.mxu0 %v4536
  %v4661 = vpop.f32.mrf.mxu0
  %v4662 = vadd.f32 %v4515, %v4661
  %v4663 = vpop.f32.mrf.mxu0
  %4664 = vmatprep.mubr.f32.mxu0 0.0
  %4665 = vmatmul.mubr.f32.gmra.mxu0 %v4539
  %v4666 = vpop.f32.mrf.mxu0
  %v4667 = vadd.f32 %v4515, %v4666
  %v4668 = vpop.f32.mrf.mxu0
  %4669 = vmatprep.mubr.f32.mxu0 0.0
  %4670 = vmatmul.mubr.f32.gmra.mxu0 %v4542
  %v4671 = vpop.f32.mrf.mxu0
  %v4672 = vadd.f32 %v4515, %v4671
  %v4673 = vpop.f32.mrf.mxu0
  %4674 = vmatprep.mubr.f32.mxu0 0.0
  %4675 = vmatmul.mubr.f32.gmra.mxu0 %v4545
  %v4676 = vpop.f32.mrf.mxu0
  %v4677 = vadd.f32 %v4515, %v4676
  %v4678 = vpop.f32.mrf.mxu0
  %4679 = vmatprep.mubr.f32.mxu0 0.0
  %4680 = vmatmul.mubr.f32.gmra.mxu0 %v4548
  %v4681 = vpop.f32.mrf.mxu0
  %v4682 = vadd.f32 %v4515, %v4681
  %v4683 = vpop.f32.mrf.mxu0
  %4684 = vmatprep.mubr.f32.mxu0 0.0
  %4685 = vmatmul.mubr.f32.gmra.mxu0 %v4551
  %v4686 = vpop.f32.mrf.mxu0
  %v4687 = vadd.f32 %v4515, %v4686
  %v4688 = vpop.f32.mrf.mxu0
  %4689 = vmatprep.mubr.f32.mxu0 0.0
  %4690 = vmatmul.mubr.f32.gmra.mxu0 %v4554
  %v4691 = vpop.f32.mrf.mxu0
  %v4692 = vadd.f32 %v4515, %v4691
  %v4693 = vpop.f32.mrf.mxu0
  %4694 = vmatprep.mubr.f32.mxu0 0.0
  %4695 = vmatmul.mubr.f32.gmra.mxu0 %v4557
  %v4696 = vpop.f32.mrf.mxu0
  %v4697 = vadd.f32 %v4515, %v4696
  %v4698 = vpop.f32.mrf.mxu0
  %4699 = vmatprep.mubr.f32.mxu0 0.0
  %4700 = vmatmul.mubr.f32.gmra.mxu0 %v4560
  %v4701 = vpop.f32.mrf.mxu0
  %v4702 = vadd.f32 %v4515, %v4701
  %v4703 = vpop.f32.mrf.mxu0
  %4704 = vmatprep.mubr.f32.mxu0 0.0
  %4705 = vmatmul.mubr.f32.gmra.mxu0 %v4563
  %v4706 = vpop.f32.mrf.mxu0
  %v4707 = vadd.f32 %v4515, %v4706
  %v4708 = vpop.f32.mrf.mxu0
  %4709 = vdwg.mxu0
  %v4710 = vmul.f32 %v4632, 0.5
  %v4711 = vmul.f32 %v4637, 0.5
  %v4712 = vmul.f32 %v4642, 0.5
  %v4713 = vmul.f32 %v4647, 0.5
  %v4714 = vmul.f32 %v4652, 0.5
  %v4715 = vmul.f32 %v4657, 0.5
  %v4716 = vmul.f32 %v4662, 0.5
  %v4717 = vmul.f32 %v4667, 0.5
  %v4718 = vmul.f32 %v4672, 0.5
  %v4719 = vmul.f32 %v4677, 0.5
  %v4720 = vmul.f32 %v4682, 0.5
  %v4721 = vmul.f32 %v4687, 0.5
  %v4722 = vmul.f32 %v4692, 0.5
  %v4723 = vmul.f32 %v4697, 0.5
  %v4724 = vmul.f32 %v4702, 0.5
  %v4725 = vmul.f32 %v4707, 0.5
  %v4726 = vmul.f32 %v4632, 0.70710677
  %v4727 = vmul.f32 %v4637, 0.70710677
  %v4728 = vmul.f32 %v4642, 0.70710677
  %v4729 = vmul.f32 %v4647, 0.70710677
  %v4730 = vmul.f32 %v4652, 0.70710677
  %v4731 = vmul.f32 %v4657, 0.70710677
  %v4732 = vmul.f32 %v4662, 0.70710677
  %v4733 = vmul.f32 %v4667, 0.70710677
  %v4734 = vmul.f32 %v4672, 0.70710677
  %v4735 = vmul.f32 %v4677, 0.70710677
  %v4736 = vmul.f32 %v4682, 0.70710677
  %v4737 = vmul.f32 %v4687, 0.70710677
  %v4738 = vmul.f32 %v4692, 0.70710677
  %v4739 = vmul.f32 %v4697, 0.70710677
  %v4740 = vmul.f32 %v4702, 0.70710677
  %v4741 = vmul.f32 %v4707, 0.70710677
  %v4742 = verf.f32.pop %v4726
  %v4743 = verf.f32.pop %v4727
  %v4744 = verf.f32.pop %v4728
  %v4745 = verf.f32.pop %v4729
  %v4746 = verf.f32.pop %v4730
  %v4747 = verf.f32.pop %v4731
  %v4748 = verf.f32.pop %v4732
  %v4749 = verf.f32.pop %v4733
  %v4750 = verf.f32.pop %v4734
  %v4751 = verf.f32.pop %v4735
  %v4752 = verf.f32.pop %v4736
  %v4753 = verf.f32.pop %v4737
  %v4754 = verf.f32.pop %v4738
  %v4755 = verf.f32.pop %v4739
  %v4756 = verf.f32.pop %v4740
  %v4757 = verf.f32.pop %v4741
  %v4758 = vadd.f32 %v4742, 1.0
  %v4759 = vadd.f32 %v4743, 1.0
  %v4760 = vadd.f32 %v4744, 1.0
  %v4761 = vadd.f32 %v4745, 1.0
  %v4762 = vadd.f32 %v4746, 1.0
  %v4763 = vadd.f32 %v4747, 1.0
  %v4764 = vadd.f32 %v4748, 1.0
  %v4765 = vadd.f32 %v4749, 1.0
  %v4766 = vadd.f32 %v4750, 1.0
  %v4767 = vadd.f32 %v4751, 1.0
  %v4768 = vadd.f32 %v4752, 1.0
  %v4769 = vadd.f32 %v4753, 1.0
  %v4770 = vadd.f32 %v4754, 1.0
  %v4771 = vadd.f32 %v4755, 1.0
  %v4772 = vadd.f32 %v4756, 1.0
  %v4773 = vadd.f32 %v4757, 1.0
  %v4774 = vmul.f32 %v4710, %v4758
  %v4775 = vmul.f32 %v4711, %v4759
  %v4776 = vmul.f32 %v4712, %v4760
  %v4777 = vmul.f32 %v4713, %v4761
  %v4778 = vmul.f32 %v4714, %v4762
  %v4779 = vmul.f32 %v4715, %v4763
  %v4780 = vmul.f32 %v4716, %v4764
  %v4781 = vmul.f32 %v4717, %v4765
  %v4782 = vmul.f32 %v4718, %v4766
  %v4783 = vmul.f32 %v4719, %v4767
  %v4784 = vmul.f32 %v4720, %v4768
  %v4785 = vmul.f32 %v4721, %v4769
  %v4786 = vmul.f32 %v4722, %v4770
  %v4787 = vmul.f32 %v4723, %v4771
  %v4788 = vmul.f32 %v4724, %v4772
  %v4789 = vmul.f32 %v4725, %v4773
  %v4790 = vld [vmem:[%s11] sm:$0xff]
  %v4791 = vld [vmem:[%s11 + $0x8] sm:$0xff]
  %v4792 = vld [vmem:[%s11 + $0x10] sm:$0xff]
  %v4793 = vld [vmem:[%s11 + $0x18] sm:$0xff]
  %v4794 = vld [vmem:[%s11 + $0x20] sm:$0xff]
  %v4795 = vld [vmem:[%s11 + $0x28] sm:$0xff]
  %v4796 = vld [vmem:[%s11 + $0x30] sm:$0xff]
  %v4797 = vld [vmem:[%s11 + $0x38] sm:$0xff]
  %v4798 = vld [vmem:[%s11 + $0x40] sm:$0xff]
  %v4799 = vld [vmem:[%s11 + $0x48] sm:$0xff]
  %v4800 = vld [vmem:[%s11 + $0x50] sm:$0xff]
  %v4801 = vld [vmem:[%s11 + $0x58] sm:$0xff]
  %v4802 = vld [vmem:[%s11 + $0x60] sm:$0xff]
  %v4803 = vld [vmem:[%s11 + $0x68] sm:$0xff]
  %v4804 = vld [vmem:[%s11 + $0x70] sm:$0xff]
  %v4805 = vld [vmem:[%s11 + $0x78] sm:$0xff]
  %v4806 = vld [vmem:[%s12] sm:$0x1]
  %v4808 = vlaneseq
  %v4809 = vshrl.u32 %v4808, 7
  %v4810 = vsub.s32 0, %v4809
  %v4811 = vrot.slane %v4806, %v4810
  %4813 = vmatprep.subr.mxu0 0.0
  %4814 = vmatpush1.msra.mxu0 %v4805
  %4815 = vmatprep.subr.mxu0 0.0
  %4816 = vmatpush1.msra.mxu0 %v4804
  %4817 = vmatprep.subr.mxu0 0.0
  %4818 = vmatpush1.msra.mxu0 %v4803
  %4819 = vmatprep.subr.mxu0 0.0
  %4820 = vmatpush1.msra.mxu0 %v4802
  %4821 = vmatprep.subr.mxu0 0.0
  %4822 = vmatpush1.msra.mxu0 %v4801
  %4823 = vmatprep.subr.mxu0 0.0
  %4824 = vmatpush1.msra.mxu0 %v4800
  %4825 = vmatprep.subr.mxu0 0.0
  %4826 = vmatpush1.msra.mxu0 %v4799
  %4827 = vmatprep.subr.mxu0 0.0
  %4828 = vmatpush1.msra.mxu0 %v4798
  %4829 = vmatprep.subr.mxu0 0.0
  %4830 = vmatpush1.msra.mxu0 %v4797
  %4831 = vmatprep.subr.mxu0 0.0
  %4832 = vmatpush1.msra.mxu0 %v4796
  %4833 = vmatprep.subr.mxu0 0.0
  %4834 = vmatpush1.msra.mxu0 %v4795
  %4835 = vmatprep.subr.mxu0 0.0
  %4836 = vmatpush1.msra.mxu0 %v4794
  %4837 = vmatprep.subr.mxu0 0.0
  %4838 = vmatpush1.msra.mxu0 %v4793
  %4839 = vmatprep.subr.mxu0 0.0
  %4840 = vmatpush1.msra.mxu0 %v4792
  %4841 = vmatprep.subr.mxu0 0.0
  %4842 = vmatpush1.msra.mxu0 %v4791
  %4843 = vmatprep.subr.mxu0 0.0
  %4844 = vmatpush1.msra.mxu0 %v4790
  %4845 = vmatprep.subr.mxu0 0.0
  %4846 = vmatpush2.msra.mxu0 0.0
  %4847 = vmatprep.subr.mxu0 0.0
  %4848 = vmatpush2.msra.mxu0 0.0
  %4849 = vmatprep.subr.mxu0 0.0
  %4850 = vmatpush2.msra.mxu0 0.0
  %4851 = vmatprep.subr.mxu0 0.0
  %4852 = vmatpush2.msra.mxu0 0.0
  %4853 = vmatprep.subr.mxu0 0.0
  %4854 = vmatpush2.msra.mxu0 0.0
  %4855 = vmatprep.subr.mxu0 0.0
  %4856 = vmatpush2.msra.mxu0 0.0
  %4857 = vmatprep.subr.mxu0 0.0
  %4858 = vmatpush2.msra.mxu0 0.0
  %4859 = vmatprep.subr.mxu0 0.0
  %4860 = vmatpush2.msra.mxu0 0.0
  %4861 = vmatprep.subr.mxu0 0.0
  %4862 = vmatpush2.msra.mxu0 0.0
  %4863 = vmatprep.subr.mxu0 0.0
  %4864 = vmatpush2.msra.mxu0 0.0
  %4865 = vmatprep.subr.mxu0 0.0
  %4866 = vmatpush2.msra.mxu0 0.0
  %4867 = vmatprep.subr.mxu0 0.0
  %4868 = vmatpush2.msra.mxu0 0.0
  %4869 = vmatprep.subr.mxu0 0.0
  %4870 = vmatpush2.msra.mxu0 0.0
  %4871 = vmatprep.subr.mxu0 0.0
  %4872 = vmatpush2.msra.mxu0 0.0
  %4873 = vmatprep.subr.mxu0 0.0
  %4874 = vmatpush2.msra.mxu0 0.0
  %4875 = vmatprep.subr.mxu0 0.0
  %4876 = vmatpush2.msra.mxu0 0.0
  %4877 = vmatprep.mubr.f32.mxu0 0.0
  %4878 = vmatmul.mubr.f32.gmra.mxu0 %v4774
  %v4879 = vpop.f32.mrf.mxu0
  %v4880 = vadd.f32 %v4811, %v4879
  %v4881 = vpop.f32.mrf.mxu0
  %4882 = vmatprep.mubr.f32.mxu0 0.0
  %4883 = vmatmul.mubr.f32.gmra.mxu0 %v4775
  %v4884 = vpop.f32.mrf.mxu0
  %v4885 = vadd.f32 %v4811, %v4884
  %v4886 = vpop.f32.mrf.mxu0
  %4887 = vmatprep.mubr.f32.mxu0 0.0
  %4888 = vmatmul.mubr.f32.gmra.mxu0 %v4776
  %v4889 = vpop.f32.mrf.mxu0
  %v4890 = vadd.f32 %v4811, %v4889
  %v4891 = vpop.f32.mrf.mxu0
  %4892 = vmatprep.mubr.f32.mxu0 0.0
  %4893 = vmatmul.mubr.f32.gmra.mxu0 %v4777
  %v4894 = vpop.f32.mrf.mxu0
  %v4895 = vadd.f32 %v4811, %v4894
  %v4896 = vpop.f32.mrf.mxu0
  %4897 = vmatprep.mubr.f32.mxu0 0.0
  %4898 = vmatmul.mubr.f32.gmra.mxu0 %v4778
  %v4899 = vpop.f32.mrf.mxu0
  %v4900 = vadd.f32 %v4811, %v4899
  %v4901 = vpop.f32.mrf.mxu0
  %4902 = vmatprep.mubr.f32.mxu0 0.0
  %4903 = vmatmul.mubr.f32.gmra.mxu0 %v4779
  %v4904 = vpop.f32.mrf.mxu0
  %v4905 = vadd.f32 %v4811, %v4904
  %v4906 = vpop.f32.mrf.mxu0
  %4907 = vmatprep.mubr.f32.mxu0 0.0
  %4908 = vmatmul.mubr.f32.gmra.mxu0 %v4780
  %v4909 = vpop.f32.mrf.mxu0
  %v4910 = vadd.f32 %v4811, %v4909
  %v4911 = vpop.f32.mrf.mxu0
  %4912 = vmatprep.mubr.f32.mxu0 0.0
  %4913 = vmatmul.mubr.f32.gmra.mxu0 %v4781
  %v4914 = vpop.f32.mrf.mxu0
  %v4915 = vadd.f32 %v4811, %v4914
  %v4916 = vpop.f32.mrf.mxu0
  %4917 = vmatprep.mubr.f32.mxu0 0.0
  %4918 = vmatmul.mubr.f32.gmra.mxu0 %v4782
  %v4919 = vpop.f32.mrf.mxu0
  %v4920 = vadd.f32 %v4811, %v4919
  %v4921 = vpop.f32.mrf.mxu0
  %4922 = vmatprep.mubr.f32.mxu0 0.0
  %4923 = vmatmul.mubr.f32.gmra.mxu0 %v4783
  %v4924 = vpop.f32.mrf.mxu0
  %v4925 = vadd.f32 %v4811, %v4924
  %v4926 = vpop.f32.mrf.mxu0
  %4927 = vmatprep.mubr.f32.mxu0 0.0
  %4928 = vmatmul.mubr.f32.gmra.mxu0 %v4784
  %v4929 = vpop.f32.mrf.mxu0
  %v4930 = vadd.f32 %v4811, %v4929
  %v4931 = vpop.f32.mrf.mxu0
  %4932 = vmatprep.mubr.f32.mxu0 0.0
  %4933 = vmatmul.mubr.f32.gmra.mxu0 %v4785
  %v4934 = vpop.f32.mrf.mxu0
  %v4935 = vadd.f32 %v4811, %v4934
  %v4936 = vpop.f32.mrf.mxu0
  %4937 = vmatprep.mubr.f32.mxu0 0.0
  %4938 = vmatmul.mubr.f32.gmra.mxu0 %v4786
  %v4939 = vpop.f32.mrf.mxu0
  %v4940 = vadd.f32 %v4811, %v4939
  %v4941 = vpop.f32.mrf.mxu0
  %4942 = vmatprep.mubr.f32.mxu0 0.0
  %4943 = vmatmul.mubr.f32.gmra.mxu0 %v4787
  %v4944 = vpop.f32.mrf.mxu0
  %v4945 = vadd.f32 %v4811, %v4944
  %v4946 = vpop.f32.mrf.mxu0
  %4947 = vmatprep.mubr.f32.mxu0 0.0
  %4948 = vmatmul.mubr.f32.gmra.mxu0 %v4788
  %v4949 = vpop.f32.mrf.mxu0
  %v4950 = vadd.f32 %v4811, %v4949
  %v4951 = vpop.f32.mrf.mxu0
  %4952 = vmatprep.mubr.f32.mxu0 0.0
  %4953 = vmatmul.mubr.f32.gmra.mxu0 %v4789
  %v4954 = vpop.f32.mrf.mxu0
  %v4955 = vadd.f32 %v4811, %v4954
  %v4956 = vpop.f32.mrf.mxu0
  %4957 = vdwg.mxu0
  %v4958 = vlaneseq
  %v4959 = vshrl.u32 %v4958, 7
  %v4960 = vsub.s32 0, %v4959
  %v4961 = vrot.slane %v203, %v4960
  %v4962 = vlaneseq
  %v4963 = vshrl.u32 %v4962, 7
  %v4964 = vsub.s32 0, %v4963
  %v4965 = vrot.slane %v210, %v4964
  %4984 = vrot.lane.b32.xlu0 %v4880, 32
  %v4985 = vpop.permute.xlu0 %4984
  %4986 = vrot.lane.b32.xlu0 %v4885, 32
  %v4987 = vpop.permute.xlu0 %4986
  %4988 = vrot.lane.b32.xlu0 %v4890, 32
  %v4989 = vpop.permute.xlu0 %4988
  %4990 = vrot.lane.b32.xlu0 %v4895, 32
  %v4991 = vpop.permute.xlu0 %4990
  %4992 = vrot.lane.b32.xlu0 %v4900, 32
  %v4993 = vpop.permute.xlu0 %4992
  %4994 = vrot.lane.b32.xlu0 %v4905, 32
  %v4995 = vpop.permute.xlu0 %4994
  %4996 = vrot.lane.b32.xlu0 %v4910, 32
  %v4997 = vpop.permute.xlu0 %4996
  %4998 = vrot.lane.b32.xlu0 %v4915, 32
  %v4999 = vpop.permute.xlu0 %4998
  %5000 = vrot.lane.b32.xlu0 %v4920, 32
  %v5001 = vpop.permute.xlu0 %5000
  %5002 = vrot.lane.b32.xlu0 %v4925, 32
  %v5003 = vpop.permute.xlu0 %5002
  %5004 = vrot.lane.b32.xlu0 %v4930, 32
  %v5005 = vpop.permute.xlu0 %5004
  %5006 = vrot.lane.b32.xlu0 %v4935, 32
  %v5007 = vpop.permute.xlu0 %5006
  %5008 = vrot.lane.b32.xlu0 %v4940, 32
  %v5009 = vpop.permute.xlu0 %5008
  %5010 = vrot.lane.b32.xlu0 %v4945, 32
  %v5011 = vpop.permute.xlu0 %5010
  %5012 = vrot.lane.b32.xlu0 %v4950, 32
  %v5013 = vpop.permute.xlu0 %5012
  %5014 = vrot.lane.b32.xlu0 %v4955, 32
  %v5015 = vpop.permute.xlu0 %5014
  %v5032 = vmul.f32 %v4961, %v4985
  %v5033 = vmul.f32 %v4961, %v4987
  %v5034 = vmul.f32 %v4961, %v4989
  %v5035 = vmul.f32 %v4961, %v4991
  %v5036 = vmul.f32 %v4961, %v4993
  %v5037 = vmul.f32 %v4961, %v4995
  %v5038 = vmul.f32 %v4961, %v4997
  %v5039 = vmul.f32 %v4961, %v4999
  %v5040 = vmul.f32 %v4965, %v5001
  %v5041 = vmul.f32 %v4965, %v5003
  %v5042 = vmul.f32 %v4965, %v5005
  %v5043 = vmul.f32 %v4965, %v5007
  %v5044 = vmul.f32 %v4965, %v5009
  %v5045 = vmul.f32 %v4965, %v5011
  %v5046 = vmul.f32 %v4965, %v5013
  %v5047 = vmul.f32 %v4965, %v5015
  %5064 = vrot.lane.b32.xlu0 %v5032, 96
  %v5065 = vpop.permute.xlu0 %5064
  %5066 = vrot.lane.b32.xlu0 %v5033, 96
  %v5067 = vpop.permute.xlu0 %5066
  %5068 = vrot.lane.b32.xlu0 %v5034, 96
  %v5069 = vpop.permute.xlu0 %5068
  %5070 = vrot.lane.b32.xlu0 %v5035, 96
  %v5071 = vpop.permute.xlu0 %5070
  %5072 = vrot.lane.b32.xlu0 %v5036, 96
  %v5073 = vpop.permute.xlu0 %5072
  %5074 = vrot.lane.b32.xlu0 %v5037, 96
  %v5075 = vpop.permute.xlu0 %5074
  %5076 = vrot.lane.b32.xlu0 %v5038, 96
  %v5077 = vpop.permute.xlu0 %5076
  %5078 = vrot.lane.b32.xlu0 %v5039, 96
  %v5079 = vpop.permute.xlu0 %5078
  %5080 = vrot.lane.b32.xlu0 %v5040, 96
  %v5081 = vpop.permute.xlu0 %5080
  %5082 = vrot.lane.b32.xlu0 %v5041, 96
  %v5083 = vpop.permute.xlu0 %5082
  %5084 = vrot.lane.b32.xlu0 %v5042, 96
  %v5085 = vpop.permute.xlu0 %5084
  %5086 = vrot.lane.b32.xlu0 %v5043, 96
  %v5087 = vpop.permute.xlu0 %5086
  %5088 = vrot.lane.b32.xlu0 %v5044, 96
  %v5089 = vpop.permute.xlu0 %5088
  %5090 = vrot.lane.b32.xlu0 %v5045, 96
  %v5091 = vpop.permute.xlu0 %5090
  %5092 = vrot.lane.b32.xlu0 %v5046, 96
  %v5093 = vpop.permute.xlu0 %5092
  %5094 = vrot.lane.b32.xlu0 %v5047, 96
  %v5095 = vpop.permute.xlu0 %5094
  %v5112 = vadd.f32 %v4230, %v5065
  %v5113 = vadd.f32 %v4231, %v5067
  %v5114 = vadd.f32 %v4232, %v5069
  %v5115 = vadd.f32 %v4233, %v5071
  %v5116 = vadd.f32 %v4234, %v5073
  %v5117 = vadd.f32 %v4235, %v5075
  %v5118 = vadd.f32 %v4236, %v5077
  %v5119 = vadd.f32 %v4237, %v5079
  %v5120 = vadd.f32 %v4238, %v5081
  %v5121 = vadd.f32 %v4239, %v5083
  %v5122 = vadd.f32 %v4240, %v5085
  %v5123 = vadd.f32 %v4241, %v5087
  %v5124 = vadd.f32 %v4242, %v5089
  %v5125 = vadd.f32 %v4243, %v5091
  %v5126 = vadd.f32 %v4244, %v5093
  %v5127 = vadd.f32 %v4245, %v5095
  %5128 = vst.msk [vmem:[%s13] sm:$0xff] %vm88, %v5112
  %5129 = vst.msk [vmem:[%s13 + $0x8] sm:$0xff] %vm88, %v5113
  %5130 = vst.msk [vmem:[%s13 + $0x10] sm:$0xff] %vm88, %v5114
  %5131 = vst.msk [vmem:[%s13 + $0x18] sm:$0xff] %vm88, %v5115
  %5132 = vst.msk [vmem:[%s13 + $0x20] sm:$0xff] %vm88, %v5116
  %5133 = vst.msk [vmem:[%s13 + $0x28] sm:$0xff] %vm88, %v5117
  %5134 = vst.msk [vmem:[%s13 + $0x30] sm:$0xff] %vm88, %v5118
  %5135 = vst.msk [vmem:[%s13 + $0x38] sm:$0xff] %vm88, %v5119
  %5136 = vst.msk [vmem:[%s13 + $0x40] sm:$0xff] %vm88, %v5120
  %5137 = vst.msk [vmem:[%s13 + $0x48] sm:$0xff] %vm88, %v5121
  %5138 = vst.msk [vmem:[%s13 + $0x50] sm:$0xff] %vm88, %v5122
  %5139 = vst.msk [vmem:[%s13 + $0x58] sm:$0xff] %vm88, %v5123
  %5140 = vst.msk [vmem:[%s13 + $0x60] sm:$0xff] %vm88, %v5124
  %5141 = vst.msk [vmem:[%s13 + $0x68] sm:$0xff] %vm88, %v5125
  %5142 = vst.msk [vmem:[%s13 + $0x70] sm:$0xff] %vm88, %v5126
  %5143 = vst.msk [vmem:[%s13 + $0x78] sm:$0xff] %vm88, %v5127
  // Predicated region
  $region54: #{tpu_custom_call.1} parent=0 // pred_check
    _
  $region55: #{tpu_custom_call.1} parent=0 // pred_check_branch
    %5145 = sbr.rel (0) target = $region57
  $region56: #{tpu_custom_call.1} parent=0 // pred_region
    _
  $region57: #{tpu_custom_call.1} parent=0 // pred_fallthru
    _
  // Predicated region
  $region58: #{tpu_custom_call.1} parent=0 // pred_check
    _
  $region59: #{tpu_custom_call.1} parent=0 // pred_check_branch
    %5147 = sbr.rel (0) target = $region61
  $region60: #{tpu_custom_call.1} parent=0 // pred_region
    _
  $region61: #{tpu_custom_call.1} parent=0 // pred_fallthru
    _

</llo_original>
